<compile_context>
chip_gen: v7x
topology: tpu7x:2x2x1
jax: 0.10.0
libtpu: 0.0.40
codegen_flags: <defaults>
</compile_context>

<pallas_src>
import functools

import numpy as np

import jax
import jax.numpy as jnp
from jax.experimental import pallas as pl
from jax.experimental.pallas import tpu as pltpu


def _gauss_taps(window_size, sigma):
    """Normalized 1-D Gaussian taps as static Python floats (trace-time)."""
    xs = np.arange(window_size, dtype=np.float64)
    g = np.exp(-((xs - window_size // 2) ** 2) / (2.0 * sigma ** 2))
    g = g / g.sum()
    return tuple(float(v) for v in g)


def _ssim_kernel(x_ref, y_ref, o_ref, acc_ref, *, taps, h, w, inv_count):
    # x_ref / y_ref: (nb, h + 2r, w + 2r) blocks of the zero-padded images.
    i = pl.program_id(0)

    @pl.when(i == 0)
    def _init():
        acc_ref[0] = jnp.float32(0.0)

    xp = x_ref[...].astype(jnp.float32)
    yp = y_ref[...].astype(jnp.float32)

    n = len(taps)
    half = n // 2  # window_size asserted odd in the wrapper

    def blur(zp):
        # Separable Gaussian blur with SAME zero padding, exact f32 (VPU).
        # Symmetric taps are paired: taps[b] * (shift_b + shift_{n-1-b}),
        # reducing multiplies per pass from n to n//2 + 1.
        # Pass 1: convolve along W (lane axis) -> (nb, h + 2r, w)
        t = taps[half] * zp[:, :, half:half + w]
        for b in range(half):
            t = t + taps[b] * (zp[:, :, b:b + w] +
                               zp[:, :, n - 1 - b:n - 1 - b + w])
        # Pass 2: convolve along H (sublane axis) -> (nb, h, w)
        out = taps[half] * t[:, half:half + h, :]
        for a in range(half):
            out = out + taps[a] * (t[:, a:a + h, :] +
                                   t[:, n - 1 - a:n - 1 - a + h, :])
        return out

    mu1 = blur(xp)
    mu2 = blur(yp)
    mu1_sq = mu1 * mu1
    mu2_sq = mu2 * mu2
    mu1_mu2 = mu1 * mu2
    # Products of the zero-padded images equal the zero-padded products.
    sigma1_sq = blur(xp * xp) - mu1_sq
    sigma2_sq = blur(yp * yp) - mu2_sq
    sigma_12 = blur(xp * yp) - mu1_mu2

    c0 = 0.01 ** 2
    c1 = 0.03 ** 2
    num = (2.0 * mu1_mu2 + c0) * (2.0 * sigma_12 + c1)
    den = (mu1_sq + mu2_sq + c0) * (sigma1_sq + sigma2_sq + c1)
    ssim_map = num / den

    acc_ref[0] += jnp.sum(ssim_map)

    @pl.when(i == pl.num_programs(0) - 1)
    def _finalize():
        o_ref[0, 0] = jnp.float32(1.0) - acc_ref[0] * jnp.float32(inv_count)


@functools.partial(jax.jit, static_argnames=("window_size", "sigma"))
def ssim_loss(img0, img1, window_size=11, sigma=1.5):
    """Pallas TPU SSIM loss: returns scalar float32 `1 - mean(ssim_map)`."""
    assert img0.shape == img1.shape, "img0/img1 must have the same shape"
    assert window_size % 2 == 1, "SAME-size output requires an odd window"
    B, C, H, W = img0.shape
    N = B * C
    r = window_size // 2
    Hp, Wp = H + 2 * r, W + 2 * r

    # Zero-pad once in the ORIGINAL dtype (no wrapper-side upcast); the kernel
    # casts each tile to f32 as it streams through VMEM.
    x = jnp.pad(img0.reshape(N, H, W), ((0, 0), (r, r), (r, r)))
    y = jnp.pad(img1.reshape(N, H, W), ((0, 0), (r, r), (r, r)))

    # Images per grid step: largest divisor of N keeping one padded f32 block
    # <= ~512 KiB.  Peak in-kernel live set is ~12-16 such blocks (two padded
    # operands, the current blur input + pass-1 intermediate, results) plus
    # double-buffered inputs, i.e. <= ~8-10 MiB, well inside the 32 MiB scoped
    # VMEM budget requested below on every generation (v5e/v6e/v7x).
    max_nb = max(1, (512 * 1024) // (Hp * Wp * 4))
    nb = 1
    for d in range(1, N + 1):
        if N % d == 0 and d <= max_nb:
            nb = d
    grid = (N // nb,)

    taps = _gauss_taps(window_size, sigma)
    kernel = functools.partial(
        _ssim_kernel,
        taps=taps,
        h=H,
        w=W,
        inv_count=1.0 / float(N * H * W),
    )

    out = pl.pallas_call(
        kernel,
        out_shape=jax.ShapeDtypeStruct((1, 1), jnp.float32),
        grid_spec=pltpu.PrefetchScalarGridSpec(
            num_scalar_prefetch=0,
            grid=grid,
            in_specs=[
                pl.BlockSpec((nb, Hp, Wp), lambda i: (i, 0, 0)),
                pl.BlockSpec((nb, Hp, Wp), lambda i: (i, 0, 0)),
            ],
            out_specs=pl.BlockSpec(memory_space=pltpu.SMEM),
            scratch_shapes=[pltpu.SMEM((1,), jnp.float32)],
        ),
        compiler_params=pltpu.CompilerParams(
            dimension_semantics=("arbitrary",),  # running reduction over grid
            vmem_limit_bytes=32 * 1024 * 1024,
        ),
    )(x, y)

    return out[0, 0]


def _ssim_ref(img0, img1, window_size=11, sigma=1.5):
    """Pure-JAX reference (explicit 2-D window, exact f32 elementwise)."""
    xs = np.arange(window_size, dtype=np.float64)
    g = np.exp(-((xs - window_size // 2) ** 2) / (2.0 * sigma ** 2))
    k2d = np.outer(g, g)
    k2d = (k2d / k2d.sum()).astype(np.float32)
    r = window_size // 2

    def conv(z):
        _, _, H, W = z.shape
        zp = jnp.pad(z.astype(jnp.float32), ((0, 0), (0, 0), (r, r), (r, r)))
        out = jnp.zeros(z.shape, jnp.float32)
        for a in range(window_size):
            for b in range(window_size):
                out = out + float(k2d[a, b]) * zp[:, :, a:a + H, b:b + W]
        return out

    a = img0.astype(jnp.float32)
    b = img1.astype(jnp.float32)
    mu1 = conv(a)
    mu2 = conv(b)
    mu1_sq = mu1 * mu1
    mu2_sq = mu2 * mu2
    mu1_mu2 = mu1 * mu2
    s1 = conv(a * a) - mu1_sq
    s2 = conv(b * b) - mu2_sq
    s12 = conv(a * b) - mu1_mu2
    c0 = 0.01 ** 2
    c1 = 0.03 ** 2
    m = (2 * mu1_mu2 + c0) * (2 * s12 + c1) / ((mu1_sq + mu2_sq + c0) * (s1 + s2 + c1))
    return 1.0 - jnp.mean(m)


if __name__ == "__main__":
    key = jax.random.PRNGKey(0)
    k1, k2 = jax.random.split(key)
    # Single-channel NCHW images (the PyTorch module's conv setup implies ch=1):
    # batch=2, channels=1, spatial=16x16, values in [0, 1].
    img0 = jax.random.uniform(k1, (2, 1, 16, 16), dtype=jnp.float32)
    img1 = jnp.clip(
        img0 + 0.1 * jax.random.normal(k2, (2, 1, 16, 16), dtype=jnp.float32),
        0.0, 1.0)

    loss = ssim_loss(img0, img1, window_size=11)
    jax.block_until_ready(loss)

    ref = _ssim_ref(img0, img1, window_size=11)
    assert jnp.allclose(loss, ref, rtol=1e-3, atol=1e-4), (loss, ref)
    print("KERNEL_OK")
</pallas_src>

<mosaic_0001>
module attributes {stable_mosaic.version = 11 : i64} {
  func.func @_ssim_kernel(%arg0: i32, %arg1: memref<2x26x26xf32, #tpu.memory_space<vmem>>, %arg2: memref<2x26x26xf32, #tpu.memory_space<vmem>>, %arg3: memref<1x1xf32, #tpu.memory_space<smem>>, %arg4: memref<1xf32, #tpu.memory_space<smem>>) attributes {dimension_semantics = [#tpu.dimension_semantics<arbitrary>], iteration_bounds = array<i64: 1>, scalar_prefetch = 0 : i64, scratch_operands = 1 : i64, tpu.core_type = #tpu.core_type<tc>, window_params = [{transform_indices = @transform_0, window_bounds = array<i64: 2, 26, 26>}, {transform_indices = @transform_1, window_bounds = array<i64: 2, 26, 26>}, {transform_indices = @transform_2, window_bounds = array<i64: 1, 1>}]} {
    %c0_i32 = arith.constant 0 : i32
    %0 = arith.cmpi eq, %arg0, %c0_i32 : i32
    %1 = arith.extui %0 : i1 to i32
    %c0_i32_0 = arith.constant 0 : i32
    %2 = arith.cmpi ne, %1, %c0_i32_0 : i32
    scf.if %2 {
      %cst_76 = arith.constant 0.000000e+00 : f32
      %c0_77 = arith.constant 0 : index
      %371 = memref.load %arg4[%c0_77] : memref<1xf32, #tpu.memory_space<smem>>
      memref.store %cst_76, %arg4[%c0_77] : memref<1xf32, #tpu.memory_space<smem>>
    } else {
    }
    %c0 = arith.constant 0 : index
    %c0_1 = arith.constant 0 : index
    %c0_2 = arith.constant 0 : index
    %3 = vector.load %arg1[%c0, %c0_1, %c0_2] : memref<2x26x26xf32, #tpu.memory_space<vmem>>, vector<2x26x26xf32>
    %c0_3 = arith.constant 0 : index
    %c0_4 = arith.constant 0 : index
    %c0_5 = arith.constant 0 : index
    %4 = vector.load %arg2[%c0_3, %c0_4, %c0_5] : memref<2x26x26xf32, #tpu.memory_space<vmem>>, vector<2x26x26xf32>
    %5 = vector.extract_strided_slice %3 {offsets = [0, 0, 5], sizes = [2, 26, 16], strides = [1, 1, 1]} : vector<2x26x26xf32> to vector<2x26x16xf32>
    %cst = arith.constant 0.266011715 : f32
    %6 = vector.broadcast %cst : f32 to vector<2x26x16xf32>
    %7 = arith.mulf %6, %5 : vector<2x26x16xf32>
    %8 = vector.extract_strided_slice %3 {offsets = [0, 0, 0], sizes = [2, 26, 16], strides = [1, 1, 1]} : vector<2x26x26xf32> to vector<2x26x16xf32>
    %9 = vector.extract_strided_slice %3 {offsets = [0, 0, 10], sizes = [2, 26, 16], strides = [1, 1, 1]} : vector<2x26x26xf32> to vector<2x26x16xf32>
    %10 = arith.addf %8, %9 : vector<2x26x16xf32>
    %cst_6 = arith.constant 0.00102838012 : f32
    %11 = vector.broadcast %cst_6 : f32 to vector<2x26x16xf32>
    %12 = arith.mulf %11, %10 : vector<2x26x16xf32>
    %13 = arith.addf %7, %12 : vector<2x26x16xf32>
    %14 = vector.extract_strided_slice %3 {offsets = [0, 0, 1], sizes = [2, 26, 16], strides = [1, 1, 1]} : vector<2x26x26xf32> to vector<2x26x16xf32>
    %15 = vector.extract_strided_slice %3 {offsets = [0, 0, 9], sizes = [2, 26, 16], strides = [1, 1, 1]} : vector<2x26x26xf32> to vector<2x26x16xf32>
    %16 = arith.addf %14, %15 : vector<2x26x16xf32>
    %cst_7 = arith.constant 0.00759875821 : f32
    %17 = vector.broadcast %cst_7 : f32 to vector<2x26x16xf32>
    %18 = arith.mulf %17, %16 : vector<2x26x16xf32>
    %19 = arith.addf %13, %18 : vector<2x26x16xf32>
    %20 = vector.extract_strided_slice %3 {offsets = [0, 0, 2], sizes = [2, 26, 16], strides = [1, 1, 1]} : vector<2x26x26xf32> to vector<2x26x16xf32>
    %21 = vector.extract_strided_slice %3 {offsets = [0, 0, 8], sizes = [2, 26, 16], strides = [1, 1, 1]} : vector<2x26x26xf32> to vector<2x26x16xf32>
    %22 = arith.addf %20, %21 : vector<2x26x16xf32>
    %cst_8 = arith.constant 0.0360007733 : f32
    %23 = vector.broadcast %cst_8 : f32 to vector<2x26x16xf32>
    %24 = arith.mulf %23, %22 : vector<2x26x16xf32>
    %25 = arith.addf %19, %24 : vector<2x26x16xf32>
    %26 = vector.extract_strided_slice %3 {offsets = [0, 0, 3], sizes = [2, 26, 16], strides = [1, 1, 1]} : vector<2x26x26xf32> to vector<2x26x16xf32>
    %27 = vector.extract_strided_slice %3 {offsets = [0, 0, 7], sizes = [2, 26, 16], strides = [1, 1, 1]} : vector<2x26x26xf32> to vector<2x26x16xf32>
    %28 = arith.addf %26, %27 : vector<2x26x16xf32>
    %cst_9 = arith.constant 0.109360687 : f32
    %29 = vector.broadcast %cst_9 : f32 to vector<2x26x16xf32>
    %30 = arith.mulf %29, %28 : vector<2x26x16xf32>
    %31 = arith.addf %25, %30 : vector<2x26x16xf32>
    %32 = vector.extract_strided_slice %3 {offsets = [0, 0, 4], sizes = [2, 26, 16], strides = [1, 1, 1]} : vector<2x26x26xf32> to vector<2x26x16xf32>
    %33 = vector.extract_strided_slice %3 {offsets = [0, 0, 6], sizes = [2, 26, 16], strides = [1, 1, 1]} : vector<2x26x26xf32> to vector<2x26x16xf32>
    %34 = arith.addf %32, %33 : vector<2x26x16xf32>
    %cst_10 = arith.constant 0.213005543 : f32
    %35 = vector.broadcast %cst_10 : f32 to vector<2x26x16xf32>
    %36 = arith.mulf %35, %34 : vector<2x26x16xf32>
    %37 = arith.addf %31, %36 : vector<2x26x16xf32>
    %38 = vector.extract_strided_slice %37 {offsets = [0, 5, 0], sizes = [2, 16, 16], strides = [1, 1, 1]} : vector<2x26x16xf32> to vector<2x16x16xf32>
    %cst_11 = arith.constant 0.266011715 : f32
    %39 = vector.broadcast %cst_11 : f32 to vector<2x16x16xf32>
    %40 = arith.mulf %39, %38 : vector<2x16x16xf32>
    %41 = vector.extract_strided_slice %37 {offsets = [0, 0, 0], sizes = [2, 16, 16], strides = [1, 1, 1]} : vector<2x26x16xf32> to vector<2x16x16xf32>
    %42 = vector.extract_strided_slice %37 {offsets = [0, 10, 0], sizes = [2, 16, 16], strides = [1, 1, 1]} : vector<2x26x16xf32> to vector<2x16x16xf32>
    %43 = arith.addf %41, %42 : vector<2x16x16xf32>
    %cst_12 = arith.constant 0.00102838012 : f32
    %44 = vector.broadcast %cst_12 : f32 to vector<2x16x16xf32>
    %45 = arith.mulf %44, %43 : vector<2x16x16xf32>
    %46 = arith.addf %40, %45 : vector<2x16x16xf32>
    %47 = vector.extract_strided_slice %37 {offsets = [0, 1, 0], sizes = [2, 16, 16], strides = [1, 1, 1]} : vector<2x26x16xf32> to vector<2x16x16xf32>
    %48 = vector.extract_strided_slice %37 {offsets = [0, 9, 0], sizes = [2, 16, 16], strides = [1, 1, 1]} : vector<2x26x16xf32> to vector<2x16x16xf32>
    %49 = arith.addf %47, %48 : vector<2x16x16xf32>
    %cst_13 = arith.constant 0.00759875821 : f32
    %50 = vector.broadcast %cst_13 : f32 to vector<2x16x16xf32>
    %51 = arith.mulf %50, %49 : vector<2x16x16xf32>
    %52 = arith.addf %46, %51 : vector<2x16x16xf32>
    %53 = vector.extract_strided_slice %37 {offsets = [0, 2, 0], sizes = [2, 16, 16], strides = [1, 1, 1]} : vector<2x26x16xf32> to vector<2x16x16xf32>
    %54 = vector.extract_strided_slice %37 {offsets = [0, 8, 0], sizes = [2, 16, 16], strides = [1, 1, 1]} : vector<2x26x16xf32> to vector<2x16x16xf32>
    %55 = arith.addf %53, %54 : vector<2x16x16xf32>
    %cst_14 = arith.constant 0.0360007733 : f32
    %56 = vector.broadcast %cst_14 : f32 to vector<2x16x16xf32>
    %57 = arith.mulf %56, %55 : vector<2x16x16xf32>
    %58 = arith.addf %52, %57 : vector<2x16x16xf32>
    %59 = vector.extract_strided_slice %37 {offsets = [0, 3, 0], sizes = [2, 16, 16], strides = [1, 1, 1]} : vector<2x26x16xf32> to vector<2x16x16xf32>
    %60 = vector.extract_strided_slice %37 {offsets = [0, 7, 0], sizes = [2, 16, 16], strides = [1, 1, 1]} : vector<2x26x16xf32> to vector<2x16x16xf32>
    %61 = arith.addf %59, %60 : vector<2x16x16xf32>
    %cst_15 = arith.constant 0.109360687 : f32
    %62 = vector.broadcast %cst_15 : f32 to vector<2x16x16xf32>
    %63 = arith.mulf %62, %61 : vector<2x16x16xf32>
    %64 = arith.addf %58, %63 : vector<2x16x16xf32>
    %65 = vector.extract_strided_slice %37 {offsets = [0, 4, 0], sizes = [2, 16, 16], strides = [1, 1, 1]} : vector<2x26x16xf32> to vector<2x16x16xf32>
    %66 = vector.extract_strided_slice %37 {offsets = [0, 6, 0], sizes = [2, 16, 16], strides = [1, 1, 1]} : vector<2x26x16xf32> to vector<2x16x16xf32>
    %67 = arith.addf %65, %66 : vector<2x16x16xf32>
    %cst_16 = arith.constant 0.213005543 : f32
    %68 = vector.broadcast %cst_16 : f32 to vector<2x16x16xf32>
    %69 = arith.mulf %68, %67 : vector<2x16x16xf32>
    %70 = arith.addf %64, %69 : vector<2x16x16xf32>
    %71 = vector.extract_strided_slice %4 {offsets = [0, 0, 5], sizes = [2, 26, 16], strides = [1, 1, 1]} : vector<2x26x26xf32> to vector<2x26x16xf32>
    %cst_17 = arith.constant 0.266011715 : f32
    %72 = vector.broadcast %cst_17 : f32 to vector<2x26x16xf32>
    %73 = arith.mulf %72, %71 : vector<2x26x16xf32>
    %74 = vector.extract_strided_slice %4 {offsets = [0, 0, 0], sizes = [2, 26, 16], strides = [1, 1, 1]} : vector<2x26x26xf32> to vector<2x26x16xf32>
    %75 = vector.extract_strided_slice %4 {offsets = [0, 0, 10], sizes = [2, 26, 16], strides = [1, 1, 1]} : vector<2x26x26xf32> to vector<2x26x16xf32>
    %76 = arith.addf %74, %75 : vector<2x26x16xf32>
    %cst_18 = arith.constant 0.00102838012 : f32
    %77 = vector.broadcast %cst_18 : f32 to vector<2x26x16xf32>
    %78 = arith.mulf %77, %76 : vector<2x26x16xf32>
    %79 = arith.addf %73, %78 : vector<2x26x16xf32>
    %80 = vector.extract_strided_slice %4 {offsets = [0, 0, 1], sizes = [2, 26, 16], strides = [1, 1, 1]} : vector<2x26x26xf32> to vector<2x26x16xf32>
    %81 = vector.extract_strided_slice %4 {offsets = [0, 0, 9], sizes = [2, 26, 16], strides = [1, 1, 1]} : vector<2x26x26xf32> to vector<2x26x16xf32>
    %82 = arith.addf %80, %81 : vector<2x26x16xf32>
    %cst_19 = arith.constant 0.00759875821 : f32
    %83 = vector.broadcast %cst_19 : f32 to vector<2x26x16xf32>
    %84 = arith.mulf %83, %82 : vector<2x26x16xf32>
    %85 = arith.addf %79, %84 : vector<2x26x16xf32>
    %86 = vector.extract_strided_slice %4 {offsets = [0, 0, 2], sizes = [2, 26, 16], strides = [1, 1, 1]} : vector<2x26x26xf32> to vector<2x26x16xf32>
    %87 = vector.extract_strided_slice %4 {offsets = [0, 0, 8], sizes = [2, 26, 16], strides = [1, 1, 1]} : vector<2x26x26xf32> to vector<2x26x16xf32>
    %88 = arith.addf %86, %87 : vector<2x26x16xf32>
    %cst_20 = arith.constant 0.0360007733 : f32
    %89 = vector.broadcast %cst_20 : f32 to vector<2x26x16xf32>
    %90 = arith.mulf %89, %88 : vector<2x26x16xf32>
    %91 = arith.addf %85, %90 : vector<2x26x16xf32>
    %92 = vector.extract_strided_slice %4 {offsets = [0, 0, 3], sizes = [2, 26, 16], strides = [1, 1, 1]} : vector<2x26x26xf32> to vector<2x26x16xf32>
    %93 = vector.extract_strided_slice %4 {offsets = [0, 0, 7], sizes = [2, 26, 16], strides = [1, 1, 1]} : vector<2x26x26xf32> to vector<2x26x16xf32>
    %94 = arith.addf %92, %93 : vector<2x26x16xf32>
    %cst_21 = arith.constant 0.109360687 : f32
    %95 = vector.broadcast %cst_21 : f32 to vector<2x26x16xf32>
    %96 = arith.mulf %95, %94 : vector<2x26x16xf32>
    %97 = arith.addf %91, %96 : vector<2x26x16xf32>
    %98 = vector.extract_strided_slice %4 {offsets = [0, 0, 4], sizes = [2, 26, 16], strides = [1, 1, 1]} : vector<2x26x26xf32> to vector<2x26x16xf32>
    %99 = vector.extract_strided_slice %4 {offsets = [0, 0, 6], sizes = [2, 26, 16], strides = [1, 1, 1]} : vector<2x26x26xf32> to vector<2x26x16xf32>
    %100 = arith.addf %98, %99 : vector<2x26x16xf32>
    %cst_22 = arith.constant 0.213005543 : f32
    %101 = vector.broadcast %cst_22 : f32 to vector<2x26x16xf32>
    %102 = arith.mulf %101, %100 : vector<2x26x16xf32>
    %103 = arith.addf %97, %102 : vector<2x26x16xf32>
    %104 = vector.extract_strided_slice %103 {offsets = [0, 5, 0], sizes = [2, 16, 16], strides = [1, 1, 1]} : vector<2x26x16xf32> to vector<2x16x16xf32>
    %cst_23 = arith.constant 0.266011715 : f32
    %105 = vector.broadcast %cst_23 : f32 to vector<2x16x16xf32>
    %106 = arith.mulf %105, %104 : vector<2x16x16xf32>
    %107 = vector.extract_strided_slice %103 {offsets = [0, 0, 0], sizes = [2, 16, 16], strides = [1, 1, 1]} : vector<2x26x16xf32> to vector<2x16x16xf32>
    %108 = vector.extract_strided_slice %103 {offsets = [0, 10, 0], sizes = [2, 16, 16], strides = [1, 1, 1]} : vector<2x26x16xf32> to vector<2x16x16xf32>
    %109 = arith.addf %107, %108 : vector<2x16x16xf32>
    %cst_24 = arith.constant 0.00102838012 : f32
    %110 = vector.broadcast %cst_24 : f32 to vector<2x16x16xf32>
    %111 = arith.mulf %110, %109 : vector<2x16x16xf32>
    %112 = arith.addf %106, %111 : vector<2x16x16xf32>
    %113 = vector.extract_strided_slice %103 {offsets = [0, 1, 0], sizes = [2, 16, 16], strides = [1, 1, 1]} : vector<2x26x16xf32> to vector<2x16x16xf32>
    %114 = vector.extract_strided_slice %103 {offsets = [0, 9, 0], sizes = [2, 16, 16], strides = [1, 1, 1]} : vector<2x26x16xf32> to vector<2x16x16xf32>
    %115 = arith.addf %113, %114 : vector<2x16x16xf32>
    %cst_25 = arith.constant 0.00759875821 : f32
    %116 = vector.broadcast %cst_25 : f32 to vector<2x16x16xf32>
    %117 = arith.mulf %116, %115 : vector<2x16x16xf32>
    %118 = arith.addf %112, %117 : vector<2x16x16xf32>
    %119 = vector.extract_strided_slice %103 {offsets = [0, 2, 0], sizes = [2, 16, 16], strides = [1, 1, 1]} : vector<2x26x16xf32> to vector<2x16x16xf32>
    %120 = vector.extract_strided_slice %103 {offsets = [0, 8, 0], sizes = [2, 16, 16], strides = [1, 1, 1]} : vector<2x26x16xf32> to vector<2x16x16xf32>
    %121 = arith.addf %119, %120 : vector<2x16x16xf32>
    %cst_26 = arith.constant 0.0360007733 : f32
    %122 = vector.broadcast %cst_26 : f32 to vector<2x16x16xf32>
    %123 = arith.mulf %122, %121 : vector<2x16x16xf32>
    %124 = arith.addf %118, %123 : vector<2x16x16xf32>
    %125 = vector.extract_strided_slice %103 {offsets = [0, 3, 0], sizes = [2, 16, 16], strides = [1, 1, 1]} : vector<2x26x16xf32> to vector<2x16x16xf32>
    %126 = vector.extract_strided_slice %103 {offsets = [0, 7, 0], sizes = [2, 16, 16], strides = [1, 1, 1]} : vector<2x26x16xf32> to vector<2x16x16xf32>
    %127 = arith.addf %125, %126 : vector<2x16x16xf32>
    %cst_27 = arith.constant 0.109360687 : f32
    %128 = vector.broadcast %cst_27 : f32 to vector<2x16x16xf32>
    %129 = arith.mulf %128, %127 : vector<2x16x16xf32>
    %130 = arith.addf %124, %129 : vector<2x16x16xf32>
    %131 = vector.extract_strided_slice %103 {offsets = [0, 4, 0], sizes = [2, 16, 16], strides = [1, 1, 1]} : vector<2x26x16xf32> to vector<2x16x16xf32>
    %132 = vector.extract_strided_slice %103 {offsets = [0, 6, 0], sizes = [2, 16, 16], strides = [1, 1, 1]} : vector<2x26x16xf32> to vector<2x16x16xf32>
    %133 = arith.addf %131, %132 : vector<2x16x16xf32>
    %cst_28 = arith.constant 0.213005543 : f32
    %134 = vector.broadcast %cst_28 : f32 to vector<2x16x16xf32>
    %135 = arith.mulf %134, %133 : vector<2x16x16xf32>
    %136 = arith.addf %130, %135 : vector<2x16x16xf32>
    %137 = arith.mulf %70, %70 : vector<2x16x16xf32>
    %138 = arith.mulf %136, %136 : vector<2x16x16xf32>
    %139 = arith.mulf %70, %136 : vector<2x16x16xf32>
    %140 = arith.mulf %3, %3 : vector<2x26x26xf32>
    %141 = vector.extract_strided_slice %140 {offsets = [0, 0, 5], sizes = [2, 26, 16], strides = [1, 1, 1]} : vector<2x26x26xf32> to vector<2x26x16xf32>
    %cst_29 = arith.constant 0.266011715 : f32
    %142 = vector.broadcast %cst_29 : f32 to vector<2x26x16xf32>
    %143 = arith.mulf %142, %141 : vector<2x26x16xf32>
    %144 = vector.extract_strided_slice %140 {offsets = [0, 0, 0], sizes = [2, 26, 16], strides = [1, 1, 1]} : vector<2x26x26xf32> to vector<2x26x16xf32>
    %145 = vector.extract_strided_slice %140 {offsets = [0, 0, 10], sizes = [2, 26, 16], strides = [1, 1, 1]} : vector<2x26x26xf32> to vector<2x26x16xf32>
    %146 = arith.addf %144, %145 : vector<2x26x16xf32>
    %cst_30 = arith.constant 0.00102838012 : f32
    %147 = vector.broadcast %cst_30 : f32 to vector<2x26x16xf32>
    %148 = arith.mulf %147, %146 : vector<2x26x16xf32>
    %149 = arith.addf %143, %148 : vector<2x26x16xf32>
    %150 = vector.extract_strided_slice %140 {offsets = [0, 0, 1], sizes = [2, 26, 16], strides = [1, 1, 1]} : vector<2x26x26xf32> to vector<2x26x16xf32>
    %151 = vector.extract_strided_slice %140 {offsets = [0, 0, 9], sizes = [2, 26, 16], strides = [1, 1, 1]} : vector<2x26x26xf32> to vector<2x26x16xf32>
    %152 = arith.addf %150, %151 : vector<2x26x16xf32>
    %cst_31 = arith.constant 0.00759875821 : f32
    %153 = vector.broadcast %cst_31 : f32 to vector<2x26x16xf32>
    %154 = arith.mulf %153, %152 : vector<2x26x16xf32>
    %155 = arith.addf %149, %154 : vector<2x26x16xf32>
    %156 = vector.extract_strided_slice %140 {offsets = [0, 0, 2], sizes = [2, 26, 16], strides = [1, 1, 1]} : vector<2x26x26xf32> to vector<2x26x16xf32>
    %157 = vector.extract_strided_slice %140 {offsets = [0, 0, 8], sizes = [2, 26, 16], strides = [1, 1, 1]} : vector<2x26x26xf32> to vector<2x26x16xf32>
    %158 = arith.addf %156, %157 : vector<2x26x16xf32>
    %cst_32 = arith.constant 0.0360007733 : f32
    %159 = vector.broadcast %cst_32 : f32 to vector<2x26x16xf32>
    %160 = arith.mulf %159, %158 : vector<2x26x16xf32>
    %161 = arith.addf %155, %160 : vector<2x26x16xf32>
    %162 = vector.extract_strided_slice %140 {offsets = [0, 0, 3], sizes = [2, 26, 16], strides = [1, 1, 1]} : vector<2x26x26xf32> to vector<2x26x16xf32>
    %163 = vector.extract_strided_slice %140 {offsets = [0, 0, 7], sizes = [2, 26, 16], strides = [1, 1, 1]} : vector<2x26x26xf32> to vector<2x26x16xf32>
    %164 = arith.addf %162, %163 : vector<2x26x16xf32>
    %cst_33 = arith.constant 0.109360687 : f32
    %165 = vector.broadcast %cst_33 : f32 to vector<2x26x16xf32>
    %166 = arith.mulf %165, %164 : vector<2x26x16xf32>
    %167 = arith.addf %161, %166 : vector<2x26x16xf32>
    %168 = vector.extract_strided_slice %140 {offsets = [0, 0, 4], sizes = [2, 26, 16], strides = [1, 1, 1]} : vector<2x26x26xf32> to vector<2x26x16xf32>
    %169 = vector.extract_strided_slice %140 {offsets = [0, 0, 6], sizes = [2, 26, 16], strides = [1, 1, 1]} : vector<2x26x26xf32> to vector<2x26x16xf32>
    %170 = arith.addf %168, %169 : vector<2x26x16xf32>
    %cst_34 = arith.constant 0.213005543 : f32
    %171 = vector.broadcast %cst_34 : f32 to vector<2x26x16xf32>
    %172 = arith.mulf %171, %170 : vector<2x26x16xf32>
    %173 = arith.addf %167, %172 : vector<2x26x16xf32>
    %174 = vector.extract_strided_slice %173 {offsets = [0, 5, 0], sizes = [2, 16, 16], strides = [1, 1, 1]} : vector<2x26x16xf32> to vector<2x16x16xf32>
    %cst_35 = arith.constant 0.266011715 : f32
    %175 = vector.broadcast %cst_35 : f32 to vector<2x16x16xf32>
    %176 = arith.mulf %175, %174 : vector<2x16x16xf32>
    %177 = vector.extract_strided_slice %173 {offsets = [0, 0, 0], sizes = [2, 16, 16], strides = [1, 1, 1]} : vector<2x26x16xf32> to vector<2x16x16xf32>
    %178 = vector.extract_strided_slice %173 {offsets = [0, 10, 0], sizes = [2, 16, 16], strides = [1, 1, 1]} : vector<2x26x16xf32> to vector<2x16x16xf32>
    %179 = arith.addf %177, %178 : vector<2x16x16xf32>
    %cst_36 = arith.constant 0.00102838012 : f32
    %180 = vector.broadcast %cst_36 : f32 to vector<2x16x16xf32>
    %181 = arith.mulf %180, %179 : vector<2x16x16xf32>
    %182 = arith.addf %176, %181 : vector<2x16x16xf32>
    %183 = vector.extract_strided_slice %173 {offsets = [0, 1, 0], sizes = [2, 16, 16], strides = [1, 1, 1]} : vector<2x26x16xf32> to vector<2x16x16xf32>
    %184 = vector.extract_strided_slice %173 {offsets = [0, 9, 0], sizes = [2, 16, 16], strides = [1, 1, 1]} : vector<2x26x16xf32> to vector<2x16x16xf32>
    %185 = arith.addf %183, %184 : vector<2x16x16xf32>
    %cst_37 = arith.constant 0.00759875821 : f32
    %186 = vector.broadcast %cst_37 : f32 to vector<2x16x16xf32>
    %187 = arith.mulf %186, %185 : vector<2x16x16xf32>
    %188 = arith.addf %182, %187 : vector<2x16x16xf32>
    %189 = vector.extract_strided_slice %173 {offsets = [0, 2, 0], sizes = [2, 16, 16], strides = [1, 1, 1]} : vector<2x26x16xf32> to vector<2x16x16xf32>
    %190 = vector.extract_strided_slice %173 {offsets = [0, 8, 0], sizes = [2, 16, 16], strides = [1, 1, 1]} : vector<2x26x16xf32> to vector<2x16x16xf32>
    %191 = arith.addf %189, %190 : vector<2x16x16xf32>
    %cst_38 = arith.constant 0.0360007733 : f32
    %192 = vector.broadcast %cst_38 : f32 to vector<2x16x16xf32>
    %193 = arith.mulf %192, %191 : vector<2x16x16xf32>
    %194 = arith.addf %188, %193 : vector<2x16x16xf32>
    %195 = vector.extract_strided_slice %173 {offsets = [0, 3, 0], sizes = [2, 16, 16], strides = [1, 1, 1]} : vector<2x26x16xf32> to vector<2x16x16xf32>
    %196 = vector.extract_strided_slice %173 {offsets = [0, 7, 0], sizes = [2, 16, 16], strides = [1, 1, 1]} : vector<2x26x16xf32> to vector<2x16x16xf32>
    %197 = arith.addf %195, %196 : vector<2x16x16xf32>
    %cst_39 = arith.constant 0.109360687 : f32
    %198 = vector.broadcast %cst_39 : f32 to vector<2x16x16xf32>
    %199 = arith.mulf %198, %197 : vector<2x16x16xf32>
    %200 = arith.addf %194, %199 : vector<2x16x16xf32>
    %201 = vector.extract_strided_slice %173 {offsets = [0, 4, 0], sizes = [2, 16, 16], strides = [1, 1, 1]} : vector<2x26x16xf32> to vector<2x16x16xf32>
    %202 = vector.extract_strided_slice %173 {offsets = [0, 6, 0], sizes = [2, 16, 16], strides = [1, 1, 1]} : vector<2x26x16xf32> to vector<2x16x16xf32>
    %203 = arith.addf %201, %202 : vector<2x16x16xf32>
    %cst_40 = arith.constant 0.213005543 : f32
    %204 = vector.broadcast %cst_40 : f32 to vector<2x16x16xf32>
    %205 = arith.mulf %204, %203 : vector<2x16x16xf32>
    %206 = arith.addf %200, %205 : vector<2x16x16xf32>
    %207 = arith.subf %206, %137 : vector<2x16x16xf32>
    %208 = arith.mulf %4, %4 : vector<2x26x26xf32>
    %209 = vector.extract_strided_slice %208 {offsets = [0, 0, 5], sizes = [2, 26, 16], strides = [1, 1, 1]} : vector<2x26x26xf32> to vector<2x26x16xf32>
    %cst_41 = arith.constant 0.266011715 : f32
    %210 = vector.broadcast %cst_41 : f32 to vector<2x26x16xf32>
    %211 = arith.mulf %210, %209 : vector<2x26x16xf32>
    %212 = vector.extract_strided_slice %208 {offsets = [0, 0, 0], sizes = [2, 26, 16], strides = [1, 1, 1]} : vector<2x26x26xf32> to vector<2x26x16xf32>
    %213 = vector.extract_strided_slice %208 {offsets = [0, 0, 10], sizes = [2, 26, 16], strides = [1, 1, 1]} : vector<2x26x26xf32> to vector<2x26x16xf32>
    %214 = arith.addf %212, %213 : vector<2x26x16xf32>
    %cst_42 = arith.constant 0.00102838012 : f32
    %215 = vector.broadcast %cst_42 : f32 to vector<2x26x16xf32>
    %216 = arith.mulf %215, %214 : vector<2x26x16xf32>
    %217 = arith.addf %211, %216 : vector<2x26x16xf32>
    %218 = vector.extract_strided_slice %208 {offsets = [0, 0, 1], sizes = [2, 26, 16], strides = [1, 1, 1]} : vector<2x26x26xf32> to vector<2x26x16xf32>
    %219 = vector.extract_strided_slice %208 {offsets = [0, 0, 9], sizes = [2, 26, 16], strides = [1, 1, 1]} : vector<2x26x26xf32> to vector<2x26x16xf32>
    %220 = arith.addf %218, %219 : vector<2x26x16xf32>
    %cst_43 = arith.constant 0.00759875821 : f32
    %221 = vector.broadcast %cst_43 : f32 to vector<2x26x16xf32>
    %222 = arith.mulf %221, %220 : vector<2x26x16xf32>
    %223 = arith.addf %217, %222 : vector<2x26x16xf32>
    %224 = vector.extract_strided_slice %208 {offsets = [0, 0, 2], sizes = [2, 26, 16], strides = [1, 1, 1]} : vector<2x26x26xf32> to vector<2x26x16xf32>
    %225 = vector.extract_strided_slice %208 {offsets = [0, 0, 8], sizes = [2, 26, 16], strides = [1, 1, 1]} : vector<2x26x26xf32> to vector<2x26x16xf32>
    %226 = arith.addf %224, %225 : vector<2x26x16xf32>
    %cst_44 = arith.constant 0.0360007733 : f32
    %227 = vector.broadcast %cst_44 : f32 to vector<2x26x16xf32>
    %228 = arith.mulf %227, %226 : vector<2x26x16xf32>
    %229 = arith.addf %223, %228 : vector<2x26x16xf32>
    %230 = vector.extract_strided_slice %208 {offsets = [0, 0, 3], sizes = [2, 26, 16], strides = [1, 1, 1]} : vector<2x26x26xf32> to vector<2x26x16xf32>
    %231 = vector.extract_strided_slice %208 {offsets = [0, 0, 7], sizes = [2, 26, 16], strides = [1, 1, 1]} : vector<2x26x26xf32> to vector<2x26x16xf32>
    %232 = arith.addf %230, %231 : vector<2x26x16xf32>
    %cst_45 = arith.constant 0.109360687 : f32
    %233 = vector.broadcast %cst_45 : f32 to vector<2x26x16xf32>
    %234 = arith.mulf %233, %232 : vector<2x26x16xf32>
    %235 = arith.addf %229, %234 : vector<2x26x16xf32>
    %236 = vector.extract_strided_slice %208 {offsets = [0, 0, 4], sizes = [2, 26, 16], strides = [1, 1, 1]} : vector<2x26x26xf32> to vector<2x26x16xf32>
    %237 = vector.extract_strided_slice %208 {offsets = [0, 0, 6], sizes = [2, 26, 16], strides = [1, 1, 1]} : vector<2x26x26xf32> to vector<2x26x16xf32>
    %238 = arith.addf %236, %237 : vector<2x26x16xf32>
    %cst_46 = arith.constant 0.213005543 : f32
    %239 = vector.broadcast %cst_46 : f32 to vector<2x26x16xf32>
    %240 = arith.mulf %239, %238 : vector<2x26x16xf32>
    %241 = arith.addf %235, %240 : vector<2x26x16xf32>
    %242 = vector.extract_strided_slice %241 {offsets = [0, 5, 0], sizes = [2, 16, 16], strides = [1, 1, 1]} : vector<2x26x16xf32> to vector<2x16x16xf32>
    %cst_47 = arith.constant 0.266011715 : f32
    %243 = vector.broadcast %cst_47 : f32 to vector<2x16x16xf32>
    %244 = arith.mulf %243, %242 : vector<2x16x16xf32>
    %245 = vector.extract_strided_slice %241 {offsets = [0, 0, 0], sizes = [2, 16, 16], strides = [1, 1, 1]} : vector<2x26x16xf32> to vector<2x16x16xf32>
    %246 = vector.extract_strided_slice %241 {offsets = [0, 10, 0], sizes = [2, 16, 16], strides = [1, 1, 1]} : vector<2x26x16xf32> to vector<2x16x16xf32>
    %247 = arith.addf %245, %246 : vector<2x16x16xf32>
    %cst_48 = arith.constant 0.00102838012 : f32
    %248 = vector.broadcast %cst_48 : f32 to vector<2x16x16xf32>
    %249 = arith.mulf %248, %247 : vector<2x16x16xf32>
    %250 = arith.addf %244, %249 : vector<2x16x16xf32>
    %251 = vector.extract_strided_slice %241 {offsets = [0, 1, 0], sizes = [2, 16, 16], strides = [1, 1, 1]} : vector<2x26x16xf32> to vector<2x16x16xf32>
    %252 = vector.extract_strided_slice %241 {offsets = [0, 9, 0], sizes = [2, 16, 16], strides = [1, 1, 1]} : vector<2x26x16xf32> to vector<2x16x16xf32>
    %253 = arith.addf %251, %252 : vector<2x16x16xf32>
    %cst_49 = arith.constant 0.00759875821 : f32
    %254 = vector.broadcast %cst_49 : f32 to vector<2x16x16xf32>
    %255 = arith.mulf %254, %253 : vector<2x16x16xf32>
    %256 = arith.addf %250, %255 : vector<2x16x16xf32>
    %257 = vector.extract_strided_slice %241 {offsets = [0, 2, 0], sizes = [2, 16, 16], strides = [1, 1, 1]} : vector<2x26x16xf32> to vector<2x16x16xf32>
    %258 = vector.extract_strided_slice %241 {offsets = [0, 8, 0], sizes = [2, 16, 16], strides = [1, 1, 1]} : vector<2x26x16xf32> to vector<2x16x16xf32>
    %259 = arith.addf %257, %258 : vector<2x16x16xf32>
    %cst_50 = arith.constant 0.0360007733 : f32
    %260 = vector.broadcast %cst_50 : f32 to vector<2x16x16xf32>
    %261 = arith.mulf %260, %259 : vector<2x16x16xf32>
    %262 = arith.addf %256, %261 : vector<2x16x16xf32>
    %263 = vector.extract_strided_slice %241 {offsets = [0, 3, 0], sizes = [2, 16, 16], strides = [1, 1, 1]} : vector<2x26x16xf32> to vector<2x16x16xf32>
    %264 = vector.extract_strided_slice %241 {offsets = [0, 7, 0], sizes = [2, 16, 16], strides = [1, 1, 1]} : vector<2x26x16xf32> to vector<2x16x16xf32>
    %265 = arith.addf %263, %264 : vector<2x16x16xf32>
    %cst_51 = arith.constant 0.109360687 : f32
    %266 = vector.broadcast %cst_51 : f32 to vector<2x16x16xf32>
    %267 = arith.mulf %266, %265 : vector<2x16x16xf32>
    %268 = arith.addf %262, %267 : vector<2x16x16xf32>
    %269 = vector.extract_strided_slice %241 {offsets = [0, 4, 0], sizes = [2, 16, 16], strides = [1, 1, 1]} : vector<2x26x16xf32> to vector<2x16x16xf32>
    %270 = vector.extract_strided_slice %241 {offsets = [0, 6, 0], sizes = [2, 16, 16], strides = [1, 1, 1]} : vector<2x26x16xf32> to vector<2x16x16xf32>
    %271 = arith.addf %269, %270 : vector<2x16x16xf32>
    %cst_52 = arith.constant 0.213005543 : f32
    %272 = vector.broadcast %cst_52 : f32 to vector<2x16x16xf32>
    %273 = arith.mulf %272, %271 : vector<2x16x16xf32>
    %274 = arith.addf %268, %273 : vector<2x16x16xf32>
    %275 = arith.subf %274, %138 : vector<2x16x16xf32>
    %276 = arith.mulf %3, %4 : vector<2x26x26xf32>
    %277 = vector.extract_strided_slice %276 {offsets = [0, 0, 5], sizes = [2, 26, 16], strides = [1, 1, 1]} : vector<2x26x26xf32> to vector<2x26x16xf32>
    %cst_53 = arith.constant 0.266011715 : f32
    %278 = vector.broadcast %cst_53 : f32 to vector<2x26x16xf32>
    %279 = arith.mulf %278, %277 : vector<2x26x16xf32>
    %280 = vector.extract_strided_slice %276 {offsets = [0, 0, 0], sizes = [2, 26, 16], strides = [1, 1, 1]} : vector<2x26x26xf32> to vector<2x26x16xf32>
    %281 = vector.extract_strided_slice %276 {offsets = [0, 0, 10], sizes = [2, 26, 16], strides = [1, 1, 1]} : vector<2x26x26xf32> to vector<2x26x16xf32>
    %282 = arith.addf %280, %281 : vector<2x26x16xf32>
    %cst_54 = arith.constant 0.00102838012 : f32
    %283 = vector.broadcast %cst_54 : f32 to vector<2x26x16xf32>
    %284 = arith.mulf %283, %282 : vector<2x26x16xf32>
    %285 = arith.addf %279, %284 : vector<2x26x16xf32>
    %286 = vector.extract_strided_slice %276 {offsets = [0, 0, 1], sizes = [2, 26, 16], strides = [1, 1, 1]} : vector<2x26x26xf32> to vector<2x26x16xf32>
    %287 = vector.extract_strided_slice %276 {offsets = [0, 0, 9], sizes = [2, 26, 16], strides = [1, 1, 1]} : vector<2x26x26xf32> to vector<2x26x16xf32>
    %288 = arith.addf %286, %287 : vector<2x26x16xf32>
    %cst_55 = arith.constant 0.00759875821 : f32
    %289 = vector.broadcast %cst_55 : f32 to vector<2x26x16xf32>
    %290 = arith.mulf %289, %288 : vector<2x26x16xf32>
    %291 = arith.addf %285, %290 : vector<2x26x16xf32>
    %292 = vector.extract_strided_slice %276 {offsets = [0, 0, 2], sizes = [2, 26, 16], strides = [1, 1, 1]} : vector<2x26x26xf32> to vector<2x26x16xf32>
    %293 = vector.extract_strided_slice %276 {offsets = [0, 0, 8], sizes = [2, 26, 16], strides = [1, 1, 1]} : vector<2x26x26xf32> to vector<2x26x16xf32>
    %294 = arith.addf %292, %293 : vector<2x26x16xf32>
    %cst_56 = arith.constant 0.0360007733 : f32
    %295 = vector.broadcast %cst_56 : f32 to vector<2x26x16xf32>
    %296 = arith.mulf %295, %294 : vector<2x26x16xf32>
    %297 = arith.addf %291, %296 : vector<2x26x16xf32>
    %298 = vector.extract_strided_slice %276 {offsets = [0, 0, 3], sizes = [2, 26, 16], strides = [1, 1, 1]} : vector<2x26x26xf32> to vector<2x26x16xf32>
    %299 = vector.extract_strided_slice %276 {offsets = [0, 0, 7], sizes = [2, 26, 16], strides = [1, 1, 1]} : vector<2x26x26xf32> to vector<2x26x16xf32>
    %300 = arith.addf %298, %299 : vector<2x26x16xf32>
    %cst_57 = arith.constant 0.109360687 : f32
    %301 = vector.broadcast %cst_57 : f32 to vector<2x26x16xf32>
    %302 = arith.mulf %301, %300 : vector<2x26x16xf32>
    %303 = arith.addf %297, %302 : vector<2x26x16xf32>
    %304 = vector.extract_strided_slice %276 {offsets = [0, 0, 4], sizes = [2, 26, 16], strides = [1, 1, 1]} : vector<2x26x26xf32> to vector<2x26x16xf32>
    %305 = vector.extract_strided_slice %276 {offsets = [0, 0, 6], sizes = [2, 26, 16], strides = [1, 1, 1]} : vector<2x26x26xf32> to vector<2x26x16xf32>
    %306 = arith.addf %304, %305 : vector<2x26x16xf32>
    %cst_58 = arith.constant 0.213005543 : f32
    %307 = vector.broadcast %cst_58 : f32 to vector<2x26x16xf32>
    %308 = arith.mulf %307, %306 : vector<2x26x16xf32>
    %309 = arith.addf %303, %308 : vector<2x26x16xf32>
    %310 = vector.extract_strided_slice %309 {offsets = [0, 5, 0], sizes = [2, 16, 16], strides = [1, 1, 1]} : vector<2x26x16xf32> to vector<2x16x16xf32>
    %cst_59 = arith.constant 0.266011715 : f32
    %311 = vector.broadcast %cst_59 : f32 to vector<2x16x16xf32>
    %312 = arith.mulf %311, %310 : vector<2x16x16xf32>
    %313 = vector.extract_strided_slice %309 {offsets = [0, 0, 0], sizes = [2, 16, 16], strides = [1, 1, 1]} : vector<2x26x16xf32> to vector<2x16x16xf32>
    %314 = vector.extract_strided_slice %309 {offsets = [0, 10, 0], sizes = [2, 16, 16], strides = [1, 1, 1]} : vector<2x26x16xf32> to vector<2x16x16xf32>
    %315 = arith.addf %313, %314 : vector<2x16x16xf32>
    %cst_60 = arith.constant 0.00102838012 : f32
    %316 = vector.broadcast %cst_60 : f32 to vector<2x16x16xf32>
    %317 = arith.mulf %316, %315 : vector<2x16x16xf32>
    %318 = arith.addf %312, %317 : vector<2x16x16xf32>
    %319 = vector.extract_strided_slice %309 {offsets = [0, 1, 0], sizes = [2, 16, 16], strides = [1, 1, 1]} : vector<2x26x16xf32> to vector<2x16x16xf32>
    %320 = vector.extract_strided_slice %309 {offsets = [0, 9, 0], sizes = [2, 16, 16], strides = [1, 1, 1]} : vector<2x26x16xf32> to vector<2x16x16xf32>
    %321 = arith.addf %319, %320 : vector<2x16x16xf32>
    %cst_61 = arith.constant 0.00759875821 : f32
    %322 = vector.broadcast %cst_61 : f32 to vector<2x16x16xf32>
    %323 = arith.mulf %322, %321 : vector<2x16x16xf32>
    %324 = arith.addf %318, %323 : vector<2x16x16xf32>
    %325 = vector.extract_strided_slice %309 {offsets = [0, 2, 0], sizes = [2, 16, 16], strides = [1, 1, 1]} : vector<2x26x16xf32> to vector<2x16x16xf32>
    %326 = vector.extract_strided_slice %309 {offsets = [0, 8, 0], sizes = [2, 16, 16], strides = [1, 1, 1]} : vector<2x26x16xf32> to vector<2x16x16xf32>
    %327 = arith.addf %325, %326 : vector<2x16x16xf32>
    %cst_62 = arith.constant 0.0360007733 : f32
    %328 = vector.broadcast %cst_62 : f32 to vector<2x16x16xf32>
    %329 = arith.mulf %328, %327 : vector<2x16x16xf32>
    %330 = arith.addf %324, %329 : vector<2x16x16xf32>
    %331 = vector.extract_strided_slice %309 {offsets = [0, 3, 0], sizes = [2, 16, 16], strides = [1, 1, 1]} : vector<2x26x16xf32> to vector<2x16x16xf32>
    %332 = vector.extract_strided_slice %309 {offsets = [0, 7, 0], sizes = [2, 16, 16], strides = [1, 1, 1]} : vector<2x26x16xf32> to vector<2x16x16xf32>
    %333 = arith.addf %331, %332 : vector<2x16x16xf32>
    %cst_63 = arith.constant 0.109360687 : f32
    %334 = vector.broadcast %cst_63 : f32 to vector<2x16x16xf32>
    %335 = arith.mulf %334, %333 : vector<2x16x16xf32>
    %336 = arith.addf %330, %335 : vector<2x16x16xf32>
    %337 = vector.extract_strided_slice %309 {offsets = [0, 4, 0], sizes = [2, 16, 16], strides = [1, 1, 1]} : vector<2x26x16xf32> to vector<2x16x16xf32>
    %338 = vector.extract_strided_slice %309 {offsets = [0, 6, 0], sizes = [2, 16, 16], strides = [1, 1, 1]} : vector<2x26x16xf32> to vector<2x16x16xf32>
    %339 = arith.addf %337, %338 : vector<2x16x16xf32>
    %cst_64 = arith.constant 0.213005543 : f32
    %340 = vector.broadcast %cst_64 : f32 to vector<2x16x16xf32>
    %341 = arith.mulf %340, %339 : vector<2x16x16xf32>
    %342 = arith.addf %336, %341 : vector<2x16x16xf32>
    %343 = arith.subf %342, %139 : vector<2x16x16xf32>
    %cst_65 = arith.constant 2.000000e+00 : f32
    %344 = vector.broadcast %cst_65 : f32 to vector<2x16x16xf32>
    %345 = arith.mulf %344, %139 : vector<2x16x16xf32>
    %cst_66 = arith.constant 9.99999974E-5 : f32
    %346 = vector.broadcast %cst_66 : f32 to vector<2x16x16xf32>
    %347 = arith.addf %345, %346 : vector<2x16x16xf32>
    %cst_67 = arith.constant 2.000000e+00 : f32
    %348 = vector.broadcast %cst_67 : f32 to vector<2x16x16xf32>
    %349 = arith.mulf %348, %343 : vector<2x16x16xf32>
    %cst_68 = arith.constant 8.99999984E-4 : f32
    %350 = vector.broadcast %cst_68 : f32 to vector<2x16x16xf32>
    %351 = arith.addf %349, %350 : vector<2x16x16xf32>
    %352 = arith.mulf %347, %351 : vector<2x16x16xf32>
    %353 = arith.addf %137, %138 : vector<2x16x16xf32>
    %cst_69 = arith.constant 9.99999974E-5 : f32
    %354 = vector.broadcast %cst_69 : f32 to vector<2x16x16xf32>
    %355 = arith.addf %353, %354 : vector<2x16x16xf32>
    %356 = arith.addf %207, %275 : vector<2x16x16xf32>
    %cst_70 = arith.constant 8.99999984E-4 : f32
    %357 = vector.broadcast %cst_70 : f32 to vector<2x16x16xf32>
    %358 = arith.addf %356, %357 : vector<2x16x16xf32>
    %359 = arith.mulf %355, %358 : vector<2x16x16xf32>
    %360 = arith.divf %352, %359 : vector<2x16x16xf32>
    %c0_71 = arith.constant 0 : index
    %361 = memref.load %arg4[%c0_71] : memref<1xf32, #tpu.memory_space<smem>>
    %362 = vector.shape_cast %360 : vector<2x16x16xf32> to vector<1x2x16x16xf32>
    %cst_72 = arith.constant dense<0.000000e+00> : vector<1xf32>
    %363 = vector.multi_reduction <add>, %362, %cst_72 [1, 2, 3] : vector<1x2x16x16xf32> to vector<1xf32>
    %364 = vector.shape_cast %363 : vector<1xf32> to vector<1x1x1x1xf32>
    %365 = vector.extract %364[0, 0, 0, 0] : f32 from vector<1x1x1x1xf32>
    %366 = arith.addf %361, %365 : f32
    %c0_73 = arith.constant 0 : index
    %367 = memref.load %arg4[%c0_73] : memref<1xf32, #tpu.memory_space<smem>>
    memref.store %366, %arg4[%c0_73] : memref<1xf32, #tpu.memory_space<smem>>
    %c0_i32_74 = arith.constant 0 : i32
    %368 = arith.cmpi eq, %arg0, %c0_i32_74 : i32
    %369 = arith.extui %368 : i1 to i32
    %c0_i32_75 = arith.constant 0 : i32
    %370 = arith.cmpi ne, %369, %c0_i32_75 : i32
    scf.if %370 {
      %c0_76 = arith.constant 0 : index
      %371 = memref.load %arg4[%c0_76] : memref<1xf32, #tpu.memory_space<smem>>
      %cst_77 = arith.constant 0.001953125 : f32
      %372 = arith.mulf %371, %cst_77 : f32
      %cst_78 = arith.constant 1.000000e+00 : f32
      %373 = arith.subf %cst_78, %372 : f32
      %c0_79 = arith.constant 0 : index
      %c0_80 = arith.constant 0 : index
      %374 = memref.load %arg3[%c0_79, %c0_80] : memref<1x1xf32, #tpu.memory_space<smem>>
      memref.store %373, %arg3[%c0_79, %c0_80] : memref<1x1xf32, #tpu.memory_space<smem>>
    } else {
    }
    return
  }
  func.func @transform_0(%arg0: i32) -> (i32, i32, i32) {
    %c0_i32 = arith.constant 0 : i32
    %c0_i32_0 = arith.constant 0 : i32
    %c0_i32_1 = arith.constant 0 : i32
    return %arg0, %c0_i32, %c0_i32_0 : i32, i32, i32
  }
  func.func @transform_1(%arg0: i32) -> (i32, i32, i32) {
    %c0_i32 = arith.constant 0 : i32
    %c0_i32_0 = arith.constant 0 : i32
    %c0_i32_1 = arith.constant 0 : i32
    return %arg0, %c0_i32, %c0_i32_0 : i32, i32, i32
  }
  func.func @transform_2(%arg0: i32) -> (i32, i32) {
    %c0_i32 = arith.constant 0 : i32
    %c0_i32_0 = arith.constant 0 : i32
    %c0_i32_1 = arith.constant 0 : i32
    return %c0_i32, %c0_i32_0 : i32, i32
  }
}

</mosaic_0001>

<llo_original>
// kernel: ssim_loss.1
$region0: #{ssim_loss.1}
  #allocation0 [shape = 'u32[]', space=smem, size = 0x4, offset = 0x4, fixed_abs, tag = 'smem constant byte address 0x4 - core index']
  #allocation1 [shape = 'u32[144,128]{1,0:T(1,128)}', space=vmem, size = 0x12000, scoped, tag = 'internal scratch']
  #allocation2 [shape = 'f32[1]{0:T(128)}', space=smem, size = 0x200, scoped, tag = 'scratch operand']
  %s0 = inlined_call_operand.vmem [shape: f32[2,26,26], index: 0, kind: input, shape index: {}]
  %s1 = inlined_call_operand.vmem [shape: f32[2,26,26], index: 1, kind: input, shape index: {}]
  %s2 = inlined_call_operand.hbm [shape: f32[1,1], index: 2, kind: output, shape index: {}]
  %s3 = sld [smem:[#allocation0]]
  $region26: #{ssim_loss.1} parent=0
    _
  %s5 = ssub.s32 1, %s3
  %s6 = scalar_select 0, %s5, %s3
  $region1: #{ssim_loss.1} parent=0
    #allocation3 [shape = 'u8[512]{0}', space=smem, size = 0x200, scoped, tag = 'output window, operand 0, single buffered']
    #allocation4 [shape = 's32[1]{0}', space=sflag, size = 0x4, scoped, tag = 'scoped memory for ssim_loss.1']
    %7 = vsyncpa [#allocation4], 0
    // Predicated region
    $region2: #{ssim_loss.1} parent=1 // pred_check
      _
    $region3: #{ssim_loss.1} parent=1 // pred_check_branch
      %9 = sbr.rel (0) target = $region5
    $region4: #{ssim_loss.1} parent=1 // pred_region
      _
    $region5: #{ssim_loss.1} parent=1 // pred_fallthru
      _
    // Predicated region
    $region6: #{ssim_loss.1} parent=1 // pred_check
      _
    $region7: #{ssim_loss.1} parent=1 // pred_check_branch
      %11 = sbr.rel (0) target = $region9
    $region8: #{ssim_loss.1} parent=1 // pred_region
      _
    $region9: #{ssim_loss.1} parent=1 // pred_fallthru
      _
    %p12 = scmp.eq.s32.totalorder 0, 0
    // Predicated region
    $region10: #{ssim_loss.1} parent=1 // pred_check
      %p13 = pneg %p12
    $region11: #{ssim_loss.1} parent=1 // pred_check_branch
      %15 = sbr.rel (%p13) target = $region13
    $region12: #{ssim_loss.1} parent=1 // pred_region
      %s16 = scalar_lea.smem [#allocation2], 0
      %17 = sst [smem:[%s16]] 0.0
    $region13: #{ssim_loss.1} parent=1 // pred_fallthru
      _
    %v18 = vld [vmem:[%s0] sm:$0xff]
    %v19 = vld [vmem:[%s0 + $0x8] sm:$0xff]
    %v20 = vld [vmem:[%s0 + $0x10] sm:$0xff]
    %v21 = vld [vmem:[%s0 + $0x18] sm:$0x3]
    %v22 = vld [vmem:[%s0 + $0x20] sm:$0xff]
    %v23 = vld [vmem:[%s0 + $0x28] sm:$0xff]
    %v24 = vld [vmem:[%s0 + $0x30] sm:$0xff]
    %v25 = vld [vmem:[%s0 + $0x38] sm:$0x3]
    %v26 = vld [vmem:[%s1] sm:$0xff]
    %v27 = vld [vmem:[%s1 + $0x8] sm:$0xff]
    %v28 = vld [vmem:[%s1 + $0x10] sm:$0xff]
    %v29 = vld [vmem:[%s1 + $0x18] sm:$0x3]
    %v30 = vld [vmem:[%s1 + $0x20] sm:$0xff]
    %v31 = vld [vmem:[%s1 + $0x28] sm:$0xff]
    %v32 = vld [vmem:[%s1 + $0x30] sm:$0xff]
    %v33 = vld [vmem:[%s1 + $0x38] sm:$0x3]
    %v34 = vmul.f32 %v18, 0.26601171
    %v35 = vmul.f32 %v19, 0.26601171
    %v36 = vmul.f32 %v20, 0.26601171
    %v37 = vmul.f32 %v21, 0.26601171
    %v38 = vmul.f32 %v22, 0.26601171
    %v39 = vmul.f32 %v23, 0.26601171
    %v40 = vmul.f32 %v24, 0.26601171
    %v41 = vmul.f32 %v25, 0.26601171
    %50 = vrot.lane.b32.xlu0 %v18, 118
    %v51 = vpop.permute.xlu0 %50
    %52 = vrot.lane.b32.xlu0 %v19, 118
    %v53 = vpop.permute.xlu0 %52
    %54 = vrot.lane.b32.xlu0 %v20, 118
    %v55 = vpop.permute.xlu0 %54
    %56 = vrot.lane.b32.xlu0 %v21, 118
    %v57 = vpop.permute.xlu0 %56
    %58 = vrot.lane.b32.xlu0 %v22, 118
    %v59 = vpop.permute.xlu0 %58
    %60 = vrot.lane.b32.xlu0 %v23, 118
    %v61 = vpop.permute.xlu0 %60
    %62 = vrot.lane.b32.xlu0 %v24, 118
    %v63 = vpop.permute.xlu0 %62
    %64 = vrot.lane.b32.xlu0 %v25, 118
    %v65 = vpop.permute.xlu0 %64
    %v74 = vadd.f32 %v18, %v51
    %v75 = vadd.f32 %v19, %v53
    %v76 = vadd.f32 %v20, %v55
    %v77 = vadd.f32 %v21, %v57
    %v78 = vadd.f32 %v22, %v59
    %v79 = vadd.f32 %v23, %v61
    %v80 = vadd.f32 %v24, %v63
    %v81 = vadd.f32 %v25, %v65
    %v82 = vmul.f32 %v74, 0.0010283801
    %v83 = vmul.f32 %v75, 0.0010283801
    %v84 = vmul.f32 %v76, 0.0010283801
    %v85 = vmul.f32 %v77, 0.0010283801
    %v86 = vmul.f32 %v78, 0.0010283801
    %v87 = vmul.f32 %v79, 0.0010283801
    %v88 = vmul.f32 %v80, 0.0010283801
    %v89 = vmul.f32 %v81, 0.0010283801
    %98 = vrot.lane.b32.xlu0 %v82, 5
    %v99 = vpop.permute.xlu0 %98
    %100 = vrot.lane.b32.xlu0 %v83, 5
    %v101 = vpop.permute.xlu0 %100
    %102 = vrot.lane.b32.xlu0 %v84, 5
    %v103 = vpop.permute.xlu0 %102
    %104 = vrot.lane.b32.xlu0 %v85, 5
    %v105 = vpop.permute.xlu0 %104
    %106 = vrot.lane.b32.xlu0 %v86, 5
    %v107 = vpop.permute.xlu0 %106
    %108 = vrot.lane.b32.xlu0 %v87, 5
    %v109 = vpop.permute.xlu0 %108
    %110 = vrot.lane.b32.xlu0 %v88, 5
    %v111 = vpop.permute.xlu0 %110
    %112 = vrot.lane.b32.xlu0 %v89, 5
    %v113 = vpop.permute.xlu0 %112
    %v122 = vadd.f32 %v34, %v99
    %v123 = vadd.f32 %v35, %v101
    %v124 = vadd.f32 %v36, %v103
    %v125 = vadd.f32 %v37, %v105
    %v126 = vadd.f32 %v38, %v107
    %v127 = vadd.f32 %v39, %v109
    %v128 = vadd.f32 %v40, %v111
    %v129 = vadd.f32 %v41, %v113
    %130 = vrot.lane.b32.xlu0 %v18, 120
    %v131 = vpop.permute.xlu0 %130
    %132 = vrot.lane.b32.xlu0 %v19, 120
    %v133 = vpop.permute.xlu0 %132
    %134 = vrot.lane.b32.xlu0 %v20, 120
    %v135 = vpop.permute.xlu0 %134
    %136 = vrot.lane.b32.xlu0 %v21, 120
    %v137 = vpop.permute.xlu0 %136
    %138 = vrot.lane.b32.xlu0 %v22, 120
    %v139 = vpop.permute.xlu0 %138
    %140 = vrot.lane.b32.xlu0 %v23, 120
    %v141 = vpop.permute.xlu0 %140
    %142 = vrot.lane.b32.xlu0 %v24, 120
    %v143 = vpop.permute.xlu0 %142
    %144 = vrot.lane.b32.xlu0 %v25, 120
    %v145 = vpop.permute.xlu0 %144
    %v154 = vadd.f32 %v18, %v131
    %v155 = vadd.f32 %v19, %v133
    %v156 = vadd.f32 %v20, %v135
    %v157 = vadd.f32 %v21, %v137
    %v158 = vadd.f32 %v22, %v139
    %v159 = vadd.f32 %v23, %v141
    %v160 = vadd.f32 %v24, %v143
    %v161 = vadd.f32 %v25, %v145
    %v162 = vmul.f32 %v154, 0.007598758
    %v163 = vmul.f32 %v155, 0.007598758
    %v164 = vmul.f32 %v156, 0.007598758
    %v165 = vmul.f32 %v157, 0.007598758
    %v166 = vmul.f32 %v158, 0.007598758
    %v167 = vmul.f32 %v159, 0.007598758
    %v168 = vmul.f32 %v160, 0.007598758
    %v169 = vmul.f32 %v161, 0.007598758
    %178 = vrot.lane.b32.xlu0 %v162, 4
    %v179 = vpop.permute.xlu0 %178
    %180 = vrot.lane.b32.xlu0 %v163, 4
    %v181 = vpop.permute.xlu0 %180
    %182 = vrot.lane.b32.xlu0 %v164, 4
    %v183 = vpop.permute.xlu0 %182
    %184 = vrot.lane.b32.xlu0 %v165, 4
    %v185 = vpop.permute.xlu0 %184
    %186 = vrot.lane.b32.xlu0 %v166, 4
    %v187 = vpop.permute.xlu0 %186
    %188 = vrot.lane.b32.xlu0 %v167, 4
    %v189 = vpop.permute.xlu0 %188
    %190 = vrot.lane.b32.xlu0 %v168, 4
    %v191 = vpop.permute.xlu0 %190
    %192 = vrot.lane.b32.xlu0 %v169, 4
    %v193 = vpop.permute.xlu0 %192
    %v202 = vadd.f32 %v122, %v179
    %v203 = vadd.f32 %v123, %v181
    %v204 = vadd.f32 %v124, %v183
    %v205 = vadd.f32 %v125, %v185
    %v206 = vadd.f32 %v126, %v187
    %v207 = vadd.f32 %v127, %v189
    %v208 = vadd.f32 %v128, %v191
    %v209 = vadd.f32 %v129, %v193
    %210 = vrot.lane.b32.xlu0 %v18, 122
    %v211 = vpop.permute.xlu0 %210
    %212 = vrot.lane.b32.xlu0 %v19, 122
    %v213 = vpop.permute.xlu0 %212
    %214 = vrot.lane.b32.xlu0 %v20, 122
    %v215 = vpop.permute.xlu0 %214
    %216 = vrot.lane.b32.xlu0 %v21, 122
    %v217 = vpop.permute.xlu0 %216
    %218 = vrot.lane.b32.xlu0 %v22, 122
    %v219 = vpop.permute.xlu0 %218
    %220 = vrot.lane.b32.xlu0 %v23, 122
    %v221 = vpop.permute.xlu0 %220
    %222 = vrot.lane.b32.xlu0 %v24, 122
    %v223 = vpop.permute.xlu0 %222
    %224 = vrot.lane.b32.xlu0 %v25, 122
    %v225 = vpop.permute.xlu0 %224
    %v234 = vadd.f32 %v18, %v211
    %v235 = vadd.f32 %v19, %v213
    %v236 = vadd.f32 %v20, %v215
    %v237 = vadd.f32 %v21, %v217
    %v238 = vadd.f32 %v22, %v219
    %v239 = vadd.f32 %v23, %v221
    %v240 = vadd.f32 %v24, %v223
    %v241 = vadd.f32 %v25, %v225
    %v242 = vmul.f32 %v234, 0.036000773
    %v243 = vmul.f32 %v235, 0.036000773
    %v244 = vmul.f32 %v236, 0.036000773
    %v245 = vmul.f32 %v237, 0.036000773
    %v246 = vmul.f32 %v238, 0.036000773
    %v247 = vmul.f32 %v239, 0.036000773
    %v248 = vmul.f32 %v240, 0.036000773
    %v249 = vmul.f32 %v241, 0.036000773
    %258 = vrot.lane.b32.xlu0 %v242, 3
    %v259 = vpop.permute.xlu0 %258
    %260 = vrot.lane.b32.xlu0 %v243, 3
    %v261 = vpop.permute.xlu0 %260
    %262 = vrot.lane.b32.xlu0 %v244, 3
    %v263 = vpop.permute.xlu0 %262
    %264 = vrot.lane.b32.xlu0 %v245, 3
    %v265 = vpop.permute.xlu0 %264
    %266 = vrot.lane.b32.xlu0 %v246, 3
    %v267 = vpop.permute.xlu0 %266
    %268 = vrot.lane.b32.xlu0 %v247, 3
    %v269 = vpop.permute.xlu0 %268
    %270 = vrot.lane.b32.xlu0 %v248, 3
    %v271 = vpop.permute.xlu0 %270
    %272 = vrot.lane.b32.xlu0 %v249, 3
    %v273 = vpop.permute.xlu0 %272
    %v282 = vadd.f32 %v202, %v259
    %v283 = vadd.f32 %v203, %v261
    %v284 = vadd.f32 %v204, %v263
    %v285 = vadd.f32 %v205, %v265
    %v286 = vadd.f32 %v206, %v267
    %v287 = vadd.f32 %v207, %v269
    %v288 = vadd.f32 %v208, %v271
    %v289 = vadd.f32 %v209, %v273
    %290 = vrot.lane.b32.xlu0 %v18, 124
    %v291 = vpop.permute.xlu0 %290
    %292 = vrot.lane.b32.xlu0 %v19, 124
    %v293 = vpop.permute.xlu0 %292
    %294 = vrot.lane.b32.xlu0 %v20, 124
    %v295 = vpop.permute.xlu0 %294
    %296 = vrot.lane.b32.xlu0 %v21, 124
    %v297 = vpop.permute.xlu0 %296
    %298 = vrot.lane.b32.xlu0 %v22, 124
    %v299 = vpop.permute.xlu0 %298
    %300 = vrot.lane.b32.xlu0 %v23, 124
    %v301 = vpop.permute.xlu0 %300
    %302 = vrot.lane.b32.xlu0 %v24, 124
    %v303 = vpop.permute.xlu0 %302
    %304 = vrot.lane.b32.xlu0 %v25, 124
    %v305 = vpop.permute.xlu0 %304
    %v314 = vadd.f32 %v18, %v291
    %v315 = vadd.f32 %v19, %v293
    %v316 = vadd.f32 %v20, %v295
    %v317 = vadd.f32 %v21, %v297
    %v318 = vadd.f32 %v22, %v299
    %v319 = vadd.f32 %v23, %v301
    %v320 = vadd.f32 %v24, %v303
    %v321 = vadd.f32 %v25, %v305
    %v322 = vmul.f32 %v314, 0.10936069
    %v323 = vmul.f32 %v315, 0.10936069
    %v324 = vmul.f32 %v316, 0.10936069
    %v325 = vmul.f32 %v317, 0.10936069
    %v326 = vmul.f32 %v318, 0.10936069
    %v327 = vmul.f32 %v319, 0.10936069
    %v328 = vmul.f32 %v320, 0.10936069
    %v329 = vmul.f32 %v321, 0.10936069
    %338 = vrot.lane.b32.xlu0 %v322, 2
    %v339 = vpop.permute.xlu0 %338
    %340 = vrot.lane.b32.xlu0 %v323, 2
    %v341 = vpop.permute.xlu0 %340
    %342 = vrot.lane.b32.xlu0 %v324, 2
    %v343 = vpop.permute.xlu0 %342
    %344 = vrot.lane.b32.xlu0 %v325, 2
    %v345 = vpop.permute.xlu0 %344
    %346 = vrot.lane.b32.xlu0 %v326, 2
    %v347 = vpop.permute.xlu0 %346
    %348 = vrot.lane.b32.xlu0 %v327, 2
    %v349 = vpop.permute.xlu0 %348
    %350 = vrot.lane.b32.xlu0 %v328, 2
    %v351 = vpop.permute.xlu0 %350
    %352 = vrot.lane.b32.xlu0 %v329, 2
    %v353 = vpop.permute.xlu0 %352
    %v362 = vadd.f32 %v282, %v339
    %v363 = vadd.f32 %v283, %v341
    %v364 = vadd.f32 %v284, %v343
    %v365 = vadd.f32 %v285, %v345
    %v366 = vadd.f32 %v286, %v347
    %v367 = vadd.f32 %v287, %v349
    %v368 = vadd.f32 %v288, %v351
    %v369 = vadd.f32 %v289, %v353
    %370 = vrot.lane.b32.xlu0 %v18, 126
    %v371 = vpop.permute.xlu0 %370
    %372 = vrot.lane.b32.xlu0 %v19, 126
    %v373 = vpop.permute.xlu0 %372
    %374 = vrot.lane.b32.xlu0 %v20, 126
    %v375 = vpop.permute.xlu0 %374
    %376 = vrot.lane.b32.xlu0 %v21, 126
    %v377 = vpop.permute.xlu0 %376
    %378 = vrot.lane.b32.xlu0 %v22, 126
    %v379 = vpop.permute.xlu0 %378
    %380 = vrot.lane.b32.xlu0 %v23, 126
    %v381 = vpop.permute.xlu0 %380
    %382 = vrot.lane.b32.xlu0 %v24, 126
    %v383 = vpop.permute.xlu0 %382
    %384 = vrot.lane.b32.xlu0 %v25, 126
    %v385 = vpop.permute.xlu0 %384
    %v394 = vadd.f32 %v18, %v371
    %v395 = vadd.f32 %v19, %v373
    %v396 = vadd.f32 %v20, %v375
    %v397 = vadd.f32 %v21, %v377
    %v398 = vadd.f32 %v22, %v379
    %v399 = vadd.f32 %v23, %v381
    %v400 = vadd.f32 %v24, %v383
    %v401 = vadd.f32 %v25, %v385
    %v402 = vmul.f32 %v394, 0.21300554
    %v403 = vmul.f32 %v395, 0.21300554
    %v404 = vmul.f32 %v396, 0.21300554
    %v405 = vmul.f32 %v397, 0.21300554
    %v406 = vmul.f32 %v398, 0.21300554
    %v407 = vmul.f32 %v399, 0.21300554
    %v408 = vmul.f32 %v400, 0.21300554
    %v409 = vmul.f32 %v401, 0.21300554
    %418 = vrot.lane.b32.xlu0 %v402, 1
    %v419 = vpop.permute.xlu0 %418
    %420 = vrot.lane.b32.xlu0 %v403, 1
    %v421 = vpop.permute.xlu0 %420
    %422 = vrot.lane.b32.xlu0 %v404, 1
    %v423 = vpop.permute.xlu0 %422
    %424 = vrot.lane.b32.xlu0 %v405, 1
    %v425 = vpop.permute.xlu0 %424
    %426 = vrot.lane.b32.xlu0 %v406, 1
    %v427 = vpop.permute.xlu0 %426
    %428 = vrot.lane.b32.xlu0 %v407, 1
    %v429 = vpop.permute.xlu0 %428
    %430 = vrot.lane.b32.xlu0 %v408, 1
    %v431 = vpop.permute.xlu0 %430
    %432 = vrot.lane.b32.xlu0 %v409, 1
    %v433 = vpop.permute.xlu0 %432
    %v442 = vadd.f32 %v362, %v419
    %v443 = vadd.f32 %v363, %v421
    %v444 = vadd.f32 %v364, %v423
    %v445 = vadd.f32 %v365, %v425
    %v446 = vadd.f32 %v366, %v427
    %v447 = vadd.f32 %v367, %v429
    %v448 = vadd.f32 %v368, %v431
    %v449 = vadd.f32 %v369, %v433
    %v450 = vmul.f32 %v442, 0.26601171
    %v451 = vmul.f32 %v443, 0.26601171
    %v452 = vmul.f32 %v444, 0.26601171
    %v453 = vmul.f32 %v446, 0.26601171
    %v454 = vmul.f32 %v447, 0.26601171
    %v455 = vmul.f32 %v448, 0.26601171
    %vm462 = vcmask 1045504
    %v463 = vrot.slane %v443, 2
    %v464 = vrot.slane %v444, 2
    %v465 = vsel %vm462, %v463, %v464
    %v466 = vrot.slane %v445, 2
    %v467 = vsel %vm462, %v464, %v466
    %v468 = vrot.slane %v447, 2
    %v469 = vrot.slane %v448, 2
    %v470 = vsel %vm462, %v468, %v469
    %v471 = vrot.slane %v449, 2
    %v472 = vsel %vm462, %v469, %v471
    %v477 = vadd.f32 %v442, %v465
    %v478 = vadd.f32 %v443, %v467
    %v479 = vadd.f32 %v446, %v470
    %v480 = vadd.f32 %v447, %v472
    %v481 = vmul.f32 %v477, 0.0010283801
    %v482 = vmul.f32 %v478, 0.0010283801
    %v483 = vmul.f32 %v479, 0.0010283801
    %v484 = vmul.f32 %v480, 0.0010283801
    %vm489 = vcmask 1044480
    %v490 = vrot.slane %v481, 3
    %v491 = vrot.slane %v482, 3
    %v492 = vsel %vm489, %v490, %v491
    %v493 = vrot.slane %v483, 3
    %v494 = vrot.slane %v484, 3
    %v495 = vsel %vm489, %v493, %v494
    %v502 = vadd.f32 %v450, %v490
    %v503 = vadd.f32 %v451, %v492
    %v504 = vadd.f32 %v452, %v491
    %v505 = vadd.f32 %v453, %v493
    %v506 = vadd.f32 %v454, %v495
    %v507 = vadd.f32 %v455, %v494
    %v508 = vadd.f32 %v442, %v443
    %v509 = vadd.f32 %v443, %v444
    %v510 = vadd.f32 %v444, %v445
    %v511 = vadd.f32 %v446, %v447
    %v512 = vadd.f32 %v447, %v448
    %v513 = vadd.f32 %v448, %v449
    %v514 = vmul.f32 %v508, 0.007598758
    %v515 = vmul.f32 %v509, 0.007598758
    %v516 = vmul.f32 %v510, 0.007598758
    %v517 = vmul.f32 %v511, 0.007598758
    %v518 = vmul.f32 %v512, 0.007598758
    %v519 = vmul.f32 %v513, 0.007598758
    %vm526 = vcmask 1043456
    %v527 = vrot.slane %v514, 4
    %v528 = vrot.slane %v515, 4
    %v529 = vsel %vm526, %v527, %v528
    %v530 = vrot.slane %v516, 4
    %v531 = vsel %vm526, %v528, %v530
    %v532 = vrot.slane %v517, 4
    %v533 = vrot.slane %v518, 4
    %v534 = vsel %vm526, %v532, %v533
    %v535 = vrot.slane %v519, 4
    %v536 = vsel %vm526, %v533, %v535
    %v543 = vadd.f32 %v502, %v527
    %v544 = vadd.f32 %v503, %v529
    %v545 = vadd.f32 %v504, %v531
    %v546 = vadd.f32 %v505, %v532
    %v547 = vadd.f32 %v506, %v534
    %v548 = vadd.f32 %v507, %v536
    %vm549 = vcmask 1041408
    %v550 = vrot.slane %v443, 6
    %v551 = vrot.slane %v444, 6
    %v552 = vsel %vm549, %v550, %v551
    %v553 = vrot.slane %v447, 6
    %v554 = vrot.slane %v448, 6
    %v555 = vsel %vm549, %v553, %v554
    %v562 = vadd.f32 %v442, %v550
    %v563 = vadd.f32 %v443, %v552
    %v564 = vadd.f32 %v444, %v551
    %v565 = vadd.f32 %v446, %v553
    %v566 = vadd.f32 %v447, %v555
    %v567 = vadd.f32 %v448, %v554
    %v568 = vmul.f32 %v562, 0.036000773
    %v569 = vmul.f32 %v563, 0.036000773
    %v570 = vmul.f32 %v564, 0.036000773
    %v571 = vmul.f32 %v565, 0.036000773
    %v572 = vmul.f32 %v566, 0.036000773
    %v573 = vmul.f32 %v567, 0.036000773
    %vm580 = vcmask 1042432
    %v581 = vrot.slane %v568, 5
    %v582 = vrot.slane %v569, 5
    %v583 = vsel %vm580, %v581, %v582
    %v584 = vrot.slane %v570, 5
    %v585 = vsel %vm580, %v582, %v584
    %v586 = vrot.slane %v571, 5
    %v587 = vrot.slane %v572, 5
    %v588 = vsel %vm580, %v586, %v587
    %v589 = vrot.slane %v573, 5
    %v590 = vsel %vm580, %v587, %v589
    %v597 = vadd.f32 %v543, %v581
    %v598 = vadd.f32 %v544, %v583
    %v599 = vadd.f32 %v545, %v585
    %v600 = vadd.f32 %v546, %v586
    %v601 = vadd.f32 %v547, %v588
    %v602 = vadd.f32 %v548, %v590
    %v605 = vrot.slane %v442, 4
    %v606 = vrot.slane %v443, 4
    %v607 = vsel %vm526, %v605, %v606
    %v608 = vrot.slane %v444, 4
    %v609 = vsel %vm526, %v606, %v608
    %v610 = vrot.slane %v446, 4
    %v611 = vrot.slane %v447, 4
    %v612 = vsel %vm526, %v610, %v611
    %v613 = vrot.slane %v448, 4
    %v614 = vsel %vm526, %v611, %v613
    %v621 = vadd.f32 %v442, %v607
    %v622 = vadd.f32 %v443, %v609
    %v623 = vadd.f32 %v444, %v608
    %v624 = vadd.f32 %v446, %v612
    %v625 = vadd.f32 %v447, %v614
    %v626 = vadd.f32 %v448, %v613
    %v627 = vmul.f32 %v621, 0.10936069
    %v628 = vmul.f32 %v622, 0.10936069
    %v629 = vmul.f32 %v623, 0.10936069
    %v630 = vmul.f32 %v624, 0.10936069
    %v631 = vmul.f32 %v625, 0.10936069
    %v632 = vmul.f32 %v626, 0.10936069
    %v639 = vrot.slane %v627, 6
    %v640 = vrot.slane %v628, 6
    %v641 = vsel %vm549, %v639, %v640
    %v642 = vrot.slane %v629, 6
    %v643 = vsel %vm549, %v640, %v642
    %v644 = vrot.slane %v630, 6
    %v645 = vrot.slane %v631, 6
    %v646 = vsel %vm549, %v644, %v645
    %v647 = vrot.slane %v632, 6
    %v648 = vsel %vm549, %v645, %v647
    %v655 = vadd.f32 %v597, %v639
    %v656 = vadd.f32 %v598, %v641
    %v657 = vadd.f32 %v599, %v643
    %v658 = vadd.f32 %v600, %v644
    %v659 = vadd.f32 %v601, %v646
    %v660 = vadd.f32 %v602, %v648
    %v661 = vrot.slane %v442, 2
    %v662 = vsel %vm462, %v661, %v463
    %v663 = vrot.slane %v446, 2
    %v664 = vsel %vm462, %v663, %v468
    %v669 = vadd.f32 %v442, %v662
    %v670 = vadd.f32 %v443, %v465
    %v671 = vadd.f32 %v444, %v464
    %v672 = vadd.f32 %v446, %v664
    %v673 = vadd.f32 %v447, %v470
    %v674 = vadd.f32 %v448, %v469
    %v675 = vmul.f32 %v669, 0.21300554
    %v676 = vmul.f32 %v670, 0.21300554
    %v677 = vmul.f32 %v671, 0.21300554
    %v678 = vmul.f32 %v672, 0.21300554
    %v679 = vmul.f32 %v673, 0.21300554
    %v680 = vmul.f32 %v674, 0.21300554
    %vm687 = vcmask 1040384
    %v688 = vrot.slane %v675, 7
    %v689 = vrot.slane %v676, 7
    %v690 = vsel %vm687, %v688, %v689
    %v691 = vrot.slane %v677, 7
    %v692 = vsel %vm687, %v689, %v691
    %v693 = vrot.slane %v678, 7
    %v694 = vrot.slane %v679, 7
    %v695 = vsel %vm687, %v693, %v694
    %v696 = vrot.slane %v680, 7
    %v697 = vsel %vm687, %v694, %v696
    %v704 = vadd.f32 %v655, %v688
    %v705 = vadd.f32 %v656, %v690
    %v706 = vadd.f32 %v657, %v692
    %v707 = vadd.f32 %v658, %v693
    %v708 = vadd.f32 %v659, %v695
    %v709 = vadd.f32 %v660, %v697
    %v710 = vmul.f32 %v26, 0.26601171
    %v711 = vmul.f32 %v27, 0.26601171
    %v712 = vmul.f32 %v28, 0.26601171
    %v713 = vmul.f32 %v29, 0.26601171
    %v714 = vmul.f32 %v30, 0.26601171
    %v715 = vmul.f32 %v31, 0.26601171
    %v716 = vmul.f32 %v32, 0.26601171
    %v717 = vmul.f32 %v33, 0.26601171
    %726 = vrot.lane.b32.xlu0 %v26, 118
    %v727 = vpop.permute.xlu0 %726
    %728 = vrot.lane.b32.xlu0 %v27, 118
    %v729 = vpop.permute.xlu0 %728
    %730 = vrot.lane.b32.xlu0 %v28, 118
    %v731 = vpop.permute.xlu0 %730
    %732 = vrot.lane.b32.xlu0 %v29, 118
    %v733 = vpop.permute.xlu0 %732
    %734 = vrot.lane.b32.xlu0 %v30, 118
    %v735 = vpop.permute.xlu0 %734
    %736 = vrot.lane.b32.xlu0 %v31, 118
    %v737 = vpop.permute.xlu0 %736
    %738 = vrot.lane.b32.xlu0 %v32, 118
    %v739 = vpop.permute.xlu0 %738
    %740 = vrot.lane.b32.xlu0 %v33, 118
    %v741 = vpop.permute.xlu0 %740
    %v750 = vadd.f32 %v26, %v727
    %v751 = vadd.f32 %v27, %v729
    %v752 = vadd.f32 %v28, %v731
    %v753 = vadd.f32 %v29, %v733
    %v754 = vadd.f32 %v30, %v735
    %v755 = vadd.f32 %v31, %v737
    %v756 = vadd.f32 %v32, %v739
    %v757 = vadd.f32 %v33, %v741
    %v758 = vmul.f32 %v750, 0.0010283801
    %v759 = vmul.f32 %v751, 0.0010283801
    %v760 = vmul.f32 %v752, 0.0010283801
    %v761 = vmul.f32 %v753, 0.0010283801
    %v762 = vmul.f32 %v754, 0.0010283801
    %v763 = vmul.f32 %v755, 0.0010283801
    %v764 = vmul.f32 %v756, 0.0010283801
    %v765 = vmul.f32 %v757, 0.0010283801
    %774 = vrot.lane.b32.xlu0 %v758, 5
    %v775 = vpop.permute.xlu0 %774
    %776 = vrot.lane.b32.xlu0 %v759, 5
    %v777 = vpop.permute.xlu0 %776
    %778 = vrot.lane.b32.xlu0 %v760, 5
    %v779 = vpop.permute.xlu0 %778
    %780 = vrot.lane.b32.xlu0 %v761, 5
    %v781 = vpop.permute.xlu0 %780
    %782 = vrot.lane.b32.xlu0 %v762, 5
    %v783 = vpop.permute.xlu0 %782
    %784 = vrot.lane.b32.xlu0 %v763, 5
    %v785 = vpop.permute.xlu0 %784
    %786 = vrot.lane.b32.xlu0 %v764, 5
    %v787 = vpop.permute.xlu0 %786
    %788 = vrot.lane.b32.xlu0 %v765, 5
    %v789 = vpop.permute.xlu0 %788
    %v798 = vadd.f32 %v710, %v775
    %v799 = vadd.f32 %v711, %v777
    %v800 = vadd.f32 %v712, %v779
    %v801 = vadd.f32 %v713, %v781
    %v802 = vadd.f32 %v714, %v783
    %v803 = vadd.f32 %v715, %v785
    %v804 = vadd.f32 %v716, %v787
    %v805 = vadd.f32 %v717, %v789
    %806 = vrot.lane.b32.xlu0 %v26, 120
    %v807 = vpop.permute.xlu0 %806
    %808 = vrot.lane.b32.xlu0 %v27, 120
    %v809 = vpop.permute.xlu0 %808
    %810 = vrot.lane.b32.xlu0 %v28, 120
    %v811 = vpop.permute.xlu0 %810
    %812 = vrot.lane.b32.xlu0 %v29, 120
    %v813 = vpop.permute.xlu0 %812
    %814 = vrot.lane.b32.xlu0 %v30, 120
    %v815 = vpop.permute.xlu0 %814
    %816 = vrot.lane.b32.xlu0 %v31, 120
    %v817 = vpop.permute.xlu0 %816
    %818 = vrot.lane.b32.xlu0 %v32, 120
    %v819 = vpop.permute.xlu0 %818
    %820 = vrot.lane.b32.xlu0 %v33, 120
    %v821 = vpop.permute.xlu0 %820
    %v830 = vadd.f32 %v26, %v807
    %v831 = vadd.f32 %v27, %v809
    %v832 = vadd.f32 %v28, %v811
    %v833 = vadd.f32 %v29, %v813
    %v834 = vadd.f32 %v30, %v815
    %v835 = vadd.f32 %v31, %v817
    %v836 = vadd.f32 %v32, %v819
    %v837 = vadd.f32 %v33, %v821
    %v838 = vmul.f32 %v830, 0.007598758
    %v839 = vmul.f32 %v831, 0.007598758
    %v840 = vmul.f32 %v832, 0.007598758
    %v841 = vmul.f32 %v833, 0.007598758
    %v842 = vmul.f32 %v834, 0.007598758
    %v843 = vmul.f32 %v835, 0.007598758
    %v844 = vmul.f32 %v836, 0.007598758
    %v845 = vmul.f32 %v837, 0.007598758
    %854 = vrot.lane.b32.xlu0 %v838, 4
    %v855 = vpop.permute.xlu0 %854
    %856 = vrot.lane.b32.xlu0 %v839, 4
    %v857 = vpop.permute.xlu0 %856
    %858 = vrot.lane.b32.xlu0 %v840, 4
    %v859 = vpop.permute.xlu0 %858
    %860 = vrot.lane.b32.xlu0 %v841, 4
    %v861 = vpop.permute.xlu0 %860
    %862 = vrot.lane.b32.xlu0 %v842, 4
    %v863 = vpop.permute.xlu0 %862
    %864 = vrot.lane.b32.xlu0 %v843, 4
    %v865 = vpop.permute.xlu0 %864
    %866 = vrot.lane.b32.xlu0 %v844, 4
    %v867 = vpop.permute.xlu0 %866
    %868 = vrot.lane.b32.xlu0 %v845, 4
    %v869 = vpop.permute.xlu0 %868
    %v878 = vadd.f32 %v798, %v855
    %v879 = vadd.f32 %v799, %v857
    %v880 = vadd.f32 %v800, %v859
    %v881 = vadd.f32 %v801, %v861
    %v882 = vadd.f32 %v802, %v863
    %v883 = vadd.f32 %v803, %v865
    %v884 = vadd.f32 %v804, %v867
    %v885 = vadd.f32 %v805, %v869
    %886 = vrot.lane.b32.xlu0 %v26, 122
    %v887 = vpop.permute.xlu0 %886
    %888 = vrot.lane.b32.xlu0 %v27, 122
    %v889 = vpop.permute.xlu0 %888
    %890 = vrot.lane.b32.xlu0 %v28, 122
    %v891 = vpop.permute.xlu0 %890
    %892 = vrot.lane.b32.xlu0 %v29, 122
    %v893 = vpop.permute.xlu0 %892
    %894 = vrot.lane.b32.xlu0 %v30, 122
    %v895 = vpop.permute.xlu0 %894
    %896 = vrot.lane.b32.xlu0 %v31, 122
    %v897 = vpop.permute.xlu0 %896
    %898 = vrot.lane.b32.xlu0 %v32, 122
    %v899 = vpop.permute.xlu0 %898
    %900 = vrot.lane.b32.xlu0 %v33, 122
    %v901 = vpop.permute.xlu0 %900
    %v910 = vadd.f32 %v26, %v887
    %v911 = vadd.f32 %v27, %v889
    %v912 = vadd.f32 %v28, %v891
    %v913 = vadd.f32 %v29, %v893
    %v914 = vadd.f32 %v30, %v895
    %v915 = vadd.f32 %v31, %v897
    %v916 = vadd.f32 %v32, %v899
    %v917 = vadd.f32 %v33, %v901
    %v918 = vmul.f32 %v910, 0.036000773
    %v919 = vmul.f32 %v911, 0.036000773
    %v920 = vmul.f32 %v912, 0.036000773
    %v921 = vmul.f32 %v913, 0.036000773
    %v922 = vmul.f32 %v914, 0.036000773
    %v923 = vmul.f32 %v915, 0.036000773
    %v924 = vmul.f32 %v916, 0.036000773
    %v925 = vmul.f32 %v917, 0.036000773
    %934 = vrot.lane.b32.xlu0 %v918, 3
    %v935 = vpop.permute.xlu0 %934
    %936 = vrot.lane.b32.xlu0 %v919, 3
    %v937 = vpop.permute.xlu0 %936
    %938 = vrot.lane.b32.xlu0 %v920, 3
    %v939 = vpop.permute.xlu0 %938
    %940 = vrot.lane.b32.xlu0 %v921, 3
    %v941 = vpop.permute.xlu0 %940
    %942 = vrot.lane.b32.xlu0 %v922, 3
    %v943 = vpop.permute.xlu0 %942
    %944 = vrot.lane.b32.xlu0 %v923, 3
    %v945 = vpop.permute.xlu0 %944
    %946 = vrot.lane.b32.xlu0 %v924, 3
    %v947 = vpop.permute.xlu0 %946
    %948 = vrot.lane.b32.xlu0 %v925, 3
    %v949 = vpop.permute.xlu0 %948
    %v958 = vadd.f32 %v878, %v935
    %v959 = vadd.f32 %v879, %v937
    %v960 = vadd.f32 %v880, %v939
    %v961 = vadd.f32 %v881, %v941
    %v962 = vadd.f32 %v882, %v943
    %v963 = vadd.f32 %v883, %v945
    %v964 = vadd.f32 %v884, %v947
    %v965 = vadd.f32 %v885, %v949
    %966 = vrot.lane.b32.xlu0 %v26, 124
    %v967 = vpop.permute.xlu0 %966
    %968 = vrot.lane.b32.xlu0 %v27, 124
    %v969 = vpop.permute.xlu0 %968
    %970 = vrot.lane.b32.xlu0 %v28, 124
    %v971 = vpop.permute.xlu0 %970
    %972 = vrot.lane.b32.xlu0 %v29, 124
    %v973 = vpop.permute.xlu0 %972
    %974 = vrot.lane.b32.xlu0 %v30, 124
    %v975 = vpop.permute.xlu0 %974
    %976 = vrot.lane.b32.xlu0 %v31, 124
    %v977 = vpop.permute.xlu0 %976
    %978 = vrot.lane.b32.xlu0 %v32, 124
    %v979 = vpop.permute.xlu0 %978
    %980 = vrot.lane.b32.xlu0 %v33, 124
    %v981 = vpop.permute.xlu0 %980
    %v990 = vadd.f32 %v26, %v967
    %v991 = vadd.f32 %v27, %v969
    %v992 = vadd.f32 %v28, %v971
    %v993 = vadd.f32 %v29, %v973
    %v994 = vadd.f32 %v30, %v975
    %v995 = vadd.f32 %v31, %v977
    %v996 = vadd.f32 %v32, %v979
    %v997 = vadd.f32 %v33, %v981
    %v998 = vmul.f32 %v990, 0.10936069
    %v999 = vmul.f32 %v991, 0.10936069
    %v1000 = vmul.f32 %v992, 0.10936069
    %v1001 = vmul.f32 %v993, 0.10936069
    %v1002 = vmul.f32 %v994, 0.10936069
    %v1003 = vmul.f32 %v995, 0.10936069
    %v1004 = vmul.f32 %v996, 0.10936069
    %v1005 = vmul.f32 %v997, 0.10936069
    %1014 = vrot.lane.b32.xlu0 %v998, 2
    %v1015 = vpop.permute.xlu0 %1014
    %1016 = vrot.lane.b32.xlu0 %v999, 2
    %v1017 = vpop.permute.xlu0 %1016
    %1018 = vrot.lane.b32.xlu0 %v1000, 2
    %v1019 = vpop.permute.xlu0 %1018
    %1020 = vrot.lane.b32.xlu0 %v1001, 2
    %v1021 = vpop.permute.xlu0 %1020
    %1022 = vrot.lane.b32.xlu0 %v1002, 2
    %v1023 = vpop.permute.xlu0 %1022
    %1024 = vrot.lane.b32.xlu0 %v1003, 2
    %v1025 = vpop.permute.xlu0 %1024
    %1026 = vrot.lane.b32.xlu0 %v1004, 2
    %v1027 = vpop.permute.xlu0 %1026
    %1028 = vrot.lane.b32.xlu0 %v1005, 2
    %v1029 = vpop.permute.xlu0 %1028
    %v1038 = vadd.f32 %v958, %v1015
    %v1039 = vadd.f32 %v959, %v1017
    %v1040 = vadd.f32 %v960, %v1019
    %v1041 = vadd.f32 %v961, %v1021
    %v1042 = vadd.f32 %v962, %v1023
    %v1043 = vadd.f32 %v963, %v1025
    %v1044 = vadd.f32 %v964, %v1027
    %v1045 = vadd.f32 %v965, %v1029
    %1046 = vrot.lane.b32.xlu0 %v26, 126
    %v1047 = vpop.permute.xlu0 %1046
    %1048 = vrot.lane.b32.xlu0 %v27, 126
    %v1049 = vpop.permute.xlu0 %1048
    %1050 = vrot.lane.b32.xlu0 %v28, 126
    %v1051 = vpop.permute.xlu0 %1050
    %1052 = vrot.lane.b32.xlu0 %v29, 126
    %v1053 = vpop.permute.xlu0 %1052
    %1054 = vrot.lane.b32.xlu0 %v30, 126
    %v1055 = vpop.permute.xlu0 %1054
    %1056 = vrot.lane.b32.xlu0 %v31, 126
    %v1057 = vpop.permute.xlu0 %1056
    %1058 = vrot.lane.b32.xlu0 %v32, 126
    %v1059 = vpop.permute.xlu0 %1058
    %1060 = vrot.lane.b32.xlu0 %v33, 126
    %v1061 = vpop.permute.xlu0 %1060
    %v1070 = vadd.f32 %v26, %v1047
    %v1071 = vadd.f32 %v27, %v1049
    %v1072 = vadd.f32 %v28, %v1051
    %v1073 = vadd.f32 %v29, %v1053
    %v1074 = vadd.f32 %v30, %v1055
    %v1075 = vadd.f32 %v31, %v1057
    %v1076 = vadd.f32 %v32, %v1059
    %v1077 = vadd.f32 %v33, %v1061
    %v1078 = vmul.f32 %v1070, 0.21300554
    %v1079 = vmul.f32 %v1071, 0.21300554
    %v1080 = vmul.f32 %v1072, 0.21300554
    %v1081 = vmul.f32 %v1073, 0.21300554
    %v1082 = vmul.f32 %v1074, 0.21300554
    %v1083 = vmul.f32 %v1075, 0.21300554
    %v1084 = vmul.f32 %v1076, 0.21300554
    %v1085 = vmul.f32 %v1077, 0.21300554
    %1094 = vrot.lane.b32.xlu0 %v1078, 1
    %v1095 = vpop.permute.xlu0 %1094
    %1096 = vrot.lane.b32.xlu0 %v1079, 1
    %v1097 = vpop.permute.xlu0 %1096
    %1098 = vrot.lane.b32.xlu0 %v1080, 1
    %v1099 = vpop.permute.xlu0 %1098
    %1100 = vrot.lane.b32.xlu0 %v1081, 1
    %v1101 = vpop.permute.xlu0 %1100
    %1102 = vrot.lane.b32.xlu0 %v1082, 1
    %v1103 = vpop.permute.xlu0 %1102
    %1104 = vrot.lane.b32.xlu0 %v1083, 1
    %v1105 = vpop.permute.xlu0 %1104
    %1106 = vrot.lane.b32.xlu0 %v1084, 1
    %v1107 = vpop.permute.xlu0 %1106
    %1108 = vrot.lane.b32.xlu0 %v1085, 1
    %v1109 = vpop.permute.xlu0 %1108
    %v1118 = vadd.f32 %v1038, %v1095
    %v1119 = vadd.f32 %v1039, %v1097
    %v1120 = vadd.f32 %v1040, %v1099
    %v1121 = vadd.f32 %v1041, %v1101
    %v1122 = vadd.f32 %v1042, %v1103
    %v1123 = vadd.f32 %v1043, %v1105
    %v1124 = vadd.f32 %v1044, %v1107
    %v1125 = vadd.f32 %v1045, %v1109
    %v1126 = vmul.f32 %v1118, 0.26601171
    %v1127 = vmul.f32 %v1119, 0.26601171
    %v1128 = vmul.f32 %v1120, 0.26601171
    %v1129 = vmul.f32 %v1122, 0.26601171
    %v1130 = vmul.f32 %v1123, 0.26601171
    %v1131 = vmul.f32 %v1124, 0.26601171
    %v1138 = vrot.slane %v1119, 2
    %v1139 = vrot.slane %v1120, 2
    %v1140 = vsel %vm462, %v1138, %v1139
    %v1141 = vrot.slane %v1121, 2
    %v1142 = vsel %vm462, %v1139, %v1141
    %v1143 = vrot.slane %v1123, 2
    %v1144 = vrot.slane %v1124, 2
    %v1145 = vsel %vm462, %v1143, %v1144
    %v1146 = vrot.slane %v1125, 2
    %v1147 = vsel %vm462, %v1144, %v1146
    %v1152 = vadd.f32 %v1118, %v1140
    %v1153 = vadd.f32 %v1119, %v1142
    %v1154 = vadd.f32 %v1122, %v1145
    %v1155 = vadd.f32 %v1123, %v1147
    %v1156 = vmul.f32 %v1152, 0.0010283801
    %v1157 = vmul.f32 %v1153, 0.0010283801
    %v1158 = vmul.f32 %v1154, 0.0010283801
    %v1159 = vmul.f32 %v1155, 0.0010283801
    %v1164 = vrot.slane %v1156, 3
    %v1165 = vrot.slane %v1157, 3
    %v1166 = vsel %vm489, %v1164, %v1165
    %v1167 = vrot.slane %v1158, 3
    %v1168 = vrot.slane %v1159, 3
    %v1169 = vsel %vm489, %v1167, %v1168
    %v1176 = vadd.f32 %v1126, %v1164
    %v1177 = vadd.f32 %v1127, %v1166
    %v1178 = vadd.f32 %v1128, %v1165
    %v1179 = vadd.f32 %v1129, %v1167
    %v1180 = vadd.f32 %v1130, %v1169
    %v1181 = vadd.f32 %v1131, %v1168
    %v1182 = vadd.f32 %v1118, %v1119
    %v1183 = vadd.f32 %v1119, %v1120
    %v1184 = vadd.f32 %v1120, %v1121
    %v1185 = vadd.f32 %v1122, %v1123
    %v1186 = vadd.f32 %v1123, %v1124
    %v1187 = vadd.f32 %v1124, %v1125
    %v1188 = vmul.f32 %v1182, 0.007598758
    %v1189 = vmul.f32 %v1183, 0.007598758
    %v1190 = vmul.f32 %v1184, 0.007598758
    %v1191 = vmul.f32 %v1185, 0.007598758
    %v1192 = vmul.f32 %v1186, 0.007598758
    %v1193 = vmul.f32 %v1187, 0.007598758
    %v1200 = vrot.slane %v1188, 4
    %v1201 = vrot.slane %v1189, 4
    %v1202 = vsel %vm526, %v1200, %v1201
    %v1203 = vrot.slane %v1190, 4
    %v1204 = vsel %vm526, %v1201, %v1203
    %v1205 = vrot.slane %v1191, 4
    %v1206 = vrot.slane %v1192, 4
    %v1207 = vsel %vm526, %v1205, %v1206
    %v1208 = vrot.slane %v1193, 4
    %v1209 = vsel %vm526, %v1206, %v1208
    %v1216 = vadd.f32 %v1176, %v1200
    %v1217 = vadd.f32 %v1177, %v1202
    %v1218 = vadd.f32 %v1178, %v1204
    %v1219 = vadd.f32 %v1179, %v1205
    %v1220 = vadd.f32 %v1180, %v1207
    %v1221 = vadd.f32 %v1181, %v1209
    %v1222 = vrot.slane %v1119, 6
    %v1223 = vrot.slane %v1120, 6
    %v1224 = vsel %vm549, %v1222, %v1223
    %v1225 = vrot.slane %v1123, 6
    %v1226 = vrot.slane %v1124, 6
    %v1227 = vsel %vm549, %v1225, %v1226
    %v1234 = vadd.f32 %v1118, %v1222
    %v1235 = vadd.f32 %v1119, %v1224
    %v1236 = vadd.f32 %v1120, %v1223
    %v1237 = vadd.f32 %v1122, %v1225
    %v1238 = vadd.f32 %v1123, %v1227
    %v1239 = vadd.f32 %v1124, %v1226
    %v1240 = vmul.f32 %v1234, 0.036000773
    %v1241 = vmul.f32 %v1235, 0.036000773
    %v1242 = vmul.f32 %v1236, 0.036000773
    %v1243 = vmul.f32 %v1237, 0.036000773
    %v1244 = vmul.f32 %v1238, 0.036000773
    %v1245 = vmul.f32 %v1239, 0.036000773
    %v1252 = vrot.slane %v1240, 5
    %v1253 = vrot.slane %v1241, 5
    %v1254 = vsel %vm580, %v1252, %v1253
    %v1255 = vrot.slane %v1242, 5
    %v1256 = vsel %vm580, %v1253, %v1255
    %v1257 = vrot.slane %v1243, 5
    %v1258 = vrot.slane %v1244, 5
    %v1259 = vsel %vm580, %v1257, %v1258
    %v1260 = vrot.slane %v1245, 5
    %v1261 = vsel %vm580, %v1258, %v1260
    %v1268 = vadd.f32 %v1216, %v1252
    %v1269 = vadd.f32 %v1217, %v1254
    %v1270 = vadd.f32 %v1218, %v1256
    %v1271 = vadd.f32 %v1219, %v1257
    %v1272 = vadd.f32 %v1220, %v1259
    %v1273 = vadd.f32 %v1221, %v1261
    %v1276 = vrot.slane %v1118, 4
    %v1277 = vrot.slane %v1119, 4
    %v1278 = vsel %vm526, %v1276, %v1277
    %v1279 = vrot.slane %v1120, 4
    %v1280 = vsel %vm526, %v1277, %v1279
    %v1281 = vrot.slane %v1122, 4
    %v1282 = vrot.slane %v1123, 4
    %v1283 = vsel %vm526, %v1281, %v1282
    %v1284 = vrot.slane %v1124, 4
    %v1285 = vsel %vm526, %v1282, %v1284
    %v1292 = vadd.f32 %v1118, %v1278
    %v1293 = vadd.f32 %v1119, %v1280
    %v1294 = vadd.f32 %v1120, %v1279
    %v1295 = vadd.f32 %v1122, %v1283
    %v1296 = vadd.f32 %v1123, %v1285
    %v1297 = vadd.f32 %v1124, %v1284
    %v1298 = vmul.f32 %v1292, 0.10936069
    %v1299 = vmul.f32 %v1293, 0.10936069
    %v1300 = vmul.f32 %v1294, 0.10936069
    %v1301 = vmul.f32 %v1295, 0.10936069
    %v1302 = vmul.f32 %v1296, 0.10936069
    %v1303 = vmul.f32 %v1297, 0.10936069
    %v1310 = vrot.slane %v1298, 6
    %v1311 = vrot.slane %v1299, 6
    %v1312 = vsel %vm549, %v1310, %v1311
    %v1313 = vrot.slane %v1300, 6
    %v1314 = vsel %vm549, %v1311, %v1313
    %v1315 = vrot.slane %v1301, 6
    %v1316 = vrot.slane %v1302, 6
    %v1317 = vsel %vm549, %v1315, %v1316
    %v1318 = vrot.slane %v1303, 6
    %v1319 = vsel %vm549, %v1316, %v1318
    %v1326 = vadd.f32 %v1268, %v1310
    %v1327 = vadd.f32 %v1269, %v1312
    %v1328 = vadd.f32 %v1270, %v1314
    %v1329 = vadd.f32 %v1271, %v1315
    %v1330 = vadd.f32 %v1272, %v1317
    %v1331 = vadd.f32 %v1273, %v1319
    %v1332 = vrot.slane %v1118, 2
    %v1333 = vsel %vm462, %v1332, %v1138
    %v1334 = vrot.slane %v1122, 2
    %v1335 = vsel %vm462, %v1334, %v1143
    %v1340 = vadd.f32 %v1118, %v1333
    %v1341 = vadd.f32 %v1119, %v1140
    %v1342 = vadd.f32 %v1120, %v1139
    %v1343 = vadd.f32 %v1122, %v1335
    %v1344 = vadd.f32 %v1123, %v1145
    %v1345 = vadd.f32 %v1124, %v1144
    %v1346 = vmul.f32 %v1340, 0.21300554
    %v1347 = vmul.f32 %v1341, 0.21300554
    %v1348 = vmul.f32 %v1342, 0.21300554
    %v1349 = vmul.f32 %v1343, 0.21300554
    %v1350 = vmul.f32 %v1344, 0.21300554
    %v1351 = vmul.f32 %v1345, 0.21300554
    %v1358 = vrot.slane %v1346, 7
    %v1359 = vrot.slane %v1347, 7
    %v1360 = vsel %vm687, %v1358, %v1359
    %v1361 = vrot.slane %v1348, 7
    %v1362 = vsel %vm687, %v1359, %v1361
    %v1363 = vrot.slane %v1349, 7
    %v1364 = vrot.slane %v1350, 7
    %v1365 = vsel %vm687, %v1363, %v1364
    %v1366 = vrot.slane %v1351, 7
    %v1367 = vsel %vm687, %v1364, %v1366
    %v1374 = vadd.f32 %v1326, %v1358
    %v1375 = vadd.f32 %v1327, %v1360
    %v1376 = vadd.f32 %v1328, %v1362
    %v1377 = vadd.f32 %v1329, %v1363
    %v1378 = vadd.f32 %v1330, %v1365
    %v1379 = vadd.f32 %v1331, %v1367
    %v1380 = vmul.f32 %v704, %v704
    %v1381 = vmul.f32 %v705, %v705
    %v1382 = vmul.f32 %v706, %v706
    %v1383 = vmul.f32 %v707, %v707
    %v1384 = vmul.f32 %v708, %v708
    %v1385 = vmul.f32 %v709, %v709
    %v1386 = vmul.f32 %v1374, %v1374
    %v1387 = vmul.f32 %v1375, %v1375
    %v1388 = vmul.f32 %v1376, %v1376
    %v1389 = vmul.f32 %v1377, %v1377
    %v1390 = vmul.f32 %v1378, %v1378
    %v1391 = vmul.f32 %v1379, %v1379
    %v1392 = vmul.f32 %v704, %v1374
    %v1393 = vmul.f32 %v705, %v1375
    %v1394 = vmul.f32 %v706, %v1376
    %v1395 = vmul.f32 %v707, %v1377
    %v1396 = vmul.f32 %v708, %v1378
    %v1397 = vmul.f32 %v709, %v1379
    %v1398 = vmul.f32 %v18, %v18
    %v1399 = vmul.f32 %v19, %v19
    %v1400 = vmul.f32 %v20, %v20
    %v1401 = vmul.f32 %v21, %v21
    %v1402 = vmul.f32 %v22, %v22
    %v1403 = vmul.f32 %v23, %v23
    %v1404 = vmul.f32 %v24, %v24
    %v1405 = vmul.f32 %v25, %v25
    %v1406 = vmul.f32 %v1398, 0.26601171
    %v1407 = vmul.f32 %v1399, 0.26601171
    %v1408 = vmul.f32 %v1400, 0.26601171
    %v1409 = vmul.f32 %v1401, 0.26601171
    %v1410 = vmul.f32 %v1402, 0.26601171
    %v1411 = vmul.f32 %v1403, 0.26601171
    %v1412 = vmul.f32 %v1404, 0.26601171
    %v1413 = vmul.f32 %v1405, 0.26601171
    %1422 = vrot.lane.b32.xlu0 %v1398, 118
    %v1423 = vpop.permute.xlu0 %1422
    %1424 = vrot.lane.b32.xlu0 %v1399, 118
    %v1425 = vpop.permute.xlu0 %1424
    %1426 = vrot.lane.b32.xlu0 %v1400, 118
    %v1427 = vpop.permute.xlu0 %1426
    %1428 = vrot.lane.b32.xlu0 %v1401, 118
    %v1429 = vpop.permute.xlu0 %1428
    %1430 = vrot.lane.b32.xlu0 %v1402, 118
    %v1431 = vpop.permute.xlu0 %1430
    %1432 = vrot.lane.b32.xlu0 %v1403, 118
    %v1433 = vpop.permute.xlu0 %1432
    %1434 = vrot.lane.b32.xlu0 %v1404, 118
    %v1435 = vpop.permute.xlu0 %1434
    %1436 = vrot.lane.b32.xlu0 %v1405, 118
    %v1437 = vpop.permute.xlu0 %1436
    %v1446 = vadd.f32 %v1398, %v1423
    %v1447 = vadd.f32 %v1399, %v1425
    %v1448 = vadd.f32 %v1400, %v1427
    %v1449 = vadd.f32 %v1401, %v1429
    %v1450 = vadd.f32 %v1402, %v1431
    %v1451 = vadd.f32 %v1403, %v1433
    %v1452 = vadd.f32 %v1404, %v1435
    %v1453 = vadd.f32 %v1405, %v1437
    %v1454 = vmul.f32 %v1446, 0.0010283801
    %v1455 = vmul.f32 %v1447, 0.0010283801
    %v1456 = vmul.f32 %v1448, 0.0010283801
    %v1457 = vmul.f32 %v1449, 0.0010283801
    %v1458 = vmul.f32 %v1450, 0.0010283801
    %v1459 = vmul.f32 %v1451, 0.0010283801
    %v1460 = vmul.f32 %v1452, 0.0010283801
    %v1461 = vmul.f32 %v1453, 0.0010283801
    %1470 = vrot.lane.b32.xlu0 %v1454, 5
    %v1471 = vpop.permute.xlu0 %1470
    %1472 = vrot.lane.b32.xlu0 %v1455, 5
    %v1473 = vpop.permute.xlu0 %1472
    %1474 = vrot.lane.b32.xlu0 %v1456, 5
    %v1475 = vpop.permute.xlu0 %1474
    %1476 = vrot.lane.b32.xlu0 %v1457, 5
    %v1477 = vpop.permute.xlu0 %1476
    %1478 = vrot.lane.b32.xlu0 %v1458, 5
    %v1479 = vpop.permute.xlu0 %1478
    %1480 = vrot.lane.b32.xlu0 %v1459, 5
    %v1481 = vpop.permute.xlu0 %1480
    %1482 = vrot.lane.b32.xlu0 %v1460, 5
    %v1483 = vpop.permute.xlu0 %1482
    %1484 = vrot.lane.b32.xlu0 %v1461, 5
    %v1485 = vpop.permute.xlu0 %1484
    %v1494 = vadd.f32 %v1406, %v1471
    %v1495 = vadd.f32 %v1407, %v1473
    %v1496 = vadd.f32 %v1408, %v1475
    %v1497 = vadd.f32 %v1409, %v1477
    %v1498 = vadd.f32 %v1410, %v1479
    %v1499 = vadd.f32 %v1411, %v1481
    %v1500 = vadd.f32 %v1412, %v1483
    %v1501 = vadd.f32 %v1413, %v1485
    %1502 = vrot.lane.b32.xlu0 %v1398, 120
    %v1503 = vpop.permute.xlu0 %1502
    %1504 = vrot.lane.b32.xlu0 %v1399, 120
    %v1505 = vpop.permute.xlu0 %1504
    %1506 = vrot.lane.b32.xlu0 %v1400, 120
    %v1507 = vpop.permute.xlu0 %1506
    %1508 = vrot.lane.b32.xlu0 %v1401, 120
    %v1509 = vpop.permute.xlu0 %1508
    %1510 = vrot.lane.b32.xlu0 %v1402, 120
    %v1511 = vpop.permute.xlu0 %1510
    %1512 = vrot.lane.b32.xlu0 %v1403, 120
    %v1513 = vpop.permute.xlu0 %1512
    %1514 = vrot.lane.b32.xlu0 %v1404, 120
    %v1515 = vpop.permute.xlu0 %1514
    %1516 = vrot.lane.b32.xlu0 %v1405, 120
    %v1517 = vpop.permute.xlu0 %1516
    %v1526 = vadd.f32 %v1398, %v1503
    %v1527 = vadd.f32 %v1399, %v1505
    %v1528 = vadd.f32 %v1400, %v1507
    %v1529 = vadd.f32 %v1401, %v1509
    %v1530 = vadd.f32 %v1402, %v1511
    %v1531 = vadd.f32 %v1403, %v1513
    %v1532 = vadd.f32 %v1404, %v1515
    %v1533 = vadd.f32 %v1405, %v1517
    %v1534 = vmul.f32 %v1526, 0.007598758
    %v1535 = vmul.f32 %v1527, 0.007598758
    %v1536 = vmul.f32 %v1528, 0.007598758
    %v1537 = vmul.f32 %v1529, 0.007598758
    %v1538 = vmul.f32 %v1530, 0.007598758
    %v1539 = vmul.f32 %v1531, 0.007598758
    %v1540 = vmul.f32 %v1532, 0.007598758
    %v1541 = vmul.f32 %v1533, 0.007598758
    %1550 = vrot.lane.b32.xlu0 %v1534, 4
    %v1551 = vpop.permute.xlu0 %1550
    %1552 = vrot.lane.b32.xlu0 %v1535, 4
    %v1553 = vpop.permute.xlu0 %1552
    %1554 = vrot.lane.b32.xlu0 %v1536, 4
    %v1555 = vpop.permute.xlu0 %1554
    %1556 = vrot.lane.b32.xlu0 %v1537, 4
    %v1557 = vpop.permute.xlu0 %1556
    %1558 = vrot.lane.b32.xlu0 %v1538, 4
    %v1559 = vpop.permute.xlu0 %1558
    %1560 = vrot.lane.b32.xlu0 %v1539, 4
    %v1561 = vpop.permute.xlu0 %1560
    %1562 = vrot.lane.b32.xlu0 %v1540, 4
    %v1563 = vpop.permute.xlu0 %1562
    %1564 = vrot.lane.b32.xlu0 %v1541, 4
    %v1565 = vpop.permute.xlu0 %1564
    %v1574 = vadd.f32 %v1494, %v1551
    %v1575 = vadd.f32 %v1495, %v1553
    %v1576 = vadd.f32 %v1496, %v1555
    %v1577 = vadd.f32 %v1497, %v1557
    %v1578 = vadd.f32 %v1498, %v1559
    %v1579 = vadd.f32 %v1499, %v1561
    %v1580 = vadd.f32 %v1500, %v1563
    %v1581 = vadd.f32 %v1501, %v1565
    %1582 = vrot.lane.b32.xlu0 %v1398, 122
    %v1583 = vpop.permute.xlu0 %1582
    %1584 = vrot.lane.b32.xlu0 %v1399, 122
    %v1585 = vpop.permute.xlu0 %1584
    %1586 = vrot.lane.b32.xlu0 %v1400, 122
    %v1587 = vpop.permute.xlu0 %1586
    %1588 = vrot.lane.b32.xlu0 %v1401, 122
    %v1589 = vpop.permute.xlu0 %1588
    %1590 = vrot.lane.b32.xlu0 %v1402, 122
    %v1591 = vpop.permute.xlu0 %1590
    %1592 = vrot.lane.b32.xlu0 %v1403, 122
    %v1593 = vpop.permute.xlu0 %1592
    %1594 = vrot.lane.b32.xlu0 %v1404, 122
    %v1595 = vpop.permute.xlu0 %1594
    %1596 = vrot.lane.b32.xlu0 %v1405, 122
    %v1597 = vpop.permute.xlu0 %1596
    %v1606 = vadd.f32 %v1398, %v1583
    %v1607 = vadd.f32 %v1399, %v1585
    %v1608 = vadd.f32 %v1400, %v1587
    %v1609 = vadd.f32 %v1401, %v1589
    %v1610 = vadd.f32 %v1402, %v1591
    %v1611 = vadd.f32 %v1403, %v1593
    %v1612 = vadd.f32 %v1404, %v1595
    %v1613 = vadd.f32 %v1405, %v1597
    %v1614 = vmul.f32 %v1606, 0.036000773
    %v1615 = vmul.f32 %v1607, 0.036000773
    %v1616 = vmul.f32 %v1608, 0.036000773
    %v1617 = vmul.f32 %v1609, 0.036000773
    %v1618 = vmul.f32 %v1610, 0.036000773
    %v1619 = vmul.f32 %v1611, 0.036000773
    %v1620 = vmul.f32 %v1612, 0.036000773
    %v1621 = vmul.f32 %v1613, 0.036000773
    %1630 = vrot.lane.b32.xlu0 %v1614, 3
    %v1631 = vpop.permute.xlu0 %1630
    %1632 = vrot.lane.b32.xlu0 %v1615, 3
    %v1633 = vpop.permute.xlu0 %1632
    %1634 = vrot.lane.b32.xlu0 %v1616, 3
    %v1635 = vpop.permute.xlu0 %1634
    %1636 = vrot.lane.b32.xlu0 %v1617, 3
    %v1637 = vpop.permute.xlu0 %1636
    %1638 = vrot.lane.b32.xlu0 %v1618, 3
    %v1639 = vpop.permute.xlu0 %1638
    %1640 = vrot.lane.b32.xlu0 %v1619, 3
    %v1641 = vpop.permute.xlu0 %1640
    %1642 = vrot.lane.b32.xlu0 %v1620, 3
    %v1643 = vpop.permute.xlu0 %1642
    %1644 = vrot.lane.b32.xlu0 %v1621, 3
    %v1645 = vpop.permute.xlu0 %1644
    %v1654 = vadd.f32 %v1574, %v1631
    %v1655 = vadd.f32 %v1575, %v1633
    %v1656 = vadd.f32 %v1576, %v1635
    %v1657 = vadd.f32 %v1577, %v1637
    %v1658 = vadd.f32 %v1578, %v1639
    %v1659 = vadd.f32 %v1579, %v1641
    %v1660 = vadd.f32 %v1580, %v1643
    %v1661 = vadd.f32 %v1581, %v1645
    %1662 = vrot.lane.b32.xlu0 %v1398, 124
    %v1663 = vpop.permute.xlu0 %1662
    %1664 = vrot.lane.b32.xlu0 %v1399, 124
    %v1665 = vpop.permute.xlu0 %1664
    %1666 = vrot.lane.b32.xlu0 %v1400, 124
    %v1667 = vpop.permute.xlu0 %1666
    %1668 = vrot.lane.b32.xlu0 %v1401, 124
    %v1669 = vpop.permute.xlu0 %1668
    %1670 = vrot.lane.b32.xlu0 %v1402, 124
    %v1671 = vpop.permute.xlu0 %1670
    %1672 = vrot.lane.b32.xlu0 %v1403, 124
    %v1673 = vpop.permute.xlu0 %1672
    %1674 = vrot.lane.b32.xlu0 %v1404, 124
    %v1675 = vpop.permute.xlu0 %1674
    %1676 = vrot.lane.b32.xlu0 %v1405, 124
    %v1677 = vpop.permute.xlu0 %1676
    %v1686 = vadd.f32 %v1398, %v1663
    %v1687 = vadd.f32 %v1399, %v1665
    %v1688 = vadd.f32 %v1400, %v1667
    %v1689 = vadd.f32 %v1401, %v1669
    %v1690 = vadd.f32 %v1402, %v1671
    %v1691 = vadd.f32 %v1403, %v1673
    %v1692 = vadd.f32 %v1404, %v1675
    %v1693 = vadd.f32 %v1405, %v1677
    %v1694 = vmul.f32 %v1686, 0.10936069
    %v1695 = vmul.f32 %v1687, 0.10936069
    %v1696 = vmul.f32 %v1688, 0.10936069
    %v1697 = vmul.f32 %v1689, 0.10936069
    %v1698 = vmul.f32 %v1690, 0.10936069
    %v1699 = vmul.f32 %v1691, 0.10936069
    %v1700 = vmul.f32 %v1692, 0.10936069
    %v1701 = vmul.f32 %v1693, 0.10936069
    %1710 = vrot.lane.b32.xlu0 %v1694, 2
    %v1711 = vpop.permute.xlu0 %1710
    %1712 = vrot.lane.b32.xlu0 %v1695, 2
    %v1713 = vpop.permute.xlu0 %1712
    %1714 = vrot.lane.b32.xlu0 %v1696, 2
    %v1715 = vpop.permute.xlu0 %1714
    %1716 = vrot.lane.b32.xlu0 %v1697, 2
    %v1717 = vpop.permute.xlu0 %1716
    %1718 = vrot.lane.b32.xlu0 %v1698, 2
    %v1719 = vpop.permute.xlu0 %1718
    %1720 = vrot.lane.b32.xlu0 %v1699, 2
    %v1721 = vpop.permute.xlu0 %1720
    %1722 = vrot.lane.b32.xlu0 %v1700, 2
    %v1723 = vpop.permute.xlu0 %1722
    %1724 = vrot.lane.b32.xlu0 %v1701, 2
    %v1725 = vpop.permute.xlu0 %1724
    %v1734 = vadd.f32 %v1654, %v1711
    %v1735 = vadd.f32 %v1655, %v1713
    %v1736 = vadd.f32 %v1656, %v1715
    %v1737 = vadd.f32 %v1657, %v1717
    %v1738 = vadd.f32 %v1658, %v1719
    %v1739 = vadd.f32 %v1659, %v1721
    %v1740 = vadd.f32 %v1660, %v1723
    %v1741 = vadd.f32 %v1661, %v1725
    %1742 = vrot.lane.b32.xlu0 %v1398, 126
    %v1743 = vpop.permute.xlu0 %1742
    %1744 = vrot.lane.b32.xlu0 %v1399, 126
    %v1745 = vpop.permute.xlu0 %1744
    %1746 = vrot.lane.b32.xlu0 %v1400, 126
    %v1747 = vpop.permute.xlu0 %1746
    %1748 = vrot.lane.b32.xlu0 %v1401, 126
    %v1749 = vpop.permute.xlu0 %1748
    %1750 = vrot.lane.b32.xlu0 %v1402, 126
    %v1751 = vpop.permute.xlu0 %1750
    %1752 = vrot.lane.b32.xlu0 %v1403, 126
    %v1753 = vpop.permute.xlu0 %1752
    %1754 = vrot.lane.b32.xlu0 %v1404, 126
    %v1755 = vpop.permute.xlu0 %1754
    %1756 = vrot.lane.b32.xlu0 %v1405, 126
    %v1757 = vpop.permute.xlu0 %1756
    %v1766 = vadd.f32 %v1398, %v1743
    %v1767 = vadd.f32 %v1399, %v1745
    %v1768 = vadd.f32 %v1400, %v1747
    %v1769 = vadd.f32 %v1401, %v1749
    %v1770 = vadd.f32 %v1402, %v1751
    %v1771 = vadd.f32 %v1403, %v1753
    %v1772 = vadd.f32 %v1404, %v1755
    %v1773 = vadd.f32 %v1405, %v1757
    %v1774 = vmul.f32 %v1766, 0.21300554
    %v1775 = vmul.f32 %v1767, 0.21300554
    %v1776 = vmul.f32 %v1768, 0.21300554
    %v1777 = vmul.f32 %v1769, 0.21300554
    %v1778 = vmul.f32 %v1770, 0.21300554
    %v1779 = vmul.f32 %v1771, 0.21300554
    %v1780 = vmul.f32 %v1772, 0.21300554
    %v1781 = vmul.f32 %v1773, 0.21300554
    %1790 = vrot.lane.b32.xlu0 %v1774, 1
    %v1791 = vpop.permute.xlu0 %1790
    %1792 = vrot.lane.b32.xlu0 %v1775, 1
    %v1793 = vpop.permute.xlu0 %1792
    %1794 = vrot.lane.b32.xlu0 %v1776, 1
    %v1795 = vpop.permute.xlu0 %1794
    %1796 = vrot.lane.b32.xlu0 %v1777, 1
    %v1797 = vpop.permute.xlu0 %1796
    %1798 = vrot.lane.b32.xlu0 %v1778, 1
    %v1799 = vpop.permute.xlu0 %1798
    %1800 = vrot.lane.b32.xlu0 %v1779, 1
    %v1801 = vpop.permute.xlu0 %1800
    %1802 = vrot.lane.b32.xlu0 %v1780, 1
    %v1803 = vpop.permute.xlu0 %1802
    %1804 = vrot.lane.b32.xlu0 %v1781, 1
    %v1805 = vpop.permute.xlu0 %1804
    %v1814 = vadd.f32 %v1734, %v1791
    %v1815 = vadd.f32 %v1735, %v1793
    %v1816 = vadd.f32 %v1736, %v1795
    %v1817 = vadd.f32 %v1737, %v1797
    %v1818 = vadd.f32 %v1738, %v1799
    %v1819 = vadd.f32 %v1739, %v1801
    %v1820 = vadd.f32 %v1740, %v1803
    %v1821 = vadd.f32 %v1741, %v1805
    %v1822 = vmul.f32 %v1814, 0.26601171
    %v1823 = vmul.f32 %v1815, 0.26601171
    %v1824 = vmul.f32 %v1816, 0.26601171
    %v1825 = vmul.f32 %v1818, 0.26601171
    %v1826 = vmul.f32 %v1819, 0.26601171
    %v1827 = vmul.f32 %v1820, 0.26601171
    %v1834 = vrot.slane %v1815, 2
    %v1835 = vrot.slane %v1816, 2
    %v1836 = vsel %vm462, %v1834, %v1835
    %v1837 = vrot.slane %v1817, 2
    %v1838 = vsel %vm462, %v1835, %v1837
    %v1839 = vrot.slane %v1819, 2
    %v1840 = vrot.slane %v1820, 2
    %v1841 = vsel %vm462, %v1839, %v1840
    %v1842 = vrot.slane %v1821, 2
    %v1843 = vsel %vm462, %v1840, %v1842
    %v1848 = vadd.f32 %v1814, %v1836
    %v1849 = vadd.f32 %v1815, %v1838
    %v1850 = vadd.f32 %v1818, %v1841
    %v1851 = vadd.f32 %v1819, %v1843
    %v1852 = vmul.f32 %v1848, 0.0010283801
    %v1853 = vmul.f32 %v1849, 0.0010283801
    %v1854 = vmul.f32 %v1850, 0.0010283801
    %v1855 = vmul.f32 %v1851, 0.0010283801
    %v1860 = vrot.slane %v1852, 3
    %v1861 = vrot.slane %v1853, 3
    %v1862 = vsel %vm489, %v1860, %v1861
    %v1863 = vrot.slane %v1854, 3
    %v1864 = vrot.slane %v1855, 3
    %v1865 = vsel %vm489, %v1863, %v1864
    %v1872 = vadd.f32 %v1822, %v1860
    %v1873 = vadd.f32 %v1823, %v1862
    %v1874 = vadd.f32 %v1824, %v1861
    %v1875 = vadd.f32 %v1825, %v1863
    %v1876 = vadd.f32 %v1826, %v1865
    %v1877 = vadd.f32 %v1827, %v1864
    %v1878 = vadd.f32 %v1814, %v1815
    %v1879 = vadd.f32 %v1815, %v1816
    %v1880 = vadd.f32 %v1816, %v1817
    %v1881 = vadd.f32 %v1818, %v1819
    %v1882 = vadd.f32 %v1819, %v1820
    %v1883 = vadd.f32 %v1820, %v1821
    %v1884 = vmul.f32 %v1878, 0.007598758
    %v1885 = vmul.f32 %v1879, 0.007598758
    %v1886 = vmul.f32 %v1880, 0.007598758
    %v1887 = vmul.f32 %v1881, 0.007598758
    %v1888 = vmul.f32 %v1882, 0.007598758
    %v1889 = vmul.f32 %v1883, 0.007598758
    %v1896 = vrot.slane %v1884, 4
    %v1897 = vrot.slane %v1885, 4
    %v1898 = vsel %vm526, %v1896, %v1897
    %v1899 = vrot.slane %v1886, 4
    %v1900 = vsel %vm526, %v1897, %v1899
    %v1901 = vrot.slane %v1887, 4
    %v1902 = vrot.slane %v1888, 4
    %v1903 = vsel %vm526, %v1901, %v1902
    %v1904 = vrot.slane %v1889, 4
    %v1905 = vsel %vm526, %v1902, %v1904
    %v1912 = vadd.f32 %v1872, %v1896
    %v1913 = vadd.f32 %v1873, %v1898
    %v1914 = vadd.f32 %v1874, %v1900
    %v1915 = vadd.f32 %v1875, %v1901
    %v1916 = vadd.f32 %v1876, %v1903
    %v1917 = vadd.f32 %v1877, %v1905
    %v1918 = vrot.slane %v1815, 6
    %v1919 = vrot.slane %v1816, 6
    %v1920 = vsel %vm549, %v1918, %v1919
    %v1921 = vrot.slane %v1819, 6
    %v1922 = vrot.slane %v1820, 6
    %v1923 = vsel %vm549, %v1921, %v1922
    %v1930 = vadd.f32 %v1814, %v1918
    %v1931 = vadd.f32 %v1815, %v1920
    %v1932 = vadd.f32 %v1816, %v1919
    %v1933 = vadd.f32 %v1818, %v1921
    %v1934 = vadd.f32 %v1819, %v1923
    %v1935 = vadd.f32 %v1820, %v1922
    %v1936 = vmul.f32 %v1930, 0.036000773
    %v1937 = vmul.f32 %v1931, 0.036000773
    %v1938 = vmul.f32 %v1932, 0.036000773
    %v1939 = vmul.f32 %v1933, 0.036000773
    %v1940 = vmul.f32 %v1934, 0.036000773
    %v1941 = vmul.f32 %v1935, 0.036000773
    %v1948 = vrot.slane %v1936, 5
    %v1949 = vrot.slane %v1937, 5
    %v1950 = vsel %vm580, %v1948, %v1949
    %v1951 = vrot.slane %v1938, 5
    %v1952 = vsel %vm580, %v1949, %v1951
    %v1953 = vrot.slane %v1939, 5
    %v1954 = vrot.slane %v1940, 5
    %v1955 = vsel %vm580, %v1953, %v1954
    %v1956 = vrot.slane %v1941, 5
    %v1957 = vsel %vm580, %v1954, %v1956
    %v1964 = vadd.f32 %v1912, %v1948
    %v1965 = vadd.f32 %v1913, %v1950
    %v1966 = vadd.f32 %v1914, %v1952
    %v1967 = vadd.f32 %v1915, %v1953
    %v1968 = vadd.f32 %v1916, %v1955
    %v1969 = vadd.f32 %v1917, %v1957
    %v1972 = vrot.slane %v1814, 4
    %v1973 = vrot.slane %v1815, 4
    %v1974 = vsel %vm526, %v1972, %v1973
    %v1975 = vrot.slane %v1816, 4
    %v1976 = vsel %vm526, %v1973, %v1975
    %v1977 = vrot.slane %v1818, 4
    %v1978 = vrot.slane %v1819, 4
    %v1979 = vsel %vm526, %v1977, %v1978
    %v1980 = vrot.slane %v1820, 4
    %v1981 = vsel %vm526, %v1978, %v1980
    %v1988 = vadd.f32 %v1814, %v1974
    %v1989 = vadd.f32 %v1815, %v1976
    %v1990 = vadd.f32 %v1816, %v1975
    %v1991 = vadd.f32 %v1818, %v1979
    %v1992 = vadd.f32 %v1819, %v1981
    %v1993 = vadd.f32 %v1820, %v1980
    %v1994 = vmul.f32 %v1988, 0.10936069
    %v1995 = vmul.f32 %v1989, 0.10936069
    %v1996 = vmul.f32 %v1990, 0.10936069
    %v1997 = vmul.f32 %v1991, 0.10936069
    %v1998 = vmul.f32 %v1992, 0.10936069
    %v1999 = vmul.f32 %v1993, 0.10936069
    %v2006 = vrot.slane %v1994, 6
    %v2007 = vrot.slane %v1995, 6
    %v2008 = vsel %vm549, %v2006, %v2007
    %v2009 = vrot.slane %v1996, 6
    %v2010 = vsel %vm549, %v2007, %v2009
    %v2011 = vrot.slane %v1997, 6
    %v2012 = vrot.slane %v1998, 6
    %v2013 = vsel %vm549, %v2011, %v2012
    %v2014 = vrot.slane %v1999, 6
    %v2015 = vsel %vm549, %v2012, %v2014
    %v2022 = vadd.f32 %v1964, %v2006
    %v2023 = vadd.f32 %v1965, %v2008
    %v2024 = vadd.f32 %v1966, %v2010
    %v2025 = vadd.f32 %v1967, %v2011
    %v2026 = vadd.f32 %v1968, %v2013
    %v2027 = vadd.f32 %v1969, %v2015
    %v2028 = vrot.slane %v1814, 2
    %v2029 = vsel %vm462, %v2028, %v1834
    %v2030 = vrot.slane %v1818, 2
    %v2031 = vsel %vm462, %v2030, %v1839
    %v2036 = vadd.f32 %v1814, %v2029
    %v2037 = vadd.f32 %v1815, %v1836
    %v2038 = vadd.f32 %v1816, %v1835
    %v2039 = vadd.f32 %v1818, %v2031
    %v2040 = vadd.f32 %v1819, %v1841
    %v2041 = vadd.f32 %v1820, %v1840
    %v2042 = vmul.f32 %v2036, 0.21300554
    %v2043 = vmul.f32 %v2037, 0.21300554
    %v2044 = vmul.f32 %v2038, 0.21300554
    %v2045 = vmul.f32 %v2039, 0.21300554
    %v2046 = vmul.f32 %v2040, 0.21300554
    %v2047 = vmul.f32 %v2041, 0.21300554
    %v2054 = vrot.slane %v2042, 7
    %v2055 = vrot.slane %v2043, 7
    %v2056 = vsel %vm687, %v2054, %v2055
    %v2057 = vrot.slane %v2044, 7
    %v2058 = vsel %vm687, %v2055, %v2057
    %v2059 = vrot.slane %v2045, 7
    %v2060 = vrot.slane %v2046, 7
    %v2061 = vsel %vm687, %v2059, %v2060
    %v2062 = vrot.slane %v2047, 7
    %v2063 = vsel %vm687, %v2060, %v2062
    %v2070 = vadd.f32 %v2022, %v2054
    %v2071 = vadd.f32 %v2023, %v2056
    %v2072 = vadd.f32 %v2024, %v2058
    %v2073 = vadd.f32 %v2025, %v2059
    %v2074 = vadd.f32 %v2026, %v2061
    %v2075 = vadd.f32 %v2027, %v2063
    %v2076 = vsub.f32 %v2070, %v1380
    %v2077 = vsub.f32 %v2071, %v1381
    %v2078 = vsub.f32 %v2072, %v1382
    %v2079 = vsub.f32 %v2073, %v1383
    %v2080 = vsub.f32 %v2074, %v1384
    %v2081 = vsub.f32 %v2075, %v1385
    %v2082 = vmul.f32 %v26, %v26
    %v2083 = vmul.f32 %v27, %v27
    %v2084 = vmul.f32 %v28, %v28
    %v2085 = vmul.f32 %v29, %v29
    %v2086 = vmul.f32 %v30, %v30
    %v2087 = vmul.f32 %v31, %v31
    %v2088 = vmul.f32 %v32, %v32
    %v2089 = vmul.f32 %v33, %v33
    %v2090 = vmul.f32 %v2082, 0.26601171
    %v2091 = vmul.f32 %v2083, 0.26601171
    %v2092 = vmul.f32 %v2084, 0.26601171
    %v2093 = vmul.f32 %v2085, 0.26601171
    %v2094 = vmul.f32 %v2086, 0.26601171
    %v2095 = vmul.f32 %v2087, 0.26601171
    %v2096 = vmul.f32 %v2088, 0.26601171
    %v2097 = vmul.f32 %v2089, 0.26601171
    %2106 = vrot.lane.b32.xlu0 %v2082, 118
    %v2107 = vpop.permute.xlu0 %2106
    %2108 = vrot.lane.b32.xlu0 %v2083, 118
    %v2109 = vpop.permute.xlu0 %2108
    %2110 = vrot.lane.b32.xlu0 %v2084, 118
    %v2111 = vpop.permute.xlu0 %2110
    %2112 = vrot.lane.b32.xlu0 %v2085, 118
    %v2113 = vpop.permute.xlu0 %2112
    %2114 = vrot.lane.b32.xlu0 %v2086, 118
    %v2115 = vpop.permute.xlu0 %2114
    %2116 = vrot.lane.b32.xlu0 %v2087, 118
    %v2117 = vpop.permute.xlu0 %2116
    %2118 = vrot.lane.b32.xlu0 %v2088, 118
    %v2119 = vpop.permute.xlu0 %2118
    %2120 = vrot.lane.b32.xlu0 %v2089, 118
    %v2121 = vpop.permute.xlu0 %2120
    %v2130 = vadd.f32 %v2082, %v2107
    %v2131 = vadd.f32 %v2083, %v2109
    %v2132 = vadd.f32 %v2084, %v2111
    %v2133 = vadd.f32 %v2085, %v2113
    %v2134 = vadd.f32 %v2086, %v2115
    %v2135 = vadd.f32 %v2087, %v2117
    %v2136 = vadd.f32 %v2088, %v2119
    %v2137 = vadd.f32 %v2089, %v2121
    %v2138 = vmul.f32 %v2130, 0.0010283801
    %v2139 = vmul.f32 %v2131, 0.0010283801
    %v2140 = vmul.f32 %v2132, 0.0010283801
    %v2141 = vmul.f32 %v2133, 0.0010283801
    %v2142 = vmul.f32 %v2134, 0.0010283801
    %v2143 = vmul.f32 %v2135, 0.0010283801
    %v2144 = vmul.f32 %v2136, 0.0010283801
    %v2145 = vmul.f32 %v2137, 0.0010283801
    %2154 = vrot.lane.b32.xlu0 %v2138, 5
    %v2155 = vpop.permute.xlu0 %2154
    %2156 = vrot.lane.b32.xlu0 %v2139, 5
    %v2157 = vpop.permute.xlu0 %2156
    %2158 = vrot.lane.b32.xlu0 %v2140, 5
    %v2159 = vpop.permute.xlu0 %2158
    %2160 = vrot.lane.b32.xlu0 %v2141, 5
    %v2161 = vpop.permute.xlu0 %2160
    %2162 = vrot.lane.b32.xlu0 %v2142, 5
    %v2163 = vpop.permute.xlu0 %2162
    %2164 = vrot.lane.b32.xlu0 %v2143, 5
    %v2165 = vpop.permute.xlu0 %2164
    %2166 = vrot.lane.b32.xlu0 %v2144, 5
    %v2167 = vpop.permute.xlu0 %2166
    %2168 = vrot.lane.b32.xlu0 %v2145, 5
    %v2169 = vpop.permute.xlu0 %2168
    %v2178 = vadd.f32 %v2090, %v2155
    %v2179 = vadd.f32 %v2091, %v2157
    %v2180 = vadd.f32 %v2092, %v2159
    %v2181 = vadd.f32 %v2093, %v2161
    %v2182 = vadd.f32 %v2094, %v2163
    %v2183 = vadd.f32 %v2095, %v2165
    %v2184 = vadd.f32 %v2096, %v2167
    %v2185 = vadd.f32 %v2097, %v2169
    %2186 = vrot.lane.b32.xlu0 %v2082, 120
    %v2187 = vpop.permute.xlu0 %2186
    %2188 = vrot.lane.b32.xlu0 %v2083, 120
    %v2189 = vpop.permute.xlu0 %2188
    %2190 = vrot.lane.b32.xlu0 %v2084, 120
    %v2191 = vpop.permute.xlu0 %2190
    %2192 = vrot.lane.b32.xlu0 %v2085, 120
    %v2193 = vpop.permute.xlu0 %2192
    %2194 = vrot.lane.b32.xlu0 %v2086, 120
    %v2195 = vpop.permute.xlu0 %2194
    %2196 = vrot.lane.b32.xlu0 %v2087, 120
    %v2197 = vpop.permute.xlu0 %2196
    %2198 = vrot.lane.b32.xlu0 %v2088, 120
    %v2199 = vpop.permute.xlu0 %2198
    %2200 = vrot.lane.b32.xlu0 %v2089, 120
    %v2201 = vpop.permute.xlu0 %2200
    %v2210 = vadd.f32 %v2082, %v2187
    %v2211 = vadd.f32 %v2083, %v2189
    %v2212 = vadd.f32 %v2084, %v2191
    %v2213 = vadd.f32 %v2085, %v2193
    %v2214 = vadd.f32 %v2086, %v2195
    %v2215 = vadd.f32 %v2087, %v2197
    %v2216 = vadd.f32 %v2088, %v2199
    %v2217 = vadd.f32 %v2089, %v2201
    %v2218 = vmul.f32 %v2210, 0.007598758
    %v2219 = vmul.f32 %v2211, 0.007598758
    %v2220 = vmul.f32 %v2212, 0.007598758
    %v2221 = vmul.f32 %v2213, 0.007598758
    %v2222 = vmul.f32 %v2214, 0.007598758
    %v2223 = vmul.f32 %v2215, 0.007598758
    %v2224 = vmul.f32 %v2216, 0.007598758
    %v2225 = vmul.f32 %v2217, 0.007598758
    %2234 = vrot.lane.b32.xlu0 %v2218, 4
    %v2235 = vpop.permute.xlu0 %2234
    %2236 = vrot.lane.b32.xlu0 %v2219, 4
    %v2237 = vpop.permute.xlu0 %2236
    %2238 = vrot.lane.b32.xlu0 %v2220, 4
    %v2239 = vpop.permute.xlu0 %2238
    %2240 = vrot.lane.b32.xlu0 %v2221, 4
    %v2241 = vpop.permute.xlu0 %2240
    %2242 = vrot.lane.b32.xlu0 %v2222, 4
    %v2243 = vpop.permute.xlu0 %2242
    %2244 = vrot.lane.b32.xlu0 %v2223, 4
    %v2245 = vpop.permute.xlu0 %2244
    %2246 = vrot.lane.b32.xlu0 %v2224, 4
    %v2247 = vpop.permute.xlu0 %2246
    %2248 = vrot.lane.b32.xlu0 %v2225, 4
    %v2249 = vpop.permute.xlu0 %2248
    %v2258 = vadd.f32 %v2178, %v2235
    %v2259 = vadd.f32 %v2179, %v2237
    %v2260 = vadd.f32 %v2180, %v2239
    %v2261 = vadd.f32 %v2181, %v2241
    %v2262 = vadd.f32 %v2182, %v2243
    %v2263 = vadd.f32 %v2183, %v2245
    %v2264 = vadd.f32 %v2184, %v2247
    %v2265 = vadd.f32 %v2185, %v2249
    %2266 = vrot.lane.b32.xlu0 %v2082, 122
    %v2267 = vpop.permute.xlu0 %2266
    %2268 = vrot.lane.b32.xlu0 %v2083, 122
    %v2269 = vpop.permute.xlu0 %2268
    %2270 = vrot.lane.b32.xlu0 %v2084, 122
    %v2271 = vpop.permute.xlu0 %2270
    %2272 = vrot.lane.b32.xlu0 %v2085, 122
    %v2273 = vpop.permute.xlu0 %2272
    %2274 = vrot.lane.b32.xlu0 %v2086, 122
    %v2275 = vpop.permute.xlu0 %2274
    %2276 = vrot.lane.b32.xlu0 %v2087, 122
    %v2277 = vpop.permute.xlu0 %2276
    %2278 = vrot.lane.b32.xlu0 %v2088, 122
    %v2279 = vpop.permute.xlu0 %2278
    %2280 = vrot.lane.b32.xlu0 %v2089, 122
    %v2281 = vpop.permute.xlu0 %2280
    %v2290 = vadd.f32 %v2082, %v2267
    %v2291 = vadd.f32 %v2083, %v2269
    %v2292 = vadd.f32 %v2084, %v2271
    %v2293 = vadd.f32 %v2085, %v2273
    %v2294 = vadd.f32 %v2086, %v2275
    %v2295 = vadd.f32 %v2087, %v2277
    %v2296 = vadd.f32 %v2088, %v2279
    %v2297 = vadd.f32 %v2089, %v2281
    %v2298 = vmul.f32 %v2290, 0.036000773
    %v2299 = vmul.f32 %v2291, 0.036000773
    %v2300 = vmul.f32 %v2292, 0.036000773
    %v2301 = vmul.f32 %v2293, 0.036000773
    %v2302 = vmul.f32 %v2294, 0.036000773
    %v2303 = vmul.f32 %v2295, 0.036000773
    %v2304 = vmul.f32 %v2296, 0.036000773
    %v2305 = vmul.f32 %v2297, 0.036000773
    %2314 = vrot.lane.b32.xlu0 %v2298, 3
    %v2315 = vpop.permute.xlu0 %2314
    %2316 = vrot.lane.b32.xlu0 %v2299, 3
    %v2317 = vpop.permute.xlu0 %2316
    %2318 = vrot.lane.b32.xlu0 %v2300, 3
    %v2319 = vpop.permute.xlu0 %2318
    %2320 = vrot.lane.b32.xlu0 %v2301, 3
    %v2321 = vpop.permute.xlu0 %2320
    %2322 = vrot.lane.b32.xlu0 %v2302, 3
    %v2323 = vpop.permute.xlu0 %2322
    %2324 = vrot.lane.b32.xlu0 %v2303, 3
    %v2325 = vpop.permute.xlu0 %2324
    %2326 = vrot.lane.b32.xlu0 %v2304, 3
    %v2327 = vpop.permute.xlu0 %2326
    %2328 = vrot.lane.b32.xlu0 %v2305, 3
    %v2329 = vpop.permute.xlu0 %2328
    %v2338 = vadd.f32 %v2258, %v2315
    %v2339 = vadd.f32 %v2259, %v2317
    %v2340 = vadd.f32 %v2260, %v2319
    %v2341 = vadd.f32 %v2261, %v2321
    %v2342 = vadd.f32 %v2262, %v2323
    %v2343 = vadd.f32 %v2263, %v2325
    %v2344 = vadd.f32 %v2264, %v2327
    %v2345 = vadd.f32 %v2265, %v2329
    %2346 = vrot.lane.b32.xlu0 %v2082, 124
    %v2347 = vpop.permute.xlu0 %2346
    %2348 = vrot.lane.b32.xlu0 %v2083, 124
    %v2349 = vpop.permute.xlu0 %2348
    %2350 = vrot.lane.b32.xlu0 %v2084, 124
    %v2351 = vpop.permute.xlu0 %2350
    %2352 = vrot.lane.b32.xlu0 %v2085, 124
    %v2353 = vpop.permute.xlu0 %2352
    %2354 = vrot.lane.b32.xlu0 %v2086, 124
    %v2355 = vpop.permute.xlu0 %2354
    %2356 = vrot.lane.b32.xlu0 %v2087, 124
    %v2357 = vpop.permute.xlu0 %2356
    %2358 = vrot.lane.b32.xlu0 %v2088, 124
    %v2359 = vpop.permute.xlu0 %2358
    %2360 = vrot.lane.b32.xlu0 %v2089, 124
    %v2361 = vpop.permute.xlu0 %2360
    %v2370 = vadd.f32 %v2082, %v2347
    %v2371 = vadd.f32 %v2083, %v2349
    %v2372 = vadd.f32 %v2084, %v2351
    %v2373 = vadd.f32 %v2085, %v2353
    %v2374 = vadd.f32 %v2086, %v2355
    %v2375 = vadd.f32 %v2087, %v2357
    %v2376 = vadd.f32 %v2088, %v2359
    %v2377 = vadd.f32 %v2089, %v2361
    %v2378 = vmul.f32 %v2370, 0.10936069
    %v2379 = vmul.f32 %v2371, 0.10936069
    %v2380 = vmul.f32 %v2372, 0.10936069
    %v2381 = vmul.f32 %v2373, 0.10936069
    %v2382 = vmul.f32 %v2374, 0.10936069
    %v2383 = vmul.f32 %v2375, 0.10936069
    %v2384 = vmul.f32 %v2376, 0.10936069
    %v2385 = vmul.f32 %v2377, 0.10936069
    %2394 = vrot.lane.b32.xlu0 %v2378, 2
    %v2395 = vpop.permute.xlu0 %2394
    %2396 = vrot.lane.b32.xlu0 %v2379, 2
    %v2397 = vpop.permute.xlu0 %2396
    %2398 = vrot.lane.b32.xlu0 %v2380, 2
    %v2399 = vpop.permute.xlu0 %2398
    %2400 = vrot.lane.b32.xlu0 %v2381, 2
    %v2401 = vpop.permute.xlu0 %2400
    %2402 = vrot.lane.b32.xlu0 %v2382, 2
    %v2403 = vpop.permute.xlu0 %2402
    %2404 = vrot.lane.b32.xlu0 %v2383, 2
    %v2405 = vpop.permute.xlu0 %2404
    %2406 = vrot.lane.b32.xlu0 %v2384, 2
    %v2407 = vpop.permute.xlu0 %2406
    %2408 = vrot.lane.b32.xlu0 %v2385, 2
    %v2409 = vpop.permute.xlu0 %2408
    %v2418 = vadd.f32 %v2338, %v2395
    %v2419 = vadd.f32 %v2339, %v2397
    %v2420 = vadd.f32 %v2340, %v2399
    %v2421 = vadd.f32 %v2341, %v2401
    %v2422 = vadd.f32 %v2342, %v2403
    %v2423 = vadd.f32 %v2343, %v2405
    %v2424 = vadd.f32 %v2344, %v2407
    %v2425 = vadd.f32 %v2345, %v2409
    %2426 = vrot.lane.b32.xlu0 %v2082, 126
    %v2427 = vpop.permute.xlu0 %2426
    %2428 = vrot.lane.b32.xlu0 %v2083, 126
    %v2429 = vpop.permute.xlu0 %2428
    %2430 = vrot.lane.b32.xlu0 %v2084, 126
    %v2431 = vpop.permute.xlu0 %2430
    %2432 = vrot.lane.b32.xlu0 %v2085, 126
    %v2433 = vpop.permute.xlu0 %2432
    %2434 = vrot.lane.b32.xlu0 %v2086, 126
    %v2435 = vpop.permute.xlu0 %2434
    %2436 = vrot.lane.b32.xlu0 %v2087, 126
    %v2437 = vpop.permute.xlu0 %2436
    %2438 = vrot.lane.b32.xlu0 %v2088, 126
    %v2439 = vpop.permute.xlu0 %2438
    %2440 = vrot.lane.b32.xlu0 %v2089, 126
    %v2441 = vpop.permute.xlu0 %2440
    %v2450 = vadd.f32 %v2082, %v2427
    %v2451 = vadd.f32 %v2083, %v2429
    %v2452 = vadd.f32 %v2084, %v2431
    %v2453 = vadd.f32 %v2085, %v2433
    %v2454 = vadd.f32 %v2086, %v2435
    %v2455 = vadd.f32 %v2087, %v2437
    %v2456 = vadd.f32 %v2088, %v2439
    %v2457 = vadd.f32 %v2089, %v2441
    %v2458 = vmul.f32 %v2450, 0.21300554
    %v2459 = vmul.f32 %v2451, 0.21300554
    %v2460 = vmul.f32 %v2452, 0.21300554
    %v2461 = vmul.f32 %v2453, 0.21300554
    %v2462 = vmul.f32 %v2454, 0.21300554
    %v2463 = vmul.f32 %v2455, 0.21300554
    %v2464 = vmul.f32 %v2456, 0.21300554
    %v2465 = vmul.f32 %v2457, 0.21300554
    %2474 = vrot.lane.b32.xlu0 %v2458, 1
    %v2475 = vpop.permute.xlu0 %2474
    %2476 = vrot.lane.b32.xlu0 %v2459, 1
    %v2477 = vpop.permute.xlu0 %2476
    %2478 = vrot.lane.b32.xlu0 %v2460, 1
    %v2479 = vpop.permute.xlu0 %2478
    %2480 = vrot.lane.b32.xlu0 %v2461, 1
    %v2481 = vpop.permute.xlu0 %2480
    %2482 = vrot.lane.b32.xlu0 %v2462, 1
    %v2483 = vpop.permute.xlu0 %2482
    %2484 = vrot.lane.b32.xlu0 %v2463, 1
    %v2485 = vpop.permute.xlu0 %2484
    %2486 = vrot.lane.b32.xlu0 %v2464, 1
    %v2487 = vpop.permute.xlu0 %2486
    %2488 = vrot.lane.b32.xlu0 %v2465, 1
    %v2489 = vpop.permute.xlu0 %2488
    %v2498 = vadd.f32 %v2418, %v2475
    %v2499 = vadd.f32 %v2419, %v2477
    %v2500 = vadd.f32 %v2420, %v2479
    %v2501 = vadd.f32 %v2421, %v2481
    %v2502 = vadd.f32 %v2422, %v2483
    %v2503 = vadd.f32 %v2423, %v2485
    %v2504 = vadd.f32 %v2424, %v2487
    %v2505 = vadd.f32 %v2425, %v2489
    %v2506 = vmul.f32 %v2498, 0.26601171
    %v2507 = vmul.f32 %v2499, 0.26601171
    %v2508 = vmul.f32 %v2500, 0.26601171
    %v2509 = vmul.f32 %v2502, 0.26601171
    %v2510 = vmul.f32 %v2503, 0.26601171
    %v2511 = vmul.f32 %v2504, 0.26601171
    %v2518 = vrot.slane %v2499, 2
    %v2519 = vrot.slane %v2500, 2
    %v2520 = vsel %vm462, %v2518, %v2519
    %v2521 = vrot.slane %v2501, 2
    %v2522 = vsel %vm462, %v2519, %v2521
    %v2523 = vrot.slane %v2503, 2
    %v2524 = vrot.slane %v2504, 2
    %v2525 = vsel %vm462, %v2523, %v2524
    %v2526 = vrot.slane %v2505, 2
    %v2527 = vsel %vm462, %v2524, %v2526
    %v2532 = vadd.f32 %v2498, %v2520
    %v2533 = vadd.f32 %v2499, %v2522
    %v2534 = vadd.f32 %v2502, %v2525
    %v2535 = vadd.f32 %v2503, %v2527
    %v2536 = vmul.f32 %v2532, 0.0010283801
    %v2537 = vmul.f32 %v2533, 0.0010283801
    %v2538 = vmul.f32 %v2534, 0.0010283801
    %v2539 = vmul.f32 %v2535, 0.0010283801
    %v2544 = vrot.slane %v2536, 3
    %v2545 = vrot.slane %v2537, 3
    %v2546 = vsel %vm489, %v2544, %v2545
    %v2547 = vrot.slane %v2538, 3
    %v2548 = vrot.slane %v2539, 3
    %v2549 = vsel %vm489, %v2547, %v2548
    %v2556 = vadd.f32 %v2506, %v2544
    %v2557 = vadd.f32 %v2507, %v2546
    %v2558 = vadd.f32 %v2508, %v2545
    %v2559 = vadd.f32 %v2509, %v2547
    %v2560 = vadd.f32 %v2510, %v2549
    %v2561 = vadd.f32 %v2511, %v2548
    %v2562 = vadd.f32 %v2498, %v2499
    %v2563 = vadd.f32 %v2499, %v2500
    %v2564 = vadd.f32 %v2500, %v2501
    %v2565 = vadd.f32 %v2502, %v2503
    %v2566 = vadd.f32 %v2503, %v2504
    %v2567 = vadd.f32 %v2504, %v2505
    %v2568 = vmul.f32 %v2562, 0.007598758
    %v2569 = vmul.f32 %v2563, 0.007598758
    %v2570 = vmul.f32 %v2564, 0.007598758
    %v2571 = vmul.f32 %v2565, 0.007598758
    %v2572 = vmul.f32 %v2566, 0.007598758
    %v2573 = vmul.f32 %v2567, 0.007598758
    %v2580 = vrot.slane %v2568, 4
    %v2581 = vrot.slane %v2569, 4
    %v2582 = vsel %vm526, %v2580, %v2581
    %v2583 = vrot.slane %v2570, 4
    %v2584 = vsel %vm526, %v2581, %v2583
    %v2585 = vrot.slane %v2571, 4
    %v2586 = vrot.slane %v2572, 4
    %v2587 = vsel %vm526, %v2585, %v2586
    %v2588 = vrot.slane %v2573, 4
    %v2589 = vsel %vm526, %v2586, %v2588
    %v2596 = vadd.f32 %v2556, %v2580
    %v2597 = vadd.f32 %v2557, %v2582
    %v2598 = vadd.f32 %v2558, %v2584
    %v2599 = vadd.f32 %v2559, %v2585
    %v2600 = vadd.f32 %v2560, %v2587
    %v2601 = vadd.f32 %v2561, %v2589
    %v2602 = vrot.slane %v2499, 6
    %v2603 = vrot.slane %v2500, 6
    %v2604 = vsel %vm549, %v2602, %v2603
    %v2605 = vrot.slane %v2503, 6
    %v2606 = vrot.slane %v2504, 6
    %v2607 = vsel %vm549, %v2605, %v2606
    %v2614 = vadd.f32 %v2498, %v2602
    %v2615 = vadd.f32 %v2499, %v2604
    %v2616 = vadd.f32 %v2500, %v2603
    %v2617 = vadd.f32 %v2502, %v2605
    %v2618 = vadd.f32 %v2503, %v2607
    %v2619 = vadd.f32 %v2504, %v2606
    %v2620 = vmul.f32 %v2614, 0.036000773
    %v2621 = vmul.f32 %v2615, 0.036000773
    %v2622 = vmul.f32 %v2616, 0.036000773
    %v2623 = vmul.f32 %v2617, 0.036000773
    %v2624 = vmul.f32 %v2618, 0.036000773
    %v2625 = vmul.f32 %v2619, 0.036000773
    %v2632 = vrot.slane %v2620, 5
    %v2633 = vrot.slane %v2621, 5
    %v2634 = vsel %vm580, %v2632, %v2633
    %v2635 = vrot.slane %v2622, 5
    %v2636 = vsel %vm580, %v2633, %v2635
    %v2637 = vrot.slane %v2623, 5
    %v2638 = vrot.slane %v2624, 5
    %v2639 = vsel %vm580, %v2637, %v2638
    %v2640 = vrot.slane %v2625, 5
    %v2641 = vsel %vm580, %v2638, %v2640
    %v2648 = vadd.f32 %v2596, %v2632
    %v2649 = vadd.f32 %v2597, %v2634
    %v2650 = vadd.f32 %v2598, %v2636
    %v2651 = vadd.f32 %v2599, %v2637
    %v2652 = vadd.f32 %v2600, %v2639
    %v2653 = vadd.f32 %v2601, %v2641
    %v2656 = vrot.slane %v2498, 4
    %v2657 = vrot.slane %v2499, 4
    %v2658 = vsel %vm526, %v2656, %v2657
    %v2659 = vrot.slane %v2500, 4
    %v2660 = vsel %vm526, %v2657, %v2659
    %v2661 = vrot.slane %v2502, 4
    %v2662 = vrot.slane %v2503, 4
    %v2663 = vsel %vm526, %v2661, %v2662
    %v2664 = vrot.slane %v2504, 4
    %v2665 = vsel %vm526, %v2662, %v2664
    %v2672 = vadd.f32 %v2498, %v2658
    %v2673 = vadd.f32 %v2499, %v2660
    %v2674 = vadd.f32 %v2500, %v2659
    %v2675 = vadd.f32 %v2502, %v2663
    %v2676 = vadd.f32 %v2503, %v2665
    %v2677 = vadd.f32 %v2504, %v2664
    %v2678 = vmul.f32 %v2672, 0.10936069
    %v2679 = vmul.f32 %v2673, 0.10936069
    %v2680 = vmul.f32 %v2674, 0.10936069
    %v2681 = vmul.f32 %v2675, 0.10936069
    %v2682 = vmul.f32 %v2676, 0.10936069
    %v2683 = vmul.f32 %v2677, 0.10936069
    %v2690 = vrot.slane %v2678, 6
    %v2691 = vrot.slane %v2679, 6
    %v2692 = vsel %vm549, %v2690, %v2691
    %v2693 = vrot.slane %v2680, 6
    %v2694 = vsel %vm549, %v2691, %v2693
    %v2695 = vrot.slane %v2681, 6
    %v2696 = vrot.slane %v2682, 6
    %v2697 = vsel %vm549, %v2695, %v2696
    %v2698 = vrot.slane %v2683, 6
    %v2699 = vsel %vm549, %v2696, %v2698
    %v2706 = vadd.f32 %v2648, %v2690
    %v2707 = vadd.f32 %v2649, %v2692
    %v2708 = vadd.f32 %v2650, %v2694
    %v2709 = vadd.f32 %v2651, %v2695
    %v2710 = vadd.f32 %v2652, %v2697
    %v2711 = vadd.f32 %v2653, %v2699
    %v2712 = vrot.slane %v2498, 2
    %v2713 = vsel %vm462, %v2712, %v2518
    %v2714 = vrot.slane %v2502, 2
    %v2715 = vsel %vm462, %v2714, %v2523
    %v2720 = vadd.f32 %v2498, %v2713
    %v2721 = vadd.f32 %v2499, %v2520
    %v2722 = vadd.f32 %v2500, %v2519
    %v2723 = vadd.f32 %v2502, %v2715
    %v2724 = vadd.f32 %v2503, %v2525
    %v2725 = vadd.f32 %v2504, %v2524
    %v2726 = vmul.f32 %v2720, 0.21300554
    %v2727 = vmul.f32 %v2721, 0.21300554
    %v2728 = vmul.f32 %v2722, 0.21300554
    %v2729 = vmul.f32 %v2723, 0.21300554
    %v2730 = vmul.f32 %v2724, 0.21300554
    %v2731 = vmul.f32 %v2725, 0.21300554
    %v2738 = vrot.slane %v2726, 7
    %v2739 = vrot.slane %v2727, 7
    %v2740 = vsel %vm687, %v2738, %v2739
    %v2741 = vrot.slane %v2728, 7
    %v2742 = vsel %vm687, %v2739, %v2741
    %v2743 = vrot.slane %v2729, 7
    %v2744 = vrot.slane %v2730, 7
    %v2745 = vsel %vm687, %v2743, %v2744
    %v2746 = vrot.slane %v2731, 7
    %v2747 = vsel %vm687, %v2744, %v2746
    %v2754 = vadd.f32 %v2706, %v2738
    %v2755 = vadd.f32 %v2707, %v2740
    %v2756 = vadd.f32 %v2708, %v2742
    %v2757 = vadd.f32 %v2709, %v2743
    %v2758 = vadd.f32 %v2710, %v2745
    %v2759 = vadd.f32 %v2711, %v2747
    %v2760 = vsub.f32 %v2754, %v1386
    %v2761 = vsub.f32 %v2755, %v1387
    %v2762 = vsub.f32 %v2756, %v1388
    %v2763 = vsub.f32 %v2757, %v1389
    %v2764 = vsub.f32 %v2758, %v1390
    %v2765 = vsub.f32 %v2759, %v1391
    %v2766 = vmul.f32 %v18, %v26
    %v2767 = vmul.f32 %v19, %v27
    %v2768 = vmul.f32 %v20, %v28
    %v2769 = vmul.f32 %v21, %v29
    %v2770 = vmul.f32 %v22, %v30
    %v2771 = vmul.f32 %v23, %v31
    %v2772 = vmul.f32 %v24, %v32
    %v2773 = vmul.f32 %v25, %v33
    %v2774 = vmul.f32 %v2766, 0.26601171
    %v2775 = vmul.f32 %v2767, 0.26601171
    %v2776 = vmul.f32 %v2768, 0.26601171
    %v2777 = vmul.f32 %v2769, 0.26601171
    %v2778 = vmul.f32 %v2770, 0.26601171
    %v2779 = vmul.f32 %v2771, 0.26601171
    %v2780 = vmul.f32 %v2772, 0.26601171
    %v2781 = vmul.f32 %v2773, 0.26601171
    %2790 = vrot.lane.b32.xlu0 %v2766, 118
    %v2791 = vpop.permute.xlu0 %2790
    %2792 = vrot.lane.b32.xlu0 %v2767, 118
    %v2793 = vpop.permute.xlu0 %2792
    %2794 = vrot.lane.b32.xlu0 %v2768, 118
    %v2795 = vpop.permute.xlu0 %2794
    %2796 = vrot.lane.b32.xlu0 %v2769, 118
    %v2797 = vpop.permute.xlu0 %2796
    %2798 = vrot.lane.b32.xlu0 %v2770, 118
    %v2799 = vpop.permute.xlu0 %2798
    %2800 = vrot.lane.b32.xlu0 %v2771, 118
    %v2801 = vpop.permute.xlu0 %2800
    %2802 = vrot.lane.b32.xlu0 %v2772, 118
    %v2803 = vpop.permute.xlu0 %2802
    %2804 = vrot.lane.b32.xlu0 %v2773, 118
    %v2805 = vpop.permute.xlu0 %2804
    %v2814 = vadd.f32 %v2766, %v2791
    %v2815 = vadd.f32 %v2767, %v2793
    %v2816 = vadd.f32 %v2768, %v2795
    %v2817 = vadd.f32 %v2769, %v2797
    %v2818 = vadd.f32 %v2770, %v2799
    %v2819 = vadd.f32 %v2771, %v2801
    %v2820 = vadd.f32 %v2772, %v2803
    %v2821 = vadd.f32 %v2773, %v2805
    %v2822 = vmul.f32 %v2814, 0.0010283801
    %v2823 = vmul.f32 %v2815, 0.0010283801
    %v2824 = vmul.f32 %v2816, 0.0010283801
    %v2825 = vmul.f32 %v2817, 0.0010283801
    %v2826 = vmul.f32 %v2818, 0.0010283801
    %v2827 = vmul.f32 %v2819, 0.0010283801
    %v2828 = vmul.f32 %v2820, 0.0010283801
    %v2829 = vmul.f32 %v2821, 0.0010283801
    %2838 = vrot.lane.b32.xlu0 %v2822, 5
    %v2839 = vpop.permute.xlu0 %2838
    %2840 = vrot.lane.b32.xlu0 %v2823, 5
    %v2841 = vpop.permute.xlu0 %2840
    %2842 = vrot.lane.b32.xlu0 %v2824, 5
    %v2843 = vpop.permute.xlu0 %2842
    %2844 = vrot.lane.b32.xlu0 %v2825, 5
    %v2845 = vpop.permute.xlu0 %2844
    %2846 = vrot.lane.b32.xlu0 %v2826, 5
    %v2847 = vpop.permute.xlu0 %2846
    %2848 = vrot.lane.b32.xlu0 %v2827, 5
    %v2849 = vpop.permute.xlu0 %2848
    %2850 = vrot.lane.b32.xlu0 %v2828, 5
    %v2851 = vpop.permute.xlu0 %2850
    %2852 = vrot.lane.b32.xlu0 %v2829, 5
    %v2853 = vpop.permute.xlu0 %2852
    %v2862 = vadd.f32 %v2774, %v2839
    %v2863 = vadd.f32 %v2775, %v2841
    %v2864 = vadd.f32 %v2776, %v2843
    %v2865 = vadd.f32 %v2777, %v2845
    %v2866 = vadd.f32 %v2778, %v2847
    %v2867 = vadd.f32 %v2779, %v2849
    %v2868 = vadd.f32 %v2780, %v2851
    %v2869 = vadd.f32 %v2781, %v2853
    %2870 = vrot.lane.b32.xlu0 %v2766, 120
    %v2871 = vpop.permute.xlu0 %2870
    %2872 = vrot.lane.b32.xlu0 %v2767, 120
    %v2873 = vpop.permute.xlu0 %2872
    %2874 = vrot.lane.b32.xlu0 %v2768, 120
    %v2875 = vpop.permute.xlu0 %2874
    %2876 = vrot.lane.b32.xlu0 %v2769, 120
    %v2877 = vpop.permute.xlu0 %2876
    %2878 = vrot.lane.b32.xlu0 %v2770, 120
    %v2879 = vpop.permute.xlu0 %2878
    %2880 = vrot.lane.b32.xlu0 %v2771, 120
    %v2881 = vpop.permute.xlu0 %2880
    %2882 = vrot.lane.b32.xlu0 %v2772, 120
    %v2883 = vpop.permute.xlu0 %2882
    %2884 = vrot.lane.b32.xlu0 %v2773, 120
    %v2885 = vpop.permute.xlu0 %2884
    %v2894 = vadd.f32 %v2766, %v2871
    %v2895 = vadd.f32 %v2767, %v2873
    %v2896 = vadd.f32 %v2768, %v2875
    %v2897 = vadd.f32 %v2769, %v2877
    %v2898 = vadd.f32 %v2770, %v2879
    %v2899 = vadd.f32 %v2771, %v2881
    %v2900 = vadd.f32 %v2772, %v2883
    %v2901 = vadd.f32 %v2773, %v2885
    %v2902 = vmul.f32 %v2894, 0.007598758
    %v2903 = vmul.f32 %v2895, 0.007598758
    %v2904 = vmul.f32 %v2896, 0.007598758
    %v2905 = vmul.f32 %v2897, 0.007598758
    %v2906 = vmul.f32 %v2898, 0.007598758
    %v2907 = vmul.f32 %v2899, 0.007598758
    %v2908 = vmul.f32 %v2900, 0.007598758
    %v2909 = vmul.f32 %v2901, 0.007598758
    %2918 = vrot.lane.b32.xlu0 %v2902, 4
    %v2919 = vpop.permute.xlu0 %2918
    %2920 = vrot.lane.b32.xlu0 %v2903, 4
    %v2921 = vpop.permute.xlu0 %2920
    %2922 = vrot.lane.b32.xlu0 %v2904, 4
    %v2923 = vpop.permute.xlu0 %2922
    %2924 = vrot.lane.b32.xlu0 %v2905, 4
    %v2925 = vpop.permute.xlu0 %2924
    %2926 = vrot.lane.b32.xlu0 %v2906, 4
    %v2927 = vpop.permute.xlu0 %2926
    %2928 = vrot.lane.b32.xlu0 %v2907, 4
    %v2929 = vpop.permute.xlu0 %2928
    %2930 = vrot.lane.b32.xlu0 %v2908, 4
    %v2931 = vpop.permute.xlu0 %2930
    %2932 = vrot.lane.b32.xlu0 %v2909, 4
    %v2933 = vpop.permute.xlu0 %2932
    %v2942 = vadd.f32 %v2862, %v2919
    %v2943 = vadd.f32 %v2863, %v2921
    %v2944 = vadd.f32 %v2864, %v2923
    %v2945 = vadd.f32 %v2865, %v2925
    %v2946 = vadd.f32 %v2866, %v2927
    %v2947 = vadd.f32 %v2867, %v2929
    %v2948 = vadd.f32 %v2868, %v2931
    %v2949 = vadd.f32 %v2869, %v2933
    %2950 = vrot.lane.b32.xlu0 %v2766, 122
    %v2951 = vpop.permute.xlu0 %2950
    %2952 = vrot.lane.b32.xlu0 %v2767, 122
    %v2953 = vpop.permute.xlu0 %2952
    %2954 = vrot.lane.b32.xlu0 %v2768, 122
    %v2955 = vpop.permute.xlu0 %2954
    %2956 = vrot.lane.b32.xlu0 %v2769, 122
    %v2957 = vpop.permute.xlu0 %2956
    %2958 = vrot.lane.b32.xlu0 %v2770, 122
    %v2959 = vpop.permute.xlu0 %2958
    %2960 = vrot.lane.b32.xlu0 %v2771, 122
    %v2961 = vpop.permute.xlu0 %2960
    %2962 = vrot.lane.b32.xlu0 %v2772, 122
    %v2963 = vpop.permute.xlu0 %2962
    %2964 = vrot.lane.b32.xlu0 %v2773, 122
    %v2965 = vpop.permute.xlu0 %2964
    %v2974 = vadd.f32 %v2766, %v2951
    %v2975 = vadd.f32 %v2767, %v2953
    %v2976 = vadd.f32 %v2768, %v2955
    %v2977 = vadd.f32 %v2769, %v2957
    %v2978 = vadd.f32 %v2770, %v2959
    %v2979 = vadd.f32 %v2771, %v2961
    %v2980 = vadd.f32 %v2772, %v2963
    %v2981 = vadd.f32 %v2773, %v2965
    %v2982 = vmul.f32 %v2974, 0.036000773
    %v2983 = vmul.f32 %v2975, 0.036000773
    %v2984 = vmul.f32 %v2976, 0.036000773
    %v2985 = vmul.f32 %v2977, 0.036000773
    %v2986 = vmul.f32 %v2978, 0.036000773
    %v2987 = vmul.f32 %v2979, 0.036000773
    %v2988 = vmul.f32 %v2980, 0.036000773
    %v2989 = vmul.f32 %v2981, 0.036000773
    %2998 = vrot.lane.b32.xlu0 %v2982, 3
    %v2999 = vpop.permute.xlu0 %2998
    %3000 = vrot.lane.b32.xlu0 %v2983, 3
    %v3001 = vpop.permute.xlu0 %3000
    %3002 = vrot.lane.b32.xlu0 %v2984, 3
    %v3003 = vpop.permute.xlu0 %3002
    %3004 = vrot.lane.b32.xlu0 %v2985, 3
    %v3005 = vpop.permute.xlu0 %3004
    %3006 = vrot.lane.b32.xlu0 %v2986, 3
    %v3007 = vpop.permute.xlu0 %3006
    %3008 = vrot.lane.b32.xlu0 %v2987, 3
    %v3009 = vpop.permute.xlu0 %3008
    %3010 = vrot.lane.b32.xlu0 %v2988, 3
    %v3011 = vpop.permute.xlu0 %3010
    %3012 = vrot.lane.b32.xlu0 %v2989, 3
    %v3013 = vpop.permute.xlu0 %3012
    %v3022 = vadd.f32 %v2942, %v2999
    %v3023 = vadd.f32 %v2943, %v3001
    %v3024 = vadd.f32 %v2944, %v3003
    %v3025 = vadd.f32 %v2945, %v3005
    %v3026 = vadd.f32 %v2946, %v3007
    %v3027 = vadd.f32 %v2947, %v3009
    %v3028 = vadd.f32 %v2948, %v3011
    %v3029 = vadd.f32 %v2949, %v3013
    %3030 = vrot.lane.b32.xlu0 %v2766, 124
    %v3031 = vpop.permute.xlu0 %3030
    %3032 = vrot.lane.b32.xlu0 %v2767, 124
    %v3033 = vpop.permute.xlu0 %3032
    %3034 = vrot.lane.b32.xlu0 %v2768, 124
    %v3035 = vpop.permute.xlu0 %3034
    %3036 = vrot.lane.b32.xlu0 %v2769, 124
    %v3037 = vpop.permute.xlu0 %3036
    %3038 = vrot.lane.b32.xlu0 %v2770, 124
    %v3039 = vpop.permute.xlu0 %3038
    %3040 = vrot.lane.b32.xlu0 %v2771, 124
    %v3041 = vpop.permute.xlu0 %3040
    %3042 = vrot.lane.b32.xlu0 %v2772, 124
    %v3043 = vpop.permute.xlu0 %3042
    %3044 = vrot.lane.b32.xlu0 %v2773, 124
    %v3045 = vpop.permute.xlu0 %3044
    %v3054 = vadd.f32 %v2766, %v3031
    %v3055 = vadd.f32 %v2767, %v3033
    %v3056 = vadd.f32 %v2768, %v3035
    %v3057 = vadd.f32 %v2769, %v3037
    %v3058 = vadd.f32 %v2770, %v3039
    %v3059 = vadd.f32 %v2771, %v3041
    %v3060 = vadd.f32 %v2772, %v3043
    %v3061 = vadd.f32 %v2773, %v3045
    %v3062 = vmul.f32 %v3054, 0.10936069
    %v3063 = vmul.f32 %v3055, 0.10936069
    %v3064 = vmul.f32 %v3056, 0.10936069
    %v3065 = vmul.f32 %v3057, 0.10936069
    %v3066 = vmul.f32 %v3058, 0.10936069
    %v3067 = vmul.f32 %v3059, 0.10936069
    %v3068 = vmul.f32 %v3060, 0.10936069
    %v3069 = vmul.f32 %v3061, 0.10936069
    %3078 = vrot.lane.b32.xlu0 %v3062, 2
    %v3079 = vpop.permute.xlu0 %3078
    %3080 = vrot.lane.b32.xlu0 %v3063, 2
    %v3081 = vpop.permute.xlu0 %3080
    %3082 = vrot.lane.b32.xlu0 %v3064, 2
    %v3083 = vpop.permute.xlu0 %3082
    %3084 = vrot.lane.b32.xlu0 %v3065, 2
    %v3085 = vpop.permute.xlu0 %3084
    %3086 = vrot.lane.b32.xlu0 %v3066, 2
    %v3087 = vpop.permute.xlu0 %3086
    %3088 = vrot.lane.b32.xlu0 %v3067, 2
    %v3089 = vpop.permute.xlu0 %3088
    %3090 = vrot.lane.b32.xlu0 %v3068, 2
    %v3091 = vpop.permute.xlu0 %3090
    %3092 = vrot.lane.b32.xlu0 %v3069, 2
    %v3093 = vpop.permute.xlu0 %3092
    %v3102 = vadd.f32 %v3022, %v3079
    %v3103 = vadd.f32 %v3023, %v3081
    %v3104 = vadd.f32 %v3024, %v3083
    %v3105 = vadd.f32 %v3025, %v3085
    %v3106 = vadd.f32 %v3026, %v3087
    %v3107 = vadd.f32 %v3027, %v3089
    %v3108 = vadd.f32 %v3028, %v3091
    %v3109 = vadd.f32 %v3029, %v3093
    %3110 = vrot.lane.b32.xlu0 %v2766, 126
    %v3111 = vpop.permute.xlu0 %3110
    %3112 = vrot.lane.b32.xlu0 %v2767, 126
    %v3113 = vpop.permute.xlu0 %3112
    %3114 = vrot.lane.b32.xlu0 %v2768, 126
    %v3115 = vpop.permute.xlu0 %3114
    %3116 = vrot.lane.b32.xlu0 %v2769, 126
    %v3117 = vpop.permute.xlu0 %3116
    %3118 = vrot.lane.b32.xlu0 %v2770, 126
    %v3119 = vpop.permute.xlu0 %3118
    %3120 = vrot.lane.b32.xlu0 %v2771, 126
    %v3121 = vpop.permute.xlu0 %3120
    %3122 = vrot.lane.b32.xlu0 %v2772, 126
    %v3123 = vpop.permute.xlu0 %3122
    %3124 = vrot.lane.b32.xlu0 %v2773, 126
    %v3125 = vpop.permute.xlu0 %3124
    %v3134 = vadd.f32 %v2766, %v3111
    %v3135 = vadd.f32 %v2767, %v3113
    %v3136 = vadd.f32 %v2768, %v3115
    %v3137 = vadd.f32 %v2769, %v3117
    %v3138 = vadd.f32 %v2770, %v3119
    %v3139 = vadd.f32 %v2771, %v3121
    %v3140 = vadd.f32 %v2772, %v3123
    %v3141 = vadd.f32 %v2773, %v3125
    %v3142 = vmul.f32 %v3134, 0.21300554
    %v3143 = vmul.f32 %v3135, 0.21300554
    %v3144 = vmul.f32 %v3136, 0.21300554
    %v3145 = vmul.f32 %v3137, 0.21300554
    %v3146 = vmul.f32 %v3138, 0.21300554
    %v3147 = vmul.f32 %v3139, 0.21300554
    %v3148 = vmul.f32 %v3140, 0.21300554
    %v3149 = vmul.f32 %v3141, 0.21300554
    %3158 = vrot.lane.b32.xlu0 %v3142, 1
    %v3159 = vpop.permute.xlu0 %3158
    %3160 = vrot.lane.b32.xlu0 %v3143, 1
    %v3161 = vpop.permute.xlu0 %3160
    %3162 = vrot.lane.b32.xlu0 %v3144, 1
    %v3163 = vpop.permute.xlu0 %3162
    %3164 = vrot.lane.b32.xlu0 %v3145, 1
    %v3165 = vpop.permute.xlu0 %3164
    %3166 = vrot.lane.b32.xlu0 %v3146, 1
    %v3167 = vpop.permute.xlu0 %3166
    %3168 = vrot.lane.b32.xlu0 %v3147, 1
    %v3169 = vpop.permute.xlu0 %3168
    %3170 = vrot.lane.b32.xlu0 %v3148, 1
    %v3171 = vpop.permute.xlu0 %3170
    %3172 = vrot.lane.b32.xlu0 %v3149, 1
    %v3173 = vpop.permute.xlu0 %3172
    %v3182 = vadd.f32 %v3102, %v3159
    %v3183 = vadd.f32 %v3103, %v3161
    %v3184 = vadd.f32 %v3104, %v3163
    %v3185 = vadd.f32 %v3105, %v3165
    %v3186 = vadd.f32 %v3106, %v3167
    %v3187 = vadd.f32 %v3107, %v3169
    %v3188 = vadd.f32 %v3108, %v3171
    %v3189 = vadd.f32 %v3109, %v3173
    %v3190 = vmul.f32 %v3182, 0.26601171
    %v3191 = vmul.f32 %v3183, 0.26601171
    %v3192 = vmul.f32 %v3184, 0.26601171
    %v3193 = vmul.f32 %v3186, 0.26601171
    %v3194 = vmul.f32 %v3187, 0.26601171
    %v3195 = vmul.f32 %v3188, 0.26601171
    %v3202 = vrot.slane %v3183, 2
    %v3203 = vrot.slane %v3184, 2
    %v3204 = vsel %vm462, %v3202, %v3203
    %v3205 = vrot.slane %v3185, 2
    %v3206 = vsel %vm462, %v3203, %v3205
    %v3207 = vrot.slane %v3187, 2
    %v3208 = vrot.slane %v3188, 2
    %v3209 = vsel %vm462, %v3207, %v3208
    %v3210 = vrot.slane %v3189, 2
    %v3211 = vsel %vm462, %v3208, %v3210
    %v3216 = vadd.f32 %v3182, %v3204
    %v3217 = vadd.f32 %v3183, %v3206
    %v3218 = vadd.f32 %v3186, %v3209
    %v3219 = vadd.f32 %v3187, %v3211
    %v3220 = vmul.f32 %v3216, 0.0010283801
    %v3221 = vmul.f32 %v3217, 0.0010283801
    %v3222 = vmul.f32 %v3218, 0.0010283801
    %v3223 = vmul.f32 %v3219, 0.0010283801
    %v3228 = vrot.slane %v3220, 3
    %v3229 = vrot.slane %v3221, 3
    %v3230 = vsel %vm489, %v3228, %v3229
    %v3231 = vrot.slane %v3222, 3
    %v3232 = vrot.slane %v3223, 3
    %v3233 = vsel %vm489, %v3231, %v3232
    %v3240 = vadd.f32 %v3190, %v3228
    %v3241 = vadd.f32 %v3191, %v3230
    %v3242 = vadd.f32 %v3192, %v3229
    %v3243 = vadd.f32 %v3193, %v3231
    %v3244 = vadd.f32 %v3194, %v3233
    %v3245 = vadd.f32 %v3195, %v3232
    %v3246 = vadd.f32 %v3182, %v3183
    %v3247 = vadd.f32 %v3183, %v3184
    %v3248 = vadd.f32 %v3184, %v3185
    %v3249 = vadd.f32 %v3186, %v3187
    %v3250 = vadd.f32 %v3187, %v3188
    %v3251 = vadd.f32 %v3188, %v3189
    %v3252 = vmul.f32 %v3246, 0.007598758
    %v3253 = vmul.f32 %v3247, 0.007598758
    %v3254 = vmul.f32 %v3248, 0.007598758
    %v3255 = vmul.f32 %v3249, 0.007598758
    %v3256 = vmul.f32 %v3250, 0.007598758
    %v3257 = vmul.f32 %v3251, 0.007598758
    %v3264 = vrot.slane %v3252, 4
    %v3265 = vrot.slane %v3253, 4
    %v3266 = vsel %vm526, %v3264, %v3265
    %v3267 = vrot.slane %v3254, 4
    %v3268 = vsel %vm526, %v3265, %v3267
    %v3269 = vrot.slane %v3255, 4
    %v3270 = vrot.slane %v3256, 4
    %v3271 = vsel %vm526, %v3269, %v3270
    %v3272 = vrot.slane %v3257, 4
    %v3273 = vsel %vm526, %v3270, %v3272
    %v3280 = vadd.f32 %v3240, %v3264
    %v3281 = vadd.f32 %v3241, %v3266
    %v3282 = vadd.f32 %v3242, %v3268
    %v3283 = vadd.f32 %v3243, %v3269
    %v3284 = vadd.f32 %v3244, %v3271
    %v3285 = vadd.f32 %v3245, %v3273
    %v3286 = vrot.slane %v3183, 6
    %v3287 = vrot.slane %v3184, 6
    %v3288 = vsel %vm549, %v3286, %v3287
    %v3289 = vrot.slane %v3187, 6
    %v3290 = vrot.slane %v3188, 6
    %v3291 = vsel %vm549, %v3289, %v3290
    %v3298 = vadd.f32 %v3182, %v3286
    %v3299 = vadd.f32 %v3183, %v3288
    %v3300 = vadd.f32 %v3184, %v3287
    %v3301 = vadd.f32 %v3186, %v3289
    %v3302 = vadd.f32 %v3187, %v3291
    %v3303 = vadd.f32 %v3188, %v3290
    %v3304 = vmul.f32 %v3298, 0.036000773
    %v3305 = vmul.f32 %v3299, 0.036000773
    %v3306 = vmul.f32 %v3300, 0.036000773
    %v3307 = vmul.f32 %v3301, 0.036000773
    %v3308 = vmul.f32 %v3302, 0.036000773
    %v3309 = vmul.f32 %v3303, 0.036000773
    %v3316 = vrot.slane %v3304, 5
    %v3317 = vrot.slane %v3305, 5
    %v3318 = vsel %vm580, %v3316, %v3317
    %v3319 = vrot.slane %v3306, 5
    %v3320 = vsel %vm580, %v3317, %v3319
    %v3321 = vrot.slane %v3307, 5
    %v3322 = vrot.slane %v3308, 5
    %v3323 = vsel %vm580, %v3321, %v3322
    %v3324 = vrot.slane %v3309, 5
    %v3325 = vsel %vm580, %v3322, %v3324
    %v3332 = vadd.f32 %v3280, %v3316
    %v3333 = vadd.f32 %v3281, %v3318
    %v3334 = vadd.f32 %v3282, %v3320
    %v3335 = vadd.f32 %v3283, %v3321
    %v3336 = vadd.f32 %v3284, %v3323
    %v3337 = vadd.f32 %v3285, %v3325
    %v3340 = vrot.slane %v3182, 4
    %v3341 = vrot.slane %v3183, 4
    %v3342 = vsel %vm526, %v3340, %v3341
    %v3343 = vrot.slane %v3184, 4
    %v3344 = vsel %vm526, %v3341, %v3343
    %v3345 = vrot.slane %v3186, 4
    %v3346 = vrot.slane %v3187, 4
    %v3347 = vsel %vm526, %v3345, %v3346
    %v3348 = vrot.slane %v3188, 4
    %v3349 = vsel %vm526, %v3346, %v3348
    %v3356 = vadd.f32 %v3182, %v3342
    %v3357 = vadd.f32 %v3183, %v3344
    %v3358 = vadd.f32 %v3184, %v3343
    %v3359 = vadd.f32 %v3186, %v3347
    %v3360 = vadd.f32 %v3187, %v3349
    %v3361 = vadd.f32 %v3188, %v3348
    %v3362 = vmul.f32 %v3356, 0.10936069
    %v3363 = vmul.f32 %v3357, 0.10936069
    %v3364 = vmul.f32 %v3358, 0.10936069
    %v3365 = vmul.f32 %v3359, 0.10936069
    %v3366 = vmul.f32 %v3360, 0.10936069
    %v3367 = vmul.f32 %v3361, 0.10936069
    %v3374 = vrot.slane %v3362, 6
    %v3375 = vrot.slane %v3363, 6
    %v3376 = vsel %vm549, %v3374, %v3375
    %v3377 = vrot.slane %v3364, 6
    %v3378 = vsel %vm549, %v3375, %v3377
    %v3379 = vrot.slane %v3365, 6
    %v3380 = vrot.slane %v3366, 6
    %v3381 = vsel %vm549, %v3379, %v3380
    %v3382 = vrot.slane %v3367, 6
    %v3383 = vsel %vm549, %v3380, %v3382
    %v3390 = vadd.f32 %v3332, %v3374
    %v3391 = vadd.f32 %v3333, %v3376
    %v3392 = vadd.f32 %v3334, %v3378
    %v3393 = vadd.f32 %v3335, %v3379
    %v3394 = vadd.f32 %v3336, %v3381
    %v3395 = vadd.f32 %v3337, %v3383
    %v3396 = vrot.slane %v3182, 2
    %v3397 = vsel %vm462, %v3396, %v3202
    %v3398 = vrot.slane %v3186, 2
    %v3399 = vsel %vm462, %v3398, %v3207
    %v3404 = vadd.f32 %v3182, %v3397
    %v3405 = vadd.f32 %v3183, %v3204
    %v3406 = vadd.f32 %v3184, %v3203
    %v3407 = vadd.f32 %v3186, %v3399
    %v3408 = vadd.f32 %v3187, %v3209
    %v3409 = vadd.f32 %v3188, %v3208
    %v3410 = vmul.f32 %v3404, 0.21300554
    %v3411 = vmul.f32 %v3405, 0.21300554
    %v3412 = vmul.f32 %v3406, 0.21300554
    %v3413 = vmul.f32 %v3407, 0.21300554
    %v3414 = vmul.f32 %v3408, 0.21300554
    %v3415 = vmul.f32 %v3409, 0.21300554
    %v3422 = vrot.slane %v3410, 7
    %v3423 = vrot.slane %v3411, 7
    %v3424 = vsel %vm687, %v3422, %v3423
    %v3425 = vrot.slane %v3412, 7
    %v3426 = vsel %vm687, %v3423, %v3425
    %v3427 = vrot.slane %v3413, 7
    %v3428 = vrot.slane %v3414, 7
    %v3429 = vsel %vm687, %v3427, %v3428
    %v3430 = vrot.slane %v3415, 7
    %v3431 = vsel %vm687, %v3428, %v3430
    %v3438 = vadd.f32 %v3390, %v3422
    %v3439 = vadd.f32 %v3391, %v3424
    %v3440 = vadd.f32 %v3392, %v3426
    %v3441 = vadd.f32 %v3393, %v3427
    %v3442 = vadd.f32 %v3394, %v3429
    %v3443 = vadd.f32 %v3395, %v3431
    %v3444 = vsub.f32 %v3438, %v1392
    %v3445 = vsub.f32 %v3439, %v1393
    %v3446 = vsub.f32 %v3440, %v1394
    %v3447 = vsub.f32 %v3441, %v1395
    %v3448 = vsub.f32 %v3442, %v1396
    %v3449 = vsub.f32 %v3443, %v1397
    %v3450 = vmul.f32 %v1392, 2.0
    %v3451 = vmul.f32 %v1393, 2.0
    %v3452 = vmul.f32 %v1394, 2.0
    %v3453 = vmul.f32 %v1395, 2.0
    %v3454 = vmul.f32 %v1396, 2.0
    %v3455 = vmul.f32 %v1397, 2.0
    %v3456 = vadd.f32 %v3450, 0.0001
    %v3457 = vadd.f32 %v3451, 0.0001
    %v3458 = vadd.f32 %v3452, 0.0001
    %v3459 = vadd.f32 %v3453, 0.0001
    %v3460 = vadd.f32 %v3454, 0.0001
    %v3461 = vadd.f32 %v3455, 0.0001
    %v3462 = vmul.f32 %v3444, 2.0
    %v3463 = vmul.f32 %v3445, 2.0
    %v3464 = vmul.f32 %v3446, 2.0
    %v3465 = vmul.f32 %v3447, 2.0
    %v3466 = vmul.f32 %v3448, 2.0
    %v3467 = vmul.f32 %v3449, 2.0
    %v3468 = vadd.f32 %v3462, 0.0009
    %v3469 = vadd.f32 %v3463, 0.0009
    %v3470 = vadd.f32 %v3464, 0.0009
    %v3471 = vadd.f32 %v3465, 0.0009
    %v3472 = vadd.f32 %v3466, 0.0009
    %v3473 = vadd.f32 %v3467, 0.0009
    %v3474 = vmul.f32 %v3456, %v3468
    %v3475 = vmul.f32 %v3457, %v3469
    %v3476 = vmul.f32 %v3458, %v3470
    %v3477 = vmul.f32 %v3459, %v3471
    %v3478 = vmul.f32 %v3460, %v3472
    %v3479 = vmul.f32 %v3461, %v3473
    %v3480 = vadd.f32 %v1380, %v1386
    %v3481 = vadd.f32 %v1381, %v1387
    %v3482 = vadd.f32 %v1382, %v1388
    %v3483 = vadd.f32 %v1383, %v1389
    %v3484 = vadd.f32 %v1384, %v1390
    %v3485 = vadd.f32 %v1385, %v1391
    %v3486 = vadd.f32 %v3480, 0.0001
    %v3487 = vadd.f32 %v3481, 0.0001
    %v3488 = vadd.f32 %v3482, 0.0001
    %v3489 = vadd.f32 %v3483, 0.0001
    %v3490 = vadd.f32 %v3484, 0.0001
    %v3491 = vadd.f32 %v3485, 0.0001
    %v3492 = vadd.f32 %v2076, %v2760
    %v3493 = vadd.f32 %v2077, %v2761
    %v3494 = vadd.f32 %v2078, %v2762
    %v3495 = vadd.f32 %v2079, %v2763
    %v3496 = vadd.f32 %v2080, %v2764
    %v3497 = vadd.f32 %v2081, %v2765
    %v3498 = vadd.f32 %v3492, 0.0009
    %v3499 = vadd.f32 %v3493, 0.0009
    %v3500 = vadd.f32 %v3494, 0.0009
    %v3501 = vadd.f32 %v3495, 0.0009
    %v3502 = vadd.f32 %v3496, 0.0009
    %v3503 = vadd.f32 %v3497, 0.0009
    %v3504 = vmul.f32 %v3486, %v3498
    %v3505 = vmul.f32 %v3487, %v3499
    %v3506 = vmul.f32 %v3488, %v3500
    %v3507 = vmul.f32 %v3489, %v3501
    %v3508 = vmul.f32 %v3490, %v3502
    %v3509 = vmul.f32 %v3491, %v3503
    %v3510 = vrcp.pop %v3504
    %v3511 = vmul.f32 %v3474, %v3510
    %v3512 = vrcp.pop %v3505
    %v3513 = vmul.f32 %v3475, %v3512
    %v3514 = vrcp.pop %v3506
    %v3515 = vmul.f32 %v3476, %v3514
    %v3516 = vrcp.pop %v3507
    %v3517 = vmul.f32 %v3477, %v3516
    %v3518 = vrcp.pop %v3508
    %v3519 = vmul.f32 %v3478, %v3518
    %v3520 = vrcp.pop %v3509
    %v3521 = vmul.f32 %v3479, %v3520
    %s3522 = sld [smem:[#allocation2]]
    %v3529 = vrot.slane %v3511, 5
    %v3530 = vrot.slane %v3513, 5
    %v3531 = vsel %vm580, %v3529, %v3530
    %v3532 = vrot.slane %v3515, 5
    %v3533 = vsel %vm580, %v3530, %v3532
    %v3534 = vrot.slane %v3517, 5
    %v3535 = vrot.slane %v3519, 5
    %v3536 = vsel %vm580, %v3534, %v3535
    %v3537 = vrot.slane %v3521, 5
    %v3538 = vsel %vm580, %v3535, %v3537
    %3539 = vrot.lane.b32.xlu0 %v3531, 123
    %v3540 = vpop.permute.xlu0 %3539
    %3541 = vrot.lane.b32.xlu0 %v3533, 123
    %v3542 = vpop.permute.xlu0 %3541
    %3543 = vrot.lane.b32.xlu0 %v3536, 123
    %v3544 = vpop.permute.xlu0 %3543
    %3545 = vrot.lane.b32.xlu0 %v3538, 123
    %v3546 = vpop.permute.xlu0 %3545
    %vm3551 = vcmask 130048
    %v3552 = vsel %vm3551, %v3540, 0.0
    %v3553 = vsel %vm3551, %v3542, 0.0
    %v3554 = vadd.f32 %v3552, %v3553
    %v3555 = vsel %vm3551, %v3544, 0.0
    %v3556 = vadd.f32 %v3554, %v3555
    %v3557 = vsel %vm3551, %v3546, 0.0
    %v3558 = vadd.f32 %v3556, %v3557
    %3559 = vadd.xlane.f32.xlu0 %v3558
    %v3560 = vpop.xlane.xlu0 %3559
    %v3561 = vrot.slane %v3560, 4
    %v3562 = vadd.f32 %v3560, %v3561
    %v3563 = vrot.slane %v3562, 2
    %v3564 = vadd.f32 %v3562, %v3563
    %v3565 = vrot.slane %v3564, 1
    %v3566 = vadd.f32 %v3564, %v3565
    %s3567 = vtos %v3566
    %s3568 = sadd.f32 %s3522, %s3567
    %s3569 = scalar_lea.smem [#allocation2], 0
    %3570 = sst [smem:[%s3569]] %s3568
    // Predicated region
    $region14: #{ssim_loss.1} parent=1 // pred_check
      %p3571 = pneg %p12
    $region15: #{ssim_loss.1} parent=1 // pred_check_branch
      %3573 = sbr.rel (%p3571) target = $region17
    $region16: #{ssim_loss.1} parent=1 // pred_region
      %s3574 = sld [smem:[#allocation2]]
      %s3575 = smul.f32 %s3574, 0.001953125
      %s3576 = ssub.f32 1.0, %s3575
      %s3577 = scalar_lea.smem [#allocation3], 0
      %3578 = sst [smem:[%s3577]] %s3576
    $region17: #{ssim_loss.1} parent=1 // pred_fallthru
      _
    // Predicated region
    $region18: #{ssim_loss.1} parent=1 // pred_check
      _
    $region19: #{ssim_loss.1} parent=1 // pred_check_branch
      %3580 = sbr.rel (0) target = $region21
    $region20: #{ssim_loss.1} parent=1 // pred_region
      %s3582 = ssub.s32 16, 16
      %3583 = vsyncadd [#allocation4], %s3582
      %3586 = dma.smem_to_hbm [#allocation3], 16, %s2, [#allocation4]
    $region21: #{ssim_loss.1} parent=1 // pred_fallthru
      _
    // Predicated region
    $region22: #{ssim_loss.1} parent=1 // pred_check
      _
    $region23: #{ssim_loss.1} parent=1 // pred_check_branch
      %3588 = sbr.rel (0) target = $region25
    $region24: #{ssim_loss.1} parent=1 // pred_region
      %3589 = dma.done [#allocation4], 16
    $region25: #{ssim_loss.1} parent=1 // pred_fallthru
      _
    %3590 = sfence
    %3591 = vsyncpa [#allocation4], 1

</llo_original>
